<compile_context>
chip_gen: v5e
topology: v5e:2x2
jax: 0.10.0
libtpu: 0.0.40
codegen_flags: <defaults>
</compile_context>

<pallas_src>
import jax
import jax.numpy as jnp
from jax.experimental import pallas as pl
from jax.experimental.pallas import tpu as pltpu


# ----------------------------------------------------------------------------
# Fused kernel: Conv3x3(+BN) -> ReLU -> AdaptiveAvgPool(5,5) -> MLP(1600,512,256,2)
#
# patches layout [T*Gp, Kp]:
#   T  = ph*pw pooling-window positions (slabs of Gp rows each)
#   Gp = N*25 rows (pool-pos-major, sample-minor), zero-padded to a multiple of 8
#   Kp = 9*Cin im2col columns (kh, kw, ci), zero-padded to a multiple of 8
# ----------------------------------------------------------------------------
def cnn_fused(patches, w_eff, b_eff, w1, b1, w2, b2, w3, b3, *, T, Gp, N):
    TG, Kp = patches.shape
    Co = w_eff.shape[1]
    H1 = w1.shape[1]
    H2 = w2.shape[1]
    O = w3.shape[1]
    P = w1.shape[0] // Co          # 25 pooled positions

    def kernel(p_ref, w_ref, be_ref, w1_hbm, b1_ref, w2_ref, b2_ref, w3_ref,
               b3_ref, o_ref, w1_vmem, pooled_ref, flat_ref, w1_sem):
        # Kick off the dominant DMA (w1, HBM -> VMEM) so it runs under the
        # conv / pool compute below.
        w1_cp = pltpu.make_async_copy(w1_hbm, w1_vmem, w1_sem.at[0])
        w1_cp.start()

        # --- Conv3x3 + folded BN as ONE im2col matmul --------------------
        h = jnp.dot(p_ref[...], w_ref[...],
                    preferred_element_type=jnp.float32)          # [T*Gp, Co]

        # --- bias + ReLU + adaptive-avg-pool(5x5) epilogue ----------------
        b = jnp.broadcast_to(be_ref[...], (Gp, Co))              # hoisted
        pooled = jnp.zeros((Gp, Co), jnp.float32)
        for t in range(T):                                       # static unroll,
            pooled = pooled + jnp.maximum(                       # 56-row aligned slabs
                h[t * Gp:(t + 1) * Gp, :] + b, 0.0)
        pooled_ref[...] = pooled * (1.0 / T)                     # rows: (pos, sample)

        # Lane-dense flatten: flat[n, p*Co + c] = pooled[p*N + n, c]
        # Column order (oh, ow, c) matches the pre-permuted w1 rows.
        for p in range(P):
            flat_ref[:, p * Co:(p + 1) * Co] = pooled_ref[p * N:(p + 1) * N, :]

        # --- MLP (Dropout = identity at inference) ------------------------
        w1_cp.wait()                                             # w1 now in VMEM
        h1 = jnp.dot(flat_ref[...].astype(jnp.bfloat16), w1_vmem[...],
                     preferred_element_type=jnp.float32)
        h1 = jnp.maximum(h1 + b1_ref[...], 0.0)
        h2 = jnp.dot(h1.astype(jnp.bfloat16), w2_ref[...],
                     preferred_element_type=jnp.float32)
        h2 = jnp.maximum(h2 + b2_ref[...], 0.0)
        o_ref[...] = (jnp.dot(h2.astype(jnp.bfloat16), w3_ref[...],
                              preferred_element_type=jnp.float32)
                      + b3_ref[...])

    return pl.pallas_call(
        kernel,
        out_shape=jax.ShapeDtypeStruct((N, O), jnp.float32),
        grid=(1,),
        in_specs=[
            pl.BlockSpec((TG, Kp), lambda i: (0, 0)),
            pl.BlockSpec((Kp, Co), lambda i: (0, 0)),
            pl.BlockSpec((1, Co), lambda i: (0, 0)),
            pl.BlockSpec(memory_space=pl.ANY),       # w1 stays in HBM; manual DMA
            pl.BlockSpec((1, H1), lambda i: (0, 0)),
            pl.BlockSpec((H1, H2), lambda i: (0, 0)),
            pl.BlockSpec((1, H2), lambda i: (0, 0)),
            pl.BlockSpec((H2, O), lambda i: (0, 0)),
            pl.BlockSpec((1, O), lambda i: (0, 0)),
        ],
        out_specs=pl.BlockSpec((N, O), lambda i: (0, 0)),
        scratch_shapes=[
            pltpu.VMEM((w1.shape[0], H1), jnp.bfloat16),   # w1 prefetch buffer
            pltpu.VMEM((Gp, Co), jnp.float32),             # pooled activations
            pltpu.VMEM((N, P * Co), jnp.float32),          # lane-dense flatten
            pltpu.SemaphoreType.DMA((1,)),
        ],
        compiler_params=pltpu.CompilerParams(dimension_semantics=("arbitrary",)),
    )(patches, w_eff, b_eff, w1, b1, w2, b2, w3, b3)


# ----------------------------------------------------------------------------
# One-time (host-side) weight preparation — done OUTSIDE the jitted forward.
# ----------------------------------------------------------------------------
def prepare_params(params, eps=1e-5):
    """Fold eval-mode BatchNorm (+ conv bias) into the conv weight/bias, pad the
    im2col K dim to a multiple of 8, permute Linear-1 rows from torch's
    (c, oh, ow) flatten order to (oh, ow, c), and cast MLP weights to bf16."""
    conv_w = params["conv_w"]                        # [Co, Ci, 3, 3]
    Co, Ci = conv_w.shape[0], conv_w.shape[1]
    scale = params["bn_gamma"] / jnp.sqrt(params["bn_var"] + eps)
    shift = params["bn_beta"] + scale * (params["conv_b"] - params["bn_mean"])
    # [Co,Ci,KH,KW] -> [KH,KW,Ci,Co] -> [9*Ci, Co]; columns match im2col (kh,kw,ci)
    w_mat = jnp.transpose(conv_w, (2, 3, 1, 0)).reshape(9 * Ci, Co)
    w_eff = (w_mat * scale[None, :]).astype(jnp.float32)
    K = 9 * Ci
    Kp = ((K + 7) // 8) * 8
    w_eff = jnp.pad(w_eff, ((0, Kp - K), (0, 0)))    # zero rows for padded columns
    b_eff = shift.reshape(1, Co).astype(jnp.float32)

    w1 = params["w1"]                                # [Co*25, 512], rows (c, p)
    P = w1.shape[0] // Co                            # 25 pooled positions
    w1p = (w1.reshape(Co, P, w1.shape[1])
             .transpose(1, 0, 2)
             .reshape(Co * P, w1.shape[1]))          # rows reordered to (p, c)

    return {
        "w_eff": w_eff, "b_eff": b_eff,
        "w1": w1p.astype(jnp.bfloat16), "b1": params["b1"].astype(jnp.float32),
        "w2": params["w2"].astype(jnp.bfloat16), "b2": params["b2"].astype(jnp.float32),
        "w3": params["w3"].astype(jnp.bfloat16), "b3": params["b3"].astype(jnp.float32),
    }


# ----------------------------------------------------------------------------
# Forward pass: tiny XLA im2col glue + ONE fused Pallas kernel.
# ----------------------------------------------------------------------------
@jax.jit
def cnn_forward(x_nchw, prep):
    N, Cin, H, W = x_nchw.shape
    # Uniform-window pooling path (matches AdaptiveAvgPool2d only in this case).
    assert H % 5 == 0 and W % 5 == 0, "adaptive pool path assumes H, W divisible by 5"
    PH, PW = H // 5, W // 5
    T = PH * PW
    K = 9 * Cin
    Kp = prep["w_eff"].shape[0]
    G = N * 25
    Gp = ((G + 7) // 8) * 8                          # 8-sublane-aligned row slabs

    # NCHW -> NHWC, spatial pad 1 (conv padding=1); im2col columns (kh, kw, ci).
    x = jnp.transpose(x_nchw, (0, 2, 3, 1))
    x_pad = jnp.pad(x, ((0, 0), (1, 1), (1, 1), (0, 0)))
    pat = jnp.concatenate(
        [x_pad[:, kh:kh + H, kw:kw + W, :] for kh in range(3) for kw in range(3)],
        axis=-1,
    )                                                 # [N, H, W, 9*Cin]
    # Regroup so each pooling-window position is one slab of (pos-major,
    # sample-minor) rows: (n, oh, ih, ow, iw, k) -> (ih, iw, oh, ow, n, k).
    pat = (pat.reshape(N, 5, PH, 5, PW, K)
              .transpose(2, 4, 1, 3, 0, 5)
              .reshape(T, G, K))
    pat = jnp.pad(pat, ((0, 0), (0, Gp - G), (0, Kp - K)))
    pat = pat.reshape(T * Gp, Kp)                     # one big MXU LHS

    return cnn_fused(pat, prep["w_eff"], prep["b_eff"],
                     prep["w1"], prep["b1"], prep["w2"], prep["b2"],
                     prep["w3"], prep["b3"], T=T, Gp=Gp, N=N)


if __name__ == "__main__":
    key = jax.random.PRNGKey(0)
    k = jax.random.split(key, 8)

    # Shapes consistent with the module: Cin=3, spatial 20x20 (divisible by 5).
    N, Cin, H, W = 2, 3, 20, 20
    Cout = 64

    x = jax.random.normal(k[0], (N, Cin, H, W), jnp.float32)

    params = {
        # Conv2d(3, 64, 3, 1, 1): kaiming_normal_ (mode='fan_out', relu)
        "conv_w": jax.random.normal(k[1], (Cout, Cin, 3, 3), jnp.float32)
        * jnp.sqrt(2.0 / (Cout * 3 * 3)),
        "conv_b": jnp.zeros((Cout,), jnp.float32),
        # BatchNorm2d(64) init: weight=1, bias=0, running_mean=0, running_var=1
        "bn_gamma": jnp.ones((Cout,), jnp.float32),
        "bn_beta": jnp.zeros((Cout,), jnp.float32),
        "bn_mean": jnp.zeros((Cout,), jnp.float32),
        "bn_var": jnp.ones((Cout,), jnp.float32),
        # Linear layers: weight ~ N(0, 0.01), bias = 0.  Stored as [in, out].
        "w1": jax.random.normal(k[2], (1600, 512), jnp.float32) * 0.01,
        "b1": jnp.zeros((1, 512), jnp.float32),
        "w2": jax.random.normal(k[3], (512, 256), jnp.float32) * 0.01,
        "b2": jnp.zeros((1, 256), jnp.float32),
        "w3": jax.random.normal(k[4], (256, 2), jnp.float32) * 0.01,
        "b3": jnp.zeros((1, 2), jnp.float32),
    }

    prep = prepare_params(params)      # one-time host-side weight prep
    out = cnn_forward(x, prep)
    jax.block_until_ready(out)
    assert out.shape == (N, 2) and out.dtype == jnp.float32
    print("KERNEL_OK")
</pallas_src>

<mosaic_0001>
module attributes {stable_mosaic.version = 11 : i64} {
  func.func @kernel(%arg0: i32, %arg1: memref<896x32xf32, #tpu.memory_space<vmem>>, %arg2: memref<32x64xf32, #tpu.memory_space<vmem>>, %arg3: memref<1x64xf32, #tpu.memory_space<vmem>>, %arg4: memref<1600x512xbf16, #tpu.memory_space<any>>, %arg5: memref<1x512xf32, #tpu.memory_space<vmem>>, %arg6: memref<512x256xbf16, #tpu.memory_space<vmem>>, %arg7: memref<1x256xf32, #tpu.memory_space<vmem>>, %arg8: memref<256x2xbf16, #tpu.memory_space<vmem>>, %arg9: memref<1x2xf32, #tpu.memory_space<vmem>>, %arg10: memref<2x2xf32, #tpu.memory_space<vmem>>, %arg11: memref<1600x512xbf16, #tpu.memory_space<vmem>>, %arg12: memref<56x64xf32, #tpu.memory_space<vmem>>, %arg13: memref<2x1600xf32, #tpu.memory_space<vmem>>, %arg14: memref<1x!tpu.dma_semaphore, #tpu.memory_space<semaphore_mem>>) attributes {dimension_semantics = [#tpu.dimension_semantics<arbitrary>], iteration_bounds = array<i64: 1>, scalar_prefetch = 0 : i64, scratch_operands = 4 : i64, tpu.core_type = #tpu.core_type<tc>, window_params = [{pipeline_mode = #tpu.pipeline_mode<synchronous>, transform_indices = @transform_0, window_bounds = array<i64: 896, 32>}, {pipeline_mode = #tpu.pipeline_mode<synchronous>, transform_indices = @transform_1, window_bounds = array<i64: 32, 64>}, {pipeline_mode = #tpu.pipeline_mode<synchronous>, transform_indices = @transform_2, window_bounds = array<i64: 1, 64>}, {}, {pipeline_mode = #tpu.pipeline_mode<synchronous>, transform_indices = @transform_4, window_bounds = array<i64: 1, 512>}, {pipeline_mode = #tpu.pipeline_mode<synchronous>, transform_indices = @transform_5, window_bounds = array<i64: 512, 256>}, {pipeline_mode = #tpu.pipeline_mode<synchronous>, transform_indices = @transform_6, window_bounds = array<i64: 1, 256>}, {pipeline_mode = #tpu.pipeline_mode<synchronous>, transform_indices = @transform_7, window_bounds = array<i64: 256, 2>}, {pipeline_mode = #tpu.pipeline_mode<synchronous>, transform_indices = @transform_8, window_bounds = array<i64: 1, 2>}, {pipeline_mode = #tpu.pipeline_mode<synchronous>, transform_indices = @transform_9, window_bounds = array<i64: 2, 2>}]} {
    %c0_i32 = arith.constant 0 : i32
    %0 = tpu.memref_slice %arg14[%c0_i32] : memref<1x!tpu.dma_semaphore, #tpu.memory_space<semaphore_mem>> -> memref<1x!tpu.dma_semaphore, #tpu.memory_space<semaphore_mem>>
    %1 = tpu.memref_squeeze %0 : memref<1x!tpu.dma_semaphore, #tpu.memory_space<semaphore_mem>> -> memref<!tpu.dma_semaphore, #tpu.memory_space<semaphore_mem>>
    tpu.enqueue_dma source(%arg4 : memref<1600x512xbf16, #tpu.memory_space<any>>) target(%arg11 : memref<1600x512xbf16, #tpu.memory_space<vmem>>) target_semaphore(%1 : memref<!tpu.dma_semaphore, #tpu.memory_space<semaphore_mem>>)
    %c0 = arith.constant 0 : index
    %c0_0 = arith.constant 0 : index
    %2 = vector.load %arg1[%c0, %c0_0] : memref<896x32xf32, #tpu.memory_space<vmem>>, vector<896x32xf32>
    %c0_1 = arith.constant 0 : index
    %c0_2 = arith.constant 0 : index
    %3 = vector.load %arg2[%c0_1, %c0_2] : memref<32x64xf32, #tpu.memory_space<vmem>>, vector<32x64xf32>
    %cst = arith.constant dense<0.000000e+00> : vector<896x64xf32>
    %4 = tpu.matmul %2, %3, %cst {dimension_numbers = #tpu.dot_dimension_numbers<[1], [0], [0], [1], [0, 0, 1, 1], [], []>} : vector<896x32xf32>, vector<32x64xf32>, vector<896x64xf32> -> vector<896x64xf32>
    %c0_3 = arith.constant 0 : index
    %c0_4 = arith.constant 0 : index
    %5 = vector.load %arg3[%c0_3, %c0_4] : memref<1x64xf32, #tpu.memory_space<vmem>>, vector<1x64xf32>
    %6 = vector.shape_cast %5 : vector<1x64xf32> to vector<1x64xf32>
    %7 = vector.broadcast %6 : vector<1x64xf32> to vector<56x64xf32>
    %cst_5 = arith.constant 0.000000e+00 : f32
    %8 = vector.broadcast %cst_5 : f32 to vector<56x64xf32>
    %9 = vector.extract_strided_slice %4 {offsets = [0, 0], sizes = [56, 64], strides = [1, 1]} : vector<896x64xf32> to vector<56x64xf32>
    %10 = arith.addf %9, %7 : vector<56x64xf32>
    %cst_6 = arith.constant 0.000000e+00 : f32
    %11 = vector.broadcast %cst_6 : f32 to vector<56x64xf32>
    %12 = arith.maximumf %10, %11 : vector<56x64xf32>
    %13 = arith.addf %8, %12 : vector<56x64xf32>
    %14 = vector.extract_strided_slice %4 {offsets = [56, 0], sizes = [56, 64], strides = [1, 1]} : vector<896x64xf32> to vector<56x64xf32>
    %15 = arith.addf %14, %7 : vector<56x64xf32>
    %cst_7 = arith.constant 0.000000e+00 : f32
    %16 = vector.broadcast %cst_7 : f32 to vector<56x64xf32>
    %17 = arith.maximumf %15, %16 : vector<56x64xf32>
    %18 = arith.addf %13, %17 : vector<56x64xf32>
    %19 = vector.extract_strided_slice %4 {offsets = [112, 0], sizes = [56, 64], strides = [1, 1]} : vector<896x64xf32> to vector<56x64xf32>
    %20 = arith.addf %19, %7 : vector<56x64xf32>
    %cst_8 = arith.constant 0.000000e+00 : f32
    %21 = vector.broadcast %cst_8 : f32 to vector<56x64xf32>
    %22 = arith.maximumf %20, %21 : vector<56x64xf32>
    %23 = arith.addf %18, %22 : vector<56x64xf32>
    %24 = vector.extract_strided_slice %4 {offsets = [168, 0], sizes = [56, 64], strides = [1, 1]} : vector<896x64xf32> to vector<56x64xf32>
    %25 = arith.addf %24, %7 : vector<56x64xf32>
    %cst_9 = arith.constant 0.000000e+00 : f32
    %26 = vector.broadcast %cst_9 : f32 to vector<56x64xf32>
    %27 = arith.maximumf %25, %26 : vector<56x64xf32>
    %28 = arith.addf %23, %27 : vector<56x64xf32>
    %29 = vector.extract_strided_slice %4 {offsets = [224, 0], sizes = [56, 64], strides = [1, 1]} : vector<896x64xf32> to vector<56x64xf32>
    %30 = arith.addf %29, %7 : vector<56x64xf32>
    %cst_10 = arith.constant 0.000000e+00 : f32
    %31 = vector.broadcast %cst_10 : f32 to vector<56x64xf32>
    %32 = arith.maximumf %30, %31 : vector<56x64xf32>
    %33 = arith.addf %28, %32 : vector<56x64xf32>
    %34 = vector.extract_strided_slice %4 {offsets = [280, 0], sizes = [56, 64], strides = [1, 1]} : vector<896x64xf32> to vector<56x64xf32>
    %35 = arith.addf %34, %7 : vector<56x64xf32>
    %cst_11 = arith.constant 0.000000e+00 : f32
    %36 = vector.broadcast %cst_11 : f32 to vector<56x64xf32>
    %37 = arith.maximumf %35, %36 : vector<56x64xf32>
    %38 = arith.addf %33, %37 : vector<56x64xf32>
    %39 = vector.extract_strided_slice %4 {offsets = [336, 0], sizes = [56, 64], strides = [1, 1]} : vector<896x64xf32> to vector<56x64xf32>
    %40 = arith.addf %39, %7 : vector<56x64xf32>
    %cst_12 = arith.constant 0.000000e+00 : f32
    %41 = vector.broadcast %cst_12 : f32 to vector<56x64xf32>
    %42 = arith.maximumf %40, %41 : vector<56x64xf32>
    %43 = arith.addf %38, %42 : vector<56x64xf32>
    %44 = vector.extract_strided_slice %4 {offsets = [392, 0], sizes = [56, 64], strides = [1, 1]} : vector<896x64xf32> to vector<56x64xf32>
    %45 = arith.addf %44, %7 : vector<56x64xf32>
    %cst_13 = arith.constant 0.000000e+00 : f32
    %46 = vector.broadcast %cst_13 : f32 to vector<56x64xf32>
    %47 = arith.maximumf %45, %46 : vector<56x64xf32>
    %48 = arith.addf %43, %47 : vector<56x64xf32>
    %49 = vector.extract_strided_slice %4 {offsets = [448, 0], sizes = [56, 64], strides = [1, 1]} : vector<896x64xf32> to vector<56x64xf32>
    %50 = arith.addf %49, %7 : vector<56x64xf32>
    %cst_14 = arith.constant 0.000000e+00 : f32
    %51 = vector.broadcast %cst_14 : f32 to vector<56x64xf32>
    %52 = arith.maximumf %50, %51 : vector<56x64xf32>
    %53 = arith.addf %48, %52 : vector<56x64xf32>
    %54 = vector.extract_strided_slice %4 {offsets = [504, 0], sizes = [56, 64], strides = [1, 1]} : vector<896x64xf32> to vector<56x64xf32>
    %55 = arith.addf %54, %7 : vector<56x64xf32>
    %cst_15 = arith.constant 0.000000e+00 : f32
    %56 = vector.broadcast %cst_15 : f32 to vector<56x64xf32>
    %57 = arith.maximumf %55, %56 : vector<56x64xf32>
    %58 = arith.addf %53, %57 : vector<56x64xf32>
    %59 = vector.extract_strided_slice %4 {offsets = [560, 0], sizes = [56, 64], strides = [1, 1]} : vector<896x64xf32> to vector<56x64xf32>
    %60 = arith.addf %59, %7 : vector<56x64xf32>
    %cst_16 = arith.constant 0.000000e+00 : f32
    %61 = vector.broadcast %cst_16 : f32 to vector<56x64xf32>
    %62 = arith.maximumf %60, %61 : vector<56x64xf32>
    %63 = arith.addf %58, %62 : vector<56x64xf32>
    %64 = vector.extract_strided_slice %4 {offsets = [616, 0], sizes = [56, 64], strides = [1, 1]} : vector<896x64xf32> to vector<56x64xf32>
    %65 = arith.addf %64, %7 : vector<56x64xf32>
    %cst_17 = arith.constant 0.000000e+00 : f32
    %66 = vector.broadcast %cst_17 : f32 to vector<56x64xf32>
    %67 = arith.maximumf %65, %66 : vector<56x64xf32>
    %68 = arith.addf %63, %67 : vector<56x64xf32>
    %69 = vector.extract_strided_slice %4 {offsets = [672, 0], sizes = [56, 64], strides = [1, 1]} : vector<896x64xf32> to vector<56x64xf32>
    %70 = arith.addf %69, %7 : vector<56x64xf32>
    %cst_18 = arith.constant 0.000000e+00 : f32
    %71 = vector.broadcast %cst_18 : f32 to vector<56x64xf32>
    %72 = arith.maximumf %70, %71 : vector<56x64xf32>
    %73 = arith.addf %68, %72 : vector<56x64xf32>
    %74 = vector.extract_strided_slice %4 {offsets = [728, 0], sizes = [56, 64], strides = [1, 1]} : vector<896x64xf32> to vector<56x64xf32>
    %75 = arith.addf %74, %7 : vector<56x64xf32>
    %cst_19 = arith.constant 0.000000e+00 : f32
    %76 = vector.broadcast %cst_19 : f32 to vector<56x64xf32>
    %77 = arith.maximumf %75, %76 : vector<56x64xf32>
    %78 = arith.addf %73, %77 : vector<56x64xf32>
    %79 = vector.extract_strided_slice %4 {offsets = [784, 0], sizes = [56, 64], strides = [1, 1]} : vector<896x64xf32> to vector<56x64xf32>
    %80 = arith.addf %79, %7 : vector<56x64xf32>
    %cst_20 = arith.constant 0.000000e+00 : f32
    %81 = vector.broadcast %cst_20 : f32 to vector<56x64xf32>
    %82 = arith.maximumf %80, %81 : vector<56x64xf32>
    %83 = arith.addf %78, %82 : vector<56x64xf32>
    %84 = vector.extract_strided_slice %4 {offsets = [840, 0], sizes = [56, 64], strides = [1, 1]} : vector<896x64xf32> to vector<56x64xf32>
    %85 = arith.addf %84, %7 : vector<56x64xf32>
    %cst_21 = arith.constant 0.000000e+00 : f32
    %86 = vector.broadcast %cst_21 : f32 to vector<56x64xf32>
    %87 = arith.maximumf %85, %86 : vector<56x64xf32>
    %88 = arith.addf %83, %87 : vector<56x64xf32>
    %cst_22 = arith.constant 6.250000e-02 : f32
    %89 = vector.broadcast %cst_22 : f32 to vector<56x64xf32>
    %90 = arith.mulf %88, %89 : vector<56x64xf32>
    %c0_23 = arith.constant 0 : index
    %c0_24 = arith.constant 0 : index
    %91 = vector.load %arg12[%c0_23, %c0_24] : memref<56x64xf32, #tpu.memory_space<vmem>>, vector<56x64xf32>
    tpu.vector_store %arg12[%c0_23, %c0_24], %90 {strides = array<i32>} : memref<56x64xf32, #tpu.memory_space<vmem>>, vector<56x64xf32>,
    %c0_25 = arith.constant 0 : index
    %c0_26 = arith.constant 0 : index
    %92 = vector.load %arg12[%c0_25, %c0_26] : memref<56x64xf32, #tpu.memory_space<vmem>>, vector<2x64xf32>
    %c0_27 = arith.constant 0 : index
    %c0_28 = arith.constant 0 : index
    %93 = vector.load %arg13[%c0_27, %c0_28] : memref<2x1600xf32, #tpu.memory_space<vmem>>, vector<2x64xf32>
    tpu.vector_store %arg13[%c0_27, %c0_28], %92 {strides = array<i32>} : memref<2x1600xf32, #tpu.memory_space<vmem>>, vector<2x64xf32>,
    %c2 = arith.constant 2 : index
    %c0_29 = arith.constant 0 : index
    %94 = vector.load %arg12[%c2, %c0_29] : memref<56x64xf32, #tpu.memory_space<vmem>>, vector<2x64xf32>
    %c0_30 = arith.constant 0 : index
    %c64 = arith.constant 64 : index
    %95 = vector.load %arg13[%c0_30, %c64] : memref<2x1600xf32, #tpu.memory_space<vmem>>, vector<2x64xf32>
    tpu.vector_store %arg13[%c0_30, %c64], %94 {strides = array<i32>} : memref<2x1600xf32, #tpu.memory_space<vmem>>, vector<2x64xf32>,
    %c4 = arith.constant 4 : index
    %c0_31 = arith.constant 0 : index
    %96 = vector.load %arg12[%c4, %c0_31] : memref<56x64xf32, #tpu.memory_space<vmem>>, vector<2x64xf32>
    %c0_32 = arith.constant 0 : index
    %c128 = arith.constant 128 : index
    %97 = vector.load %arg13[%c0_32, %c128] : memref<2x1600xf32, #tpu.memory_space<vmem>>, vector<2x64xf32>
    tpu.vector_store %arg13[%c0_32, %c128], %96 {strides = array<i32>} : memref<2x1600xf32, #tpu.memory_space<vmem>>, vector<2x64xf32>,
    %c6 = arith.constant 6 : index
    %c0_33 = arith.constant 0 : index
    %98 = vector.load %arg12[%c6, %c0_33] : memref<56x64xf32, #tpu.memory_space<vmem>>, vector<2x64xf32>
    %c0_34 = arith.constant 0 : index
    %c192 = arith.constant 192 : index
    %99 = vector.load %arg13[%c0_34, %c192] : memref<2x1600xf32, #tpu.memory_space<vmem>>, vector<2x64xf32>
    tpu.vector_store %arg13[%c0_34, %c192], %98 {strides = array<i32>} : memref<2x1600xf32, #tpu.memory_space<vmem>>, vector<2x64xf32>,
    %c8 = arith.constant 8 : index
    %c0_35 = arith.constant 0 : index
    %100 = vector.load %arg12[%c8, %c0_35] : memref<56x64xf32, #tpu.memory_space<vmem>>, vector<2x64xf32>
    %c0_36 = arith.constant 0 : index
    %c256 = arith.constant 256 : index
    %101 = vector.load %arg13[%c0_36, %c256] : memref<2x1600xf32, #tpu.memory_space<vmem>>, vector<2x64xf32>
    tpu.vector_store %arg13[%c0_36, %c256], %100 {strides = array<i32>} : memref<2x1600xf32, #tpu.memory_space<vmem>>, vector<2x64xf32>,
    %c10 = arith.constant 10 : index
    %c0_37 = arith.constant 0 : index
    %102 = vector.load %arg12[%c10, %c0_37] : memref<56x64xf32, #tpu.memory_space<vmem>>, vector<2x64xf32>
    %c0_38 = arith.constant 0 : index
    %c320 = arith.constant 320 : index
    %103 = vector.load %arg13[%c0_38, %c320] : memref<2x1600xf32, #tpu.memory_space<vmem>>, vector<2x64xf32>
    tpu.vector_store %arg13[%c0_38, %c320], %102 {strides = array<i32>} : memref<2x1600xf32, #tpu.memory_space<vmem>>, vector<2x64xf32>,
    %c12 = arith.constant 12 : index
    %c0_39 = arith.constant 0 : index
    %104 = vector.load %arg12[%c12, %c0_39] : memref<56x64xf32, #tpu.memory_space<vmem>>, vector<2x64xf32>
    %c0_40 = arith.constant 0 : index
    %c384 = arith.constant 384 : index
    %105 = vector.load %arg13[%c0_40, %c384] : memref<2x1600xf32, #tpu.memory_space<vmem>>, vector<2x64xf32>
    tpu.vector_store %arg13[%c0_40, %c384], %104 {strides = array<i32>} : memref<2x1600xf32, #tpu.memory_space<vmem>>, vector<2x64xf32>,
    %c14 = arith.constant 14 : index
    %c0_41 = arith.constant 0 : index
    %106 = vector.load %arg12[%c14, %c0_41] : memref<56x64xf32, #tpu.memory_space<vmem>>, vector<2x64xf32>
    %c0_42 = arith.constant 0 : index
    %c448 = arith.constant 448 : index
    %107 = vector.load %arg13[%c0_42, %c448] : memref<2x1600xf32, #tpu.memory_space<vmem>>, vector<2x64xf32>
    tpu.vector_store %arg13[%c0_42, %c448], %106 {strides = array<i32>} : memref<2x1600xf32, #tpu.memory_space<vmem>>, vector<2x64xf32>,
    %c16 = arith.constant 16 : index
    %c0_43 = arith.constant 0 : index
    %108 = vector.load %arg12[%c16, %c0_43] : memref<56x64xf32, #tpu.memory_space<vmem>>, vector<2x64xf32>
    %c0_44 = arith.constant 0 : index
    %c512 = arith.constant 512 : index
    %109 = vector.load %arg13[%c0_44, %c512] : memref<2x1600xf32, #tpu.memory_space<vmem>>, vector<2x64xf32>
    tpu.vector_store %arg13[%c0_44, %c512], %108 {strides = array<i32>} : memref<2x1600xf32, #tpu.memory_space<vmem>>, vector<2x64xf32>,
    %c18 = arith.constant 18 : index
    %c0_45 = arith.constant 0 : index
    %110 = vector.load %arg12[%c18, %c0_45] : memref<56x64xf32, #tpu.memory_space<vmem>>, vector<2x64xf32>
    %c0_46 = arith.constant 0 : index
    %c576 = arith.constant 576 : index
    %111 = vector.load %arg13[%c0_46, %c576] : memref<2x1600xf32, #tpu.memory_space<vmem>>, vector<2x64xf32>
    tpu.vector_store %arg13[%c0_46, %c576], %110 {strides = array<i32>} : memref<2x1600xf32, #tpu.memory_space<vmem>>, vector<2x64xf32>,
    %c20 = arith.constant 20 : index
    %c0_47 = arith.constant 0 : index
    %112 = vector.load %arg12[%c20, %c0_47] : memref<56x64xf32, #tpu.memory_space<vmem>>, vector<2x64xf32>
    %c0_48 = arith.constant 0 : index
    %c640 = arith.constant 640 : index
    %113 = vector.load %arg13[%c0_48, %c640] : memref<2x1600xf32, #tpu.memory_space<vmem>>, vector<2x64xf32>
    tpu.vector_store %arg13[%c0_48, %c640], %112 {strides = array<i32>} : memref<2x1600xf32, #tpu.memory_space<vmem>>, vector<2x64xf32>,
    %c22 = arith.constant 22 : index
    %c0_49 = arith.constant 0 : index
    %114 = vector.load %arg12[%c22, %c0_49] : memref<56x64xf32, #tpu.memory_space<vmem>>, vector<2x64xf32>
    %c0_50 = arith.constant 0 : index
    %c704 = arith.constant 704 : index
    %115 = vector.load %arg13[%c0_50, %c704] : memref<2x1600xf32, #tpu.memory_space<vmem>>, vector<2x64xf32>
    tpu.vector_store %arg13[%c0_50, %c704], %114 {strides = array<i32>} : memref<2x1600xf32, #tpu.memory_space<vmem>>, vector<2x64xf32>,
    %c24 = arith.constant 24 : index
    %c0_51 = arith.constant 0 : index
    %116 = vector.load %arg12[%c24, %c0_51] : memref<56x64xf32, #tpu.memory_space<vmem>>, vector<2x64xf32>
    %c0_52 = arith.constant 0 : index
    %c768 = arith.constant 768 : index
    %117 = vector.load %arg13[%c0_52, %c768] : memref<2x1600xf32, #tpu.memory_space<vmem>>, vector<2x64xf32>
    tpu.vector_store %arg13[%c0_52, %c768], %116 {strides = array<i32>} : memref<2x1600xf32, #tpu.memory_space<vmem>>, vector<2x64xf32>,
    %c26 = arith.constant 26 : index
    %c0_53 = arith.constant 0 : index
    %118 = vector.load %arg12[%c26, %c0_53] : memref<56x64xf32, #tpu.memory_space<vmem>>, vector<2x64xf32>
    %c0_54 = arith.constant 0 : index
    %c832 = arith.constant 832 : index
    %119 = vector.load %arg13[%c0_54, %c832] : memref<2x1600xf32, #tpu.memory_space<vmem>>, vector<2x64xf32>
    tpu.vector_store %arg13[%c0_54, %c832], %118 {strides = array<i32>} : memref<2x1600xf32, #tpu.memory_space<vmem>>, vector<2x64xf32>,
    %c28 = arith.constant 28 : index
    %c0_55 = arith.constant 0 : index
    %120 = vector.load %arg12[%c28, %c0_55] : memref<56x64xf32, #tpu.memory_space<vmem>>, vector<2x64xf32>
    %c0_56 = arith.constant 0 : index
    %c896 = arith.constant 896 : index
    %121 = vector.load %arg13[%c0_56, %c896] : memref<2x1600xf32, #tpu.memory_space<vmem>>, vector<2x64xf32>
    tpu.vector_store %arg13[%c0_56, %c896], %120 {strides = array<i32>} : memref<2x1600xf32, #tpu.memory_space<vmem>>, vector<2x64xf32>,
    %c30 = arith.constant 30 : index
    %c0_57 = arith.constant 0 : index
    %122 = vector.load %arg12[%c30, %c0_57] : memref<56x64xf32, #tpu.memory_space<vmem>>, vector<2x64xf32>
    %c0_58 = arith.constant 0 : index
    %c960 = arith.constant 960 : index
    %123 = vector.load %arg13[%c0_58, %c960] : memref<2x1600xf32, #tpu.memory_space<vmem>>, vector<2x64xf32>
    tpu.vector_store %arg13[%c0_58, %c960], %122 {strides = array<i32>} : memref<2x1600xf32, #tpu.memory_space<vmem>>, vector<2x64xf32>,
    %c32 = arith.constant 32 : index
    %c0_59 = arith.constant 0 : index
    %124 = vector.load %arg12[%c32, %c0_59] : memref<56x64xf32, #tpu.memory_space<vmem>>, vector<2x64xf32>
    %c0_60 = arith.constant 0 : index
    %c1024 = arith.constant 1024 : index
    %125 = vector.load %arg13[%c0_60, %c1024] : memref<2x1600xf32, #tpu.memory_space<vmem>>, vector<2x64xf32>
    tpu.vector_store %arg13[%c0_60, %c1024], %124 {strides = array<i32>} : memref<2x1600xf32, #tpu.memory_space<vmem>>, vector<2x64xf32>,
    %c34 = arith.constant 34 : index
    %c0_61 = arith.constant 0 : index
    %126 = vector.load %arg12[%c34, %c0_61] : memref<56x64xf32, #tpu.memory_space<vmem>>, vector<2x64xf32>
    %c0_62 = arith.constant 0 : index
    %c1088 = arith.constant 1088 : index
    %127 = vector.load %arg13[%c0_62, %c1088] : memref<2x1600xf32, #tpu.memory_space<vmem>>, vector<2x64xf32>
    tpu.vector_store %arg13[%c0_62, %c1088], %126 {strides = array<i32>} : memref<2x1600xf32, #tpu.memory_space<vmem>>, vector<2x64xf32>,
    %c36 = arith.constant 36 : index
    %c0_63 = arith.constant 0 : index
    %128 = vector.load %arg12[%c36, %c0_63] : memref<56x64xf32, #tpu.memory_space<vmem>>, vector<2x64xf32>
    %c0_64 = arith.constant 0 : index
    %c1152 = arith.constant 1152 : index
    %129 = vector.load %arg13[%c0_64, %c1152] : memref<2x1600xf32, #tpu.memory_space<vmem>>, vector<2x64xf32>
    tpu.vector_store %arg13[%c0_64, %c1152], %128 {strides = array<i32>} : memref<2x1600xf32, #tpu.memory_space<vmem>>, vector<2x64xf32>,
    %c38 = arith.constant 38 : index
    %c0_65 = arith.constant 0 : index
    %130 = vector.load %arg12[%c38, %c0_65] : memref<56x64xf32, #tpu.memory_space<vmem>>, vector<2x64xf32>
    %c0_66 = arith.constant 0 : index
    %c1216 = arith.constant 1216 : index
    %131 = vector.load %arg13[%c0_66, %c1216] : memref<2x1600xf32, #tpu.memory_space<vmem>>, vector<2x64xf32>
    tpu.vector_store %arg13[%c0_66, %c1216], %130 {strides = array<i32>} : memref<2x1600xf32, #tpu.memory_space<vmem>>, vector<2x64xf32>,
    %c40 = arith.constant 40 : index
    %c0_67 = arith.constant 0 : index
    %132 = vector.load %arg12[%c40, %c0_67] : memref<56x64xf32, #tpu.memory_space<vmem>>, vector<2x64xf32>
    %c0_68 = arith.constant 0 : index
    %c1280 = arith.constant 1280 : index
    %133 = vector.load %arg13[%c0_68, %c1280] : memref<2x1600xf32, #tpu.memory_space<vmem>>, vector<2x64xf32>
    tpu.vector_store %arg13[%c0_68, %c1280], %132 {strides = array<i32>} : memref<2x1600xf32, #tpu.memory_space<vmem>>, vector<2x64xf32>,
    %c42 = arith.constant 42 : index
    %c0_69 = arith.constant 0 : index
    %134 = vector.load %arg12[%c42, %c0_69] : memref<56x64xf32, #tpu.memory_space<vmem>>, vector<2x64xf32>
    %c0_70 = arith.constant 0 : index
    %c1344 = arith.constant 1344 : index
    %135 = vector.load %arg13[%c0_70, %c1344] : memref<2x1600xf32, #tpu.memory_space<vmem>>, vector<2x64xf32>
    tpu.vector_store %arg13[%c0_70, %c1344], %134 {strides = array<i32>} : memref<2x1600xf32, #tpu.memory_space<vmem>>, vector<2x64xf32>,
    %c44 = arith.constant 44 : index
    %c0_71 = arith.constant 0 : index
    %136 = vector.load %arg12[%c44, %c0_71] : memref<56x64xf32, #tpu.memory_space<vmem>>, vector<2x64xf32>
    %c0_72 = arith.constant 0 : index
    %c1408 = arith.constant 1408 : index
    %137 = vector.load %arg13[%c0_72, %c1408] : memref<2x1600xf32, #tpu.memory_space<vmem>>, vector<2x64xf32>
    tpu.vector_store %arg13[%c0_72, %c1408], %136 {strides = array<i32>} : memref<2x1600xf32, #tpu.memory_space<vmem>>, vector<2x64xf32>,
    %c46 = arith.constant 46 : index
    %c0_73 = arith.constant 0 : index
    %138 = vector.load %arg12[%c46, %c0_73] : memref<56x64xf32, #tpu.memory_space<vmem>>, vector<2x64xf32>
    %c0_74 = arith.constant 0 : index
    %c1472 = arith.constant 1472 : index
    %139 = vector.load %arg13[%c0_74, %c1472] : memref<2x1600xf32, #tpu.memory_space<vmem>>, vector<2x64xf32>
    tpu.vector_store %arg13[%c0_74, %c1472], %138 {strides = array<i32>} : memref<2x1600xf32, #tpu.memory_space<vmem>>, vector<2x64xf32>,
    %c48 = arith.constant 48 : index
    %c0_75 = arith.constant 0 : index
    %140 = vector.load %arg12[%c48, %c0_75] : memref<56x64xf32, #tpu.memory_space<vmem>>, vector<2x64xf32>
    %c0_76 = arith.constant 0 : index
    %c1536 = arith.constant 1536 : index
    %141 = vector.load %arg13[%c0_76, %c1536] : memref<2x1600xf32, #tpu.memory_space<vmem>>, vector<2x64xf32>
    tpu.vector_store %arg13[%c0_76, %c1536], %140 {strides = array<i32>} : memref<2x1600xf32, #tpu.memory_space<vmem>>, vector<2x64xf32>,
    %c0_i32_77 = arith.constant 0 : i32
    %142 = tpu.memref_slice %arg14[%c0_i32_77] : memref<1x!tpu.dma_semaphore, #tpu.memory_space<semaphore_mem>> -> memref<1x!tpu.dma_semaphore, #tpu.memory_space<semaphore_mem>>
    %143 = tpu.memref_squeeze %142 : memref<1x!tpu.dma_semaphore, #tpu.memory_space<semaphore_mem>> -> memref<!tpu.dma_semaphore, #tpu.memory_space<semaphore_mem>>
    tpu.wait_dma2 semaphore(%143 : memref<!tpu.dma_semaphore, #tpu.memory_space<semaphore_mem>>) src(%arg4 : memref<1600x512xbf16, #tpu.memory_space<any>>) dst(%arg11 : memref<1600x512xbf16, #tpu.memory_space<vmem>>)
    %c0_78 = arith.constant 0 : index
    %c0_79 = arith.constant 0 : index
    %144 = vector.load %arg13[%c0_78, %c0_79] : memref<2x1600xf32, #tpu.memory_space<vmem>>, vector<2x1600xf32>
    %145 = arith.truncf %144 : vector<2x1600xf32> to vector<2x1600xbf16>
    %c0_80 = arith.constant 0 : index
    %c0_81 = arith.constant 0 : index
    %146 = vector.load %arg11[%c0_80, %c0_81] : memref<1600x512xbf16, #tpu.memory_space<vmem>>, vector<1600x512xbf16>
    %cst_82 = arith.constant dense<0.000000e+00> : vector<2x512xf32>
    %147 = tpu.matmul %145, %146, %cst_82 {dimension_numbers = #tpu.dot_dimension_numbers<[1], [0], [0], [1], [0, 0, 1, 1], [], []>} : vector<2x1600xbf16>, vector<1600x512xbf16>, vector<2x512xf32> -> vector<2x512xf32>
    %c0_83 = arith.constant 0 : index
    %c0_84 = arith.constant 0 : index
    %148 = vector.load %arg5[%c0_83, %c0_84] : memref<1x512xf32, #tpu.memory_space<vmem>>, vector<1x512xf32>
    %149 = vector.broadcast %148 : vector<1x512xf32> to vector<2x512xf32>
    %150 = arith.addf %147, %149 : vector<2x512xf32>
    %cst_85 = arith.constant 0.000000e+00 : f32
    %151 = vector.broadcast %cst_85 : f32 to vector<2x512xf32>
    %152 = arith.maximumf %150, %151 : vector<2x512xf32>
    %153 = arith.truncf %152 : vector<2x512xf32> to vector<2x512xbf16>
    %c0_86 = arith.constant 0 : index
    %c0_87 = arith.constant 0 : index
    %154 = vector.load %arg6[%c0_86, %c0_87] : memref<512x256xbf16, #tpu.memory_space<vmem>>, vector<512x256xbf16>
    %cst_88 = arith.constant dense<0.000000e+00> : vector<2x256xf32>
    %155 = tpu.matmul %153, %154, %cst_88 {dimension_numbers = #tpu.dot_dimension_numbers<[1], [0], [0], [1], [0, 0, 1, 1], [], []>} : vector<2x512xbf16>, vector<512x256xbf16>, vector<2x256xf32> -> vector<2x256xf32>
    %c0_89 = arith.constant 0 : index
    %c0_90 = arith.constant 0 : index
    %156 = vector.load %arg7[%c0_89, %c0_90] : memref<1x256xf32, #tpu.memory_space<vmem>>, vector<1x256xf32>
    %157 = vector.broadcast %156 : vector<1x256xf32> to vector<2x256xf32>
    %158 = arith.addf %155, %157 : vector<2x256xf32>
    %cst_91 = arith.constant 0.000000e+00 : f32
    %159 = vector.broadcast %cst_91 : f32 to vector<2x256xf32>
    %160 = arith.maximumf %158, %159 : vector<2x256xf32>
    %161 = arith.truncf %160 : vector<2x256xf32> to vector<2x256xbf16>
    %c0_92 = arith.constant 0 : index
    %c0_93 = arith.constant 0 : index
    %162 = vector.load %arg8[%c0_92, %c0_93] : memref<256x2xbf16, #tpu.memory_space<vmem>>, vector<256x2xbf16>
    %cst_94 = arith.constant dense<0.000000e+00> : vector<2x2xf32>
    %163 = tpu.matmul %161, %162, %cst_94 {dimension_numbers = #tpu.dot_dimension_numbers<[1], [0], [0], [1], [0, 0, 1, 1], [], []>} : vector<2x256xbf16>, vector<256x2xbf16>, vector<2x2xf32> -> vector<2x2xf32>
    %c0_95 = arith.constant 0 : index
    %c0_96 = arith.constant 0 : index
    %164 = vector.load %arg9[%c0_95, %c0_96] : memref<1x2xf32, #tpu.memory_space<vmem>>, vector<1x2xf32>
    %165 = vector.broadcast %164 : vector<1x2xf32> to vector<2x2xf32>
    %166 = arith.addf %163, %165 : vector<2x2xf32>
    %c0_97 = arith.constant 0 : index
    %c0_98 = arith.constant 0 : index
    %167 = vector.load %arg10[%c0_97, %c0_98] : memref<2x2xf32, #tpu.memory_space<vmem>>, vector<2x2xf32>
    tpu.vector_store %arg10[%c0_97, %c0_98], %166 {strides = array<i32>} : memref<2x2xf32, #tpu.memory_space<vmem>>, vector<2x2xf32>,
    return
  }
  func.func @transform_0(%arg0: i32) -> (i32, i32) {
    %c0_i32 = arith.constant 0 : i32
    %c0_i32_0 = arith.constant 0 : i32
    %c0_i32_1 = arith.constant 0 : i32
    return %c0_i32, %c0_i32_0 : i32, i32
  }
  func.func @transform_1(%arg0: i32) -> (i32, i32) {
    %c0_i32 = arith.constant 0 : i32
    %c0_i32_0 = arith.constant 0 : i32
    %c0_i32_1 = arith.constant 0 : i32
    return %c0_i32, %c0_i32_0 : i32, i32
  }
  func.func @transform_2(%arg0: i32) -> (i32, i32) {
    %c0_i32 = arith.constant 0 : i32
    %c0_i32_0 = arith.constant 0 : i32
    %c0_i32_1 = arith.constant 0 : i32
    return %c0_i32, %c0_i32_0 : i32, i32
  }
  func.func @transform_4(%arg0: i32) -> (i32, i32) {
    %c0_i32 = arith.constant 0 : i32
    %c0_i32_0 = arith.constant 0 : i32
    %c0_i32_1 = arith.constant 0 : i32
    return %c0_i32, %c0_i32_0 : i32, i32
  }
  func.func @transform_5(%arg0: i32) -> (i32, i32) {
    %c0_i32 = arith.constant 0 : i32
    %c0_i32_0 = arith.constant 0 : i32
    %c0_i32_1 = arith.constant 0 : i32
    return %c0_i32, %c0_i32_0 : i32, i32
  }
  func.func @transform_6(%arg0: i32) -> (i32, i32) {
    %c0_i32 = arith.constant 0 : i32
    %c0_i32_0 = arith.constant 0 : i32
    %c0_i32_1 = arith.constant 0 : i32
    return %c0_i32, %c0_i32_0 : i32, i32
  }
  func.func @transform_7(%arg0: i32) -> (i32, i32) {
    %c0_i32 = arith.constant 0 : i32
    %c0_i32_0 = arith.constant 0 : i32
    %c0_i32_1 = arith.constant 0 : i32
    return %c0_i32, %c0_i32_0 : i32, i32
  }
  func.func @transform_8(%arg0: i32) -> (i32, i32) {
    %c0_i32 = arith.constant 0 : i32
    %c0_i32_0 = arith.constant 0 : i32
    %c0_i32_1 = arith.constant 0 : i32
    return %c0_i32, %c0_i32_0 : i32, i32
  }
  func.func @transform_9(%arg0: i32) -> (i32, i32) {
    %c0_i32 = arith.constant 0 : i32
    %c0_i32_0 = arith.constant 0 : i32
    %c0_i32_1 = arith.constant 0 : i32
    return %c0_i32, %c0_i32_0 : i32, i32
  }
}

</mosaic_0001>

<llo_original>
// kernel: cnn_forward.1
$region0: #{cnn_forward.1}
  #allocation0 [shape = 'u32[]', space=smem, size = 0x4, offset = 0x4, fixed_abs, tag = 'smem constant byte address 0x4 - core index']
  #allocation1 [shape = 'u32[72,128]{1,0:T(1,128)}', space=vmem, size = 0x9000, scoped, tag = 'internal scratch']
  #allocation2 [shape = 'bf16[1600,512]{1,0:T(8,128)(2,1)}', space=vmem, size = 0x190000, scoped, tag = 'scratch operand']
  #allocation3 [shape = 'f32[56,64]{1,0:T(8,128)}', space=vmem, size = 0x7000, scoped, tag = 'scratch operand']
  #allocation4 [shape = 'f32[2,1600]{1,0:T(2,128)}', space=vmem, size = 0x3400, scoped, tag = 'scratch operand']
  #allocation5 [shape = 's32[1]{0}', space=sflag, size = 0x4, scoped, tag = 'scratch operand']
  #allocation8 [shape = 's32[]', space=sflag, size = 0x4, offset = 0, fixed_abs, tag = 'sflag constant byte address 0x0 - dummy sync flag']
  %s0 = inlined_call_operand.vmem [shape: f32[896,32], index: 0, kind: input, shape index: {}]
  %s1 = inlined_call_operand.vmem [shape: f32[32,64], index: 1, kind: input, shape index: {}]
  %s2 = inlined_call_operand.vmem [shape: f32[1,64], index: 2, kind: input, shape index: {}]
  %s3 = inlined_call_operand.vmem [shape: bf16[1600,512], index: 3, kind: input, shape index: {}]
  %s4 = inlined_call_operand.vmem [shape: f32[1,512], index: 4, kind: input, shape index: {}]
  %s5 = inlined_call_operand.vmem [shape: bf16[512,256], index: 5, kind: input, shape index: {}]
  %s6 = inlined_call_operand.vmem [shape: f32[1,256], index: 6, kind: input, shape index: {}]
  %s7 = inlined_call_operand.vmem [shape: bf16[256,2], index: 7, kind: input, shape index: {}]
  %s8 = inlined_call_operand.vmem [shape: f32[1,2], index: 8, kind: input, shape index: {}]
  %s9 = inlined_call_operand.hbm [shape: f32[2,2], index: 9, kind: output, shape index: {}]
  %s10 = sld [smem:[#allocation0]]
  $region61: #{cnn_forward.1} parent=0
    _
  %s12 = ssub.s32 1, %s10
  %s13 = scalar_select 0, %s12, %s10
  $region1: #{cnn_forward.1} parent=0
    #allocation6 [shape = 'u8[1024]{0}', space=vmem, size = 0x400, scoped, tag = 'output window, operand 0, single buffered']
    #allocation7 [shape = 's32[1]{0}', space=sflag, size = 0x4, scoped, tag = 'scoped memory for cnn_forward.1']
    %14 = vsyncpa [#allocation7], 0
    // Predicated region
    $region2: #{cnn_forward.1} parent=1 // pred_check
      _
    $region3: #{cnn_forward.1} parent=1 // pred_check_branch
      %16 = sbr.rel (0) target = $region5
    $region4: #{cnn_forward.1} parent=1 // pred_region
      _
    $region5: #{cnn_forward.1} parent=1 // pred_fallthru
      _
    // Predicated region
    $region6: #{cnn_forward.1} parent=1 // pred_check
      _
    $region7: #{cnn_forward.1} parent=1 // pred_check_branch
      %18 = sbr.rel (0) target = $region9
    $region8: #{cnn_forward.1} parent=1 // pred_region
      _
    $region9: #{cnn_forward.1} parent=1 // pred_fallthru
      _
    // Predicated region
    $region10: #{cnn_forward.1} parent=1 // pred_check
      _
    $region11: #{cnn_forward.1} parent=1 // pred_check_branch
      %20 = sbr.rel (0) target = $region13
    $region12: #{cnn_forward.1} parent=1 // pred_region
      _
    $region13: #{cnn_forward.1} parent=1 // pred_fallthru
      _
    // Predicated region
    $region14: #{cnn_forward.1} parent=1 // pred_check
      _
    $region15: #{cnn_forward.1} parent=1 // pred_check_branch
      %22 = sbr.rel (0) target = $region17
    $region16: #{cnn_forward.1} parent=1 // pred_region
      _
    $region17: #{cnn_forward.1} parent=1 // pred_fallthru
      _
    // Predicated region
    $region18: #{cnn_forward.1} parent=1 // pred_check
      _
    $region19: #{cnn_forward.1} parent=1 // pred_check_branch
      %24 = sbr.rel (0) target = $region21
    $region20: #{cnn_forward.1} parent=1 // pred_region
      _
    $region21: #{cnn_forward.1} parent=1 // pred_fallthru
      _
    // Predicated region
    $region22: #{cnn_forward.1} parent=1 // pred_check
      _
    $region23: #{cnn_forward.1} parent=1 // pred_check_branch
      %26 = sbr.rel (0) target = $region25
    $region24: #{cnn_forward.1} parent=1 // pred_region
      _
    $region25: #{cnn_forward.1} parent=1 // pred_fallthru
      _
    // Predicated region
    $region26: #{cnn_forward.1} parent=1 // pred_check
      _
    $region27: #{cnn_forward.1} parent=1 // pred_check_branch
      %28 = sbr.rel (0) target = $region29
    $region28: #{cnn_forward.1} parent=1 // pred_region
      _
    $region29: #{cnn_forward.1} parent=1 // pred_fallthru
      _
    // Predicated region
    $region30: #{cnn_forward.1} parent=1 // pred_check
      _
    $region31: #{cnn_forward.1} parent=1 // pred_check_branch
      %30 = sbr.rel (0) target = $region33
    $region32: #{cnn_forward.1} parent=1 // pred_region
      _
    $region33: #{cnn_forward.1} parent=1 // pred_fallthru
      _
    // Predicated region
    $region34: #{cnn_forward.1} parent=1 // pred_check
      _
    $region35: #{cnn_forward.1} parent=1 // pred_check_branch
      %33 = sbr.rel (0) target = $region37
    $region36: #{cnn_forward.1} parent=1 // pred_region
      loop: start=0, step=1, limit=1
      $region38: #{cnn_forward.1} parent=36 // loop_pre_header
        _
      $region39: #{cnn_forward.1} parent=36 // loop_header
        %s35 = sphi 0, %s39
        %p36 = scmp.ge.s32.totalorder %s35, 1
        %s40 = sphi %s3, %s3
        %s41 = sphi [#allocation2], [#allocation2]
      $region40: #{cnn_forward.1} parent=36 // loop_header_branch
        %38 = sbr.rel (%p36) target = $region44
      $region41: #{cnn_forward.1} parent=36 // loop_body
        %v42 = vld [vmem:[%s40] sm:$0xff]
        %43 = vst [vmem:[%s41] sm:$0xff] %v42
        %v44 = vld [vmem:[%s40 + $0x8] sm:$0xff]
        %45 = vst [vmem:[%s41 + $0x8] sm:$0xff] %v44
        %v46 = vld [vmem:[%s40 + $0x10] sm:$0xff]
        %47 = vst [vmem:[%s41 + $0x10] sm:$0xff] %v46
        %v48 = vld [vmem:[%s40 + $0x18] sm:$0xff]
        %49 = vst [vmem:[%s41 + $0x18] sm:$0xff] %v48
        %v50 = vld [vmem:[%s40 + $0x20] sm:$0xff]
        %51 = vst [vmem:[%s41 + $0x20] sm:$0xff] %v50
        %v52 = vld [vmem:[%s40 + $0x28] sm:$0xff]
        %53 = vst [vmem:[%s41 + $0x28] sm:$0xff] %v52
        %v54 = vld [vmem:[%s40 + $0x30] sm:$0xff]
        %55 = vst [vmem:[%s41 + $0x30] sm:$0xff] %v54
        %v56 = vld [vmem:[%s40 + $0x38] sm:$0xff]
        %57 = vst [vmem:[%s41 + $0x38] sm:$0xff] %v56
        %v58 = vld [vmem:[%s40 + $0x40] sm:$0xff]
        %59 = vst [vmem:[%s41 + $0x40] sm:$0xff] %v58
        %v60 = vld [vmem:[%s40 + $0x48] sm:$0xff]
        %61 = vst [vmem:[%s41 + $0x48] sm:$0xff] %v60
        %v62 = vld [vmem:[%s40 + $0x50] sm:$0xff]
        %63 = vst [vmem:[%s41 + $0x50] sm:$0xff] %v62
        %v64 = vld [vmem:[%s40 + $0x58] sm:$0xff]
        %65 = vst [vmem:[%s41 + $0x58] sm:$0xff] %v64
        %v66 = vld [vmem:[%s40 + $0x60] sm:$0xff]
        %67 = vst [vmem:[%s41 + $0x60] sm:$0xff] %v66
        %v68 = vld [vmem:[%s40 + $0x68] sm:$0xff]
        %69 = vst [vmem:[%s41 + $0x68] sm:$0xff] %v68
        %v70 = vld [vmem:[%s40 + $0x70] sm:$0xff]
        %71 = vst [vmem:[%s41 + $0x70] sm:$0xff] %v70
        %v72 = vld [vmem:[%s40 + $0x78] sm:$0xff]
        %73 = vst [vmem:[%s41 + $0x78] sm:$0xff] %v72
        %v74 = vld [vmem:[%s40 + $0x80] sm:$0xff]
        %75 = vst [vmem:[%s41 + $0x80] sm:$0xff] %v74
        %v76 = vld [vmem:[%s40 + $0x88] sm:$0xff]
        %77 = vst [vmem:[%s41 + $0x88] sm:$0xff] %v76
        %v78 = vld [vmem:[%s40 + $0x90] sm:$0xff]
        %79 = vst [vmem:[%s41 + $0x90] sm:$0xff] %v78
        %v80 = vld [vmem:[%s40 + $0x98] sm:$0xff]
        %81 = vst [vmem:[%s41 + $0x98] sm:$0xff] %v80
        %v82 = vld [vmem:[%s40 + $0xa0] sm:$0xff]
        %83 = vst [vmem:[%s41 + $0xa0] sm:$0xff] %v82
        %v84 = vld [vmem:[%s40 + $0xa8] sm:$0xff]
        %85 = vst [vmem:[%s41 + $0xa8] sm:$0xff] %v84
        %v86 = vld [vmem:[%s40 + $0xb0] sm:$0xff]
        %87 = vst [vmem:[%s41 + $0xb0] sm:$0xff] %v86
        %v88 = vld [vmem:[%s40 + $0xb8] sm:$0xff]
        %89 = vst [vmem:[%s41 + $0xb8] sm:$0xff] %v88
        %v90 = vld [vmem:[%s40 + $0xc0] sm:$0xff]
        %91 = vst [vmem:[%s41 + $0xc0] sm:$0xff] %v90
        %v92 = vld [vmem:[%s40 + $0xc8] sm:$0xff]
        %93 = vst [vmem:[%s41 + $0xc8] sm:$0xff] %v92
        %v94 = vld [vmem:[%s40 + $0xd0] sm:$0xff]
        %95 = vst [vmem:[%s41 + $0xd0] sm:$0xff] %v94
        %v96 = vld [vmem:[%s40 + $0xd8] sm:$0xff]
        %97 = vst [vmem:[%s41 + $0xd8] sm:$0xff] %v96
        %v98 = vld [vmem:[%s40 + $0xe0] sm:$0xff]
        %99 = vst [vmem:[%s41 + $0xe0] sm:$0xff] %v98
        %v100 = vld [vmem:[%s40 + $0xe8] sm:$0xff]
        %101 = vst [vmem:[%s41 + $0xe8] sm:$0xff] %v100
        %v102 = vld [vmem:[%s40 + $0xf0] sm:$0xff]
        %103 = vst [vmem:[%s41 + $0xf0] sm:$0xff] %v102
        %v104 = vld [vmem:[%s40 + $0xf8] sm:$0xff]
        %105 = vst [vmem:[%s41 + $0xf8] sm:$0xff] %v104
        %v106 = vld [vmem:[%s40 + $0x100] sm:$0xff]
        %107 = vst [vmem:[%s41 + $0x100] sm:$0xff] %v106
        %v108 = vld [vmem:[%s40 + $0x108] sm:$0xff]
        %109 = vst [vmem:[%s41 + $0x108] sm:$0xff] %v108
        %v110 = vld [vmem:[%s40 + $0x110] sm:$0xff]
        %111 = vst [vmem:[%s41 + $0x110] sm:$0xff] %v110
        %v112 = vld [vmem:[%s40 + $0x118] sm:$0xff]
        %113 = vst [vmem:[%s41 + $0x118] sm:$0xff] %v112
        %v114 = vld [vmem:[%s40 + $0x120] sm:$0xff]
        %115 = vst [vmem:[%s41 + $0x120] sm:$0xff] %v114
        %v116 = vld [vmem:[%s40 + $0x128] sm:$0xff]
        %117 = vst [vmem:[%s41 + $0x128] sm:$0xff] %v116
        %v118 = vld [vmem:[%s40 + $0x130] sm:$0xff]
        %119 = vst [vmem:[%s41 + $0x130] sm:$0xff] %v118
        %v120 = vld [vmem:[%s40 + $0x138] sm:$0xff]
        %121 = vst [vmem:[%s41 + $0x138] sm:$0xff] %v120
        %v122 = vld [vmem:[%s40 + $0x140] sm:$0xff]
        %123 = vst [vmem:[%s41 + $0x140] sm:$0xff] %v122
        %v124 = vld [vmem:[%s40 + $0x148] sm:$0xff]
        %125 = vst [vmem:[%s41 + $0x148] sm:$0xff] %v124
        %v126 = vld [vmem:[%s40 + $0x150] sm:$0xff]
        %127 = vst [vmem:[%s41 + $0x150] sm:$0xff] %v126
        %v128 = vld [vmem:[%s40 + $0x158] sm:$0xff]
        %129 = vst [vmem:[%s41 + $0x158] sm:$0xff] %v128
        %v130 = vld [vmem:[%s40 + $0x160] sm:$0xff]
        %131 = vst [vmem:[%s41 + $0x160] sm:$0xff] %v130
        %v132 = vld [vmem:[%s40 + $0x168] sm:$0xff]
        %133 = vst [vmem:[%s41 + $0x168] sm:$0xff] %v132
        %v134 = vld [vmem:[%s40 + $0x170] sm:$0xff]
        %135 = vst [vmem:[%s41 + $0x170] sm:$0xff] %v134
        %v136 = vld [vmem:[%s40 + $0x178] sm:$0xff]
        %137 = vst [vmem:[%s41 + $0x178] sm:$0xff] %v136
        %v138 = vld [vmem:[%s40 + $0x180] sm:$0xff]
        %139 = vst [vmem:[%s41 + $0x180] sm:$0xff] %v138
        %v140 = vld [vmem:[%s40 + $0x188] sm:$0xff]
        %141 = vst [vmem:[%s41 + $0x188] sm:$0xff] %v140
        %v142 = vld [vmem:[%s40 + $0x190] sm:$0xff]
        %143 = vst [vmem:[%s41 + $0x190] sm:$0xff] %v142
        %v144 = vld [vmem:[%s40 + $0x198] sm:$0xff]
        %145 = vst [vmem:[%s41 + $0x198] sm:$0xff] %v144
        %v146 = vld [vmem:[%s40 + $0x1a0] sm:$0xff]
        %147 = vst [vmem:[%s41 + $0x1a0] sm:$0xff] %v146
        %v148 = vld [vmem:[%s40 + $0x1a8] sm:$0xff]
        %149 = vst [vmem:[%s41 + $0x1a8] sm:$0xff] %v148
        %v150 = vld [vmem:[%s40 + $0x1b0] sm:$0xff]
        %151 = vst [vmem:[%s41 + $0x1b0] sm:$0xff] %v150
        %v152 = vld [vmem:[%s40 + $0x1b8] sm:$0xff]
        %153 = vst [vmem:[%s41 + $0x1b8] sm:$0xff] %v152
        %v154 = vld [vmem:[%s40 + $0x1c0] sm:$0xff]
        %155 = vst [vmem:[%s41 + $0x1c0] sm:$0xff] %v154
        %v156 = vld [vmem:[%s40 + $0x1c8] sm:$0xff]
        %157 = vst [vmem:[%s41 + $0x1c8] sm:$0xff] %v156
        %v158 = vld [vmem:[%s40 + $0x1d0] sm:$0xff]
        %159 = vst [vmem:[%s41 + $0x1d0] sm:$0xff] %v158
        %v160 = vld [vmem:[%s40 + $0x1d8] sm:$0xff]
        %161 = vst [vmem:[%s41 + $0x1d8] sm:$0xff] %v160
        %v162 = vld [vmem:[%s40 + $0x1e0] sm:$0xff]
        %163 = vst [vmem:[%s41 + $0x1e0] sm:$0xff] %v162
        %v164 = vld [vmem:[%s40 + $0x1e8] sm:$0xff]
        %165 = vst [vmem:[%s41 + $0x1e8] sm:$0xff] %v164
        %v166 = vld [vmem:[%s40 + $0x1f0] sm:$0xff]
        %167 = vst [vmem:[%s41 + $0x1f0] sm:$0xff] %v166
        %v168 = vld [vmem:[%s40 + $0x1f8] sm:$0xff]
        %169 = vst [vmem:[%s41 + $0x1f8] sm:$0xff] %v168
        %v170 = vld [vmem:[%s40 + $0x200] sm:$0xff]
        %171 = vst [vmem:[%s41 + $0x200] sm:$0xff] %v170
        %v172 = vld [vmem:[%s40 + $0x208] sm:$0xff]
        %173 = vst [vmem:[%s41 + $0x208] sm:$0xff] %v172
        %v174 = vld [vmem:[%s40 + $0x210] sm:$0xff]
        %175 = vst [vmem:[%s41 + $0x210] sm:$0xff] %v174
        %v176 = vld [vmem:[%s40 + $0x218] sm:$0xff]
        %177 = vst [vmem:[%s41 + $0x218] sm:$0xff] %v176
        %v178 = vld [vmem:[%s40 + $0x220] sm:$0xff]
        %179 = vst [vmem:[%s41 + $0x220] sm:$0xff] %v178
        %v180 = vld [vmem:[%s40 + $0x228] sm:$0xff]
        %181 = vst [vmem:[%s41 + $0x228] sm:$0xff] %v180
        %v182 = vld [vmem:[%s40 + $0x230] sm:$0xff]
        %183 = vst [vmem:[%s41 + $0x230] sm:$0xff] %v182
        %v184 = vld [vmem:[%s40 + $0x238] sm:$0xff]
        %185 = vst [vmem:[%s41 + $0x238] sm:$0xff] %v184
        %v186 = vld [vmem:[%s40 + $0x240] sm:$0xff]
        %187 = vst [vmem:[%s41 + $0x240] sm:$0xff] %v186
        %v188 = vld [vmem:[%s40 + $0x248] sm:$0xff]
        %189 = vst [vmem:[%s41 + $0x248] sm:$0xff] %v188
        %v190 = vld [vmem:[%s40 + $0x250] sm:$0xff]
        %191 = vst [vmem:[%s41 + $0x250] sm:$0xff] %v190
        %v192 = vld [vmem:[%s40 + $0x258] sm:$0xff]
        %193 = vst [vmem:[%s41 + $0x258] sm:$0xff] %v192
        %v194 = vld [vmem:[%s40 + $0x260] sm:$0xff]
        %195 = vst [vmem:[%s41 + $0x260] sm:$0xff] %v194
        %v196 = vld [vmem:[%s40 + $0x268] sm:$0xff]
        %197 = vst [vmem:[%s41 + $0x268] sm:$0xff] %v196
        %v198 = vld [vmem:[%s40 + $0x270] sm:$0xff]
        %199 = vst [vmem:[%s41 + $0x270] sm:$0xff] %v198
        %v200 = vld [vmem:[%s40 + $0x278] sm:$0xff]
        %201 = vst [vmem:[%s41 + $0x278] sm:$0xff] %v200
        %v202 = vld [vmem:[%s40 + $0x280] sm:$0xff]
        %203 = vst [vmem:[%s41 + $0x280] sm:$0xff] %v202
        %v204 = vld [vmem:[%s40 + $0x288] sm:$0xff]
        %205 = vst [vmem:[%s41 + $0x288] sm:$0xff] %v204
        %v206 = vld [vmem:[%s40 + $0x290] sm:$0xff]
        %207 = vst [vmem:[%s41 + $0x290] sm:$0xff] %v206
        %v208 = vld [vmem:[%s40 + $0x298] sm:$0xff]
        %209 = vst [vmem:[%s41 + $0x298] sm:$0xff] %v208
        %v210 = vld [vmem:[%s40 + $0x2a0] sm:$0xff]
        %211 = vst [vmem:[%s41 + $0x2a0] sm:$0xff] %v210
        %v212 = vld [vmem:[%s40 + $0x2a8] sm:$0xff]
        %213 = vst [vmem:[%s41 + $0x2a8] sm:$0xff] %v212
        %v214 = vld [vmem:[%s40 + $0x2b0] sm:$0xff]
        %215 = vst [vmem:[%s41 + $0x2b0] sm:$0xff] %v214
        %v216 = vld [vmem:[%s40 + $0x2b8] sm:$0xff]
        %217 = vst [vmem:[%s41 + $0x2b8] sm:$0xff] %v216
        %v218 = vld [vmem:[%s40 + $0x2c0] sm:$0xff]
        %219 = vst [vmem:[%s41 + $0x2c0] sm:$0xff] %v218
        %v220 = vld [vmem:[%s40 + $0x2c8] sm:$0xff]
        %221 = vst [vmem:[%s41 + $0x2c8] sm:$0xff] %v220
        %v222 = vld [vmem:[%s40 + $0x2d0] sm:$0xff]
        %223 = vst [vmem:[%s41 + $0x2d0] sm:$0xff] %v222
        %v224 = vld [vmem:[%s40 + $0x2d8] sm:$0xff]
        %225 = vst [vmem:[%s41 + $0x2d8] sm:$0xff] %v224
        %v226 = vld [vmem:[%s40 + $0x2e0] sm:$0xff]
        %227 = vst [vmem:[%s41 + $0x2e0] sm:$0xff] %v226
        %v228 = vld [vmem:[%s40 + $0x2e8] sm:$0xff]
        %229 = vst [vmem:[%s41 + $0x2e8] sm:$0xff] %v228
        %v230 = vld [vmem:[%s40 + $0x2f0] sm:$0xff]
        %231 = vst [vmem:[%s41 + $0x2f0] sm:$0xff] %v230
        %v232 = vld [vmem:[%s40 + $0x2f8] sm:$0xff]
        %233 = vst [vmem:[%s41 + $0x2f8] sm:$0xff] %v232
        %v234 = vld [vmem:[%s40 + $0x300] sm:$0xff]
        %235 = vst [vmem:[%s41 + $0x300] sm:$0xff] %v234
        %v236 = vld [vmem:[%s40 + $0x308] sm:$0xff]
        %237 = vst [vmem:[%s41 + $0x308] sm:$0xff] %v236
        %v238 = vld [vmem:[%s40 + $0x310] sm:$0xff]
        %239 = vst [vmem:[%s41 + $0x310] sm:$0xff] %v238
        %v240 = vld [vmem:[%s40 + $0x318] sm:$0xff]
        %241 = vst [vmem:[%s41 + $0x318] sm:$0xff] %v240
        %v242 = vld [vmem:[%s40 + $0x320] sm:$0xff]
        %243 = vst [vmem:[%s41 + $0x320] sm:$0xff] %v242
        %v244 = vld [vmem:[%s40 + $0x328] sm:$0xff]
        %245 = vst [vmem:[%s41 + $0x328] sm:$0xff] %v244
        %v246 = vld [vmem:[%s40 + $0x330] sm:$0xff]
        %247 = vst [vmem:[%s41 + $0x330] sm:$0xff] %v246
        %v248 = vld [vmem:[%s40 + $0x338] sm:$0xff]
        %249 = vst [vmem:[%s41 + $0x338] sm:$0xff] %v248
        %v250 = vld [vmem:[%s40 + $0x340] sm:$0xff]
        %251 = vst [vmem:[%s41 + $0x340] sm:$0xff] %v250
        %v252 = vld [vmem:[%s40 + $0x348] sm:$0xff]
        %253 = vst [vmem:[%s41 + $0x348] sm:$0xff] %v252
        %v254 = vld [vmem:[%s40 + $0x350] sm:$0xff]
        %255 = vst [vmem:[%s41 + $0x350] sm:$0xff] %v254
        %v256 = vld [vmem:[%s40 + $0x358] sm:$0xff]
        %257 = vst [vmem:[%s41 + $0x358] sm:$0xff] %v256
        %v258 = vld [vmem:[%s40 + $0x360] sm:$0xff]
        %259 = vst [vmem:[%s41 + $0x360] sm:$0xff] %v258
        %v260 = vld [vmem:[%s40 + $0x368] sm:$0xff]
        %261 = vst [vmem:[%s41 + $0x368] sm:$0xff] %v260
        %v262 = vld [vmem:[%s40 + $0x370] sm:$0xff]
        %263 = vst [vmem:[%s41 + $0x370] sm:$0xff] %v262
        %v264 = vld [vmem:[%s40 + $0x378] sm:$0xff]
        %265 = vst [vmem:[%s41 + $0x378] sm:$0xff] %v264
        %v266 = vld [vmem:[%s40 + $0x380] sm:$0xff]
        %267 = vst [vmem:[%s41 + $0x380] sm:$0xff] %v266
        %v268 = vld [vmem:[%s40 + $0x388] sm:$0xff]
        %269 = vst [vmem:[%s41 + $0x388] sm:$0xff] %v268
        %v270 = vld [vmem:[%s40 + $0x390] sm:$0xff]
        %271 = vst [vmem:[%s41 + $0x390] sm:$0xff] %v270
        %v272 = vld [vmem:[%s40 + $0x398] sm:$0xff]
        %273 = vst [vmem:[%s41 + $0x398] sm:$0xff] %v272
        %v274 = vld [vmem:[%s40 + $0x3a0] sm:$0xff]
        %275 = vst [vmem:[%s41 + $0x3a0] sm:$0xff] %v274
        %v276 = vld [vmem:[%s40 + $0x3a8] sm:$0xff]
        %277 = vst [vmem:[%s41 + $0x3a8] sm:$0xff] %v276
        %v278 = vld [vmem:[%s40 + $0x3b0] sm:$0xff]
        %279 = vst [vmem:[%s41 + $0x3b0] sm:$0xff] %v278
        %v280 = vld [vmem:[%s40 + $0x3b8] sm:$0xff]
        %281 = vst [vmem:[%s41 + $0x3b8] sm:$0xff] %v280
        %v282 = vld [vmem:[%s40 + $0x3c0] sm:$0xff]
        %283 = vst [vmem:[%s41 + $0x3c0] sm:$0xff] %v282
        %v284 = vld [vmem:[%s40 + $0x3c8] sm:$0xff]
        %285 = vst [vmem:[%s41 + $0x3c8] sm:$0xff] %v284
        %v286 = vld [vmem:[%s40 + $0x3d0] sm:$0xff]
        %287 = vst [vmem:[%s41 + $0x3d0] sm:$0xff] %v286
        %v288 = vld [vmem:[%s40 + $0x3d8] sm:$0xff]
        %289 = vst [vmem:[%s41 + $0x3d8] sm:$0xff] %v288
        %v290 = vld [vmem:[%s40 + $0x3e0] sm:$0xff]
        %291 = vst [vmem:[%s41 + $0x3e0] sm:$0xff] %v290
        %v292 = vld [vmem:[%s40 + $0x3e8] sm:$0xff]
        %293 = vst [vmem:[%s41 + $0x3e8] sm:$0xff] %v292
        %v294 = vld [vmem:[%s40 + $0x3f0] sm:$0xff]
        %295 = vst [vmem:[%s41 + $0x3f0] sm:$0xff] %v294
        %v296 = vld [vmem:[%s40 + $0x3f8] sm:$0xff]
        %297 = vst [vmem:[%s41 + $0x3f8] sm:$0xff] %v296
        %v298 = vld [vmem:[%s40 + $0x400] sm:$0xff]
        %299 = vst [vmem:[%s41 + $0x400] sm:$0xff] %v298
        %v300 = vld [vmem:[%s40 + $0x408] sm:$0xff]
        %301 = vst [vmem:[%s41 + $0x408] sm:$0xff] %v300
        %v302 = vld [vmem:[%s40 + $0x410] sm:$0xff]
        %303 = vst [vmem:[%s41 + $0x410] sm:$0xff] %v302
        %v304 = vld [vmem:[%s40 + $0x418] sm:$0xff]
        %305 = vst [vmem:[%s41 + $0x418] sm:$0xff] %v304
        %v306 = vld [vmem:[%s40 + $0x420] sm:$0xff]
        %307 = vst [vmem:[%s41 + $0x420] sm:$0xff] %v306
        %v308 = vld [vmem:[%s40 + $0x428] sm:$0xff]
        %309 = vst [vmem:[%s41 + $0x428] sm:$0xff] %v308
        %v310 = vld [vmem:[%s40 + $0x430] sm:$0xff]
        %311 = vst [vmem:[%s41 + $0x430] sm:$0xff] %v310
        %v312 = vld [vmem:[%s40 + $0x438] sm:$0xff]
        %313 = vst [vmem:[%s41 + $0x438] sm:$0xff] %v312
        %v314 = vld [vmem:[%s40 + $0x440] sm:$0xff]
        %315 = vst [vmem:[%s41 + $0x440] sm:$0xff] %v314
        %v316 = vld [vmem:[%s40 + $0x448] sm:$0xff]
        %317 = vst [vmem:[%s41 + $0x448] sm:$0xff] %v316
        %v318 = vld [vmem:[%s40 + $0x450] sm:$0xff]
        %319 = vst [vmem:[%s41 + $0x450] sm:$0xff] %v318
        %v320 = vld [vmem:[%s40 + $0x458] sm:$0xff]
        %321 = vst [vmem:[%s41 + $0x458] sm:$0xff] %v320
        %v322 = vld [vmem:[%s40 + $0x460] sm:$0xff]
        %323 = vst [vmem:[%s41 + $0x460] sm:$0xff] %v322
        %v324 = vld [vmem:[%s40 + $0x468] sm:$0xff]
        %325 = vst [vmem:[%s41 + $0x468] sm:$0xff] %v324
        %v326 = vld [vmem:[%s40 + $0x470] sm:$0xff]
        %327 = vst [vmem:[%s41 + $0x470] sm:$0xff] %v326
        %v328 = vld [vmem:[%s40 + $0x478] sm:$0xff]
        %329 = vst [vmem:[%s41 + $0x478] sm:$0xff] %v328
        %v330 = vld [vmem:[%s40 + $0x480] sm:$0xff]
        %331 = vst [vmem:[%s41 + $0x480] sm:$0xff] %v330
        %v332 = vld [vmem:[%s40 + $0x488] sm:$0xff]
        %333 = vst [vmem:[%s41 + $0x488] sm:$0xff] %v332
        %v334 = vld [vmem:[%s40 + $0x490] sm:$0xff]
        %335 = vst [vmem:[%s41 + $0x490] sm:$0xff] %v334
        %v336 = vld [vmem:[%s40 + $0x498] sm:$0xff]
        %337 = vst [vmem:[%s41 + $0x498] sm:$0xff] %v336
        %v338 = vld [vmem:[%s40 + $0x4a0] sm:$0xff]
        %339 = vst [vmem:[%s41 + $0x4a0] sm:$0xff] %v338
        %v340 = vld [vmem:[%s40 + $0x4a8] sm:$0xff]
        %341 = vst [vmem:[%s41 + $0x4a8] sm:$0xff] %v340
        %v342 = vld [vmem:[%s40 + $0x4b0] sm:$0xff]
        %343 = vst [vmem:[%s41 + $0x4b0] sm:$0xff] %v342
        %v344 = vld [vmem:[%s40 + $0x4b8] sm:$0xff]
        %345 = vst [vmem:[%s41 + $0x4b8] sm:$0xff] %v344
        %v346 = vld [vmem:[%s40 + $0x4c0] sm:$0xff]
        %347 = vst [vmem:[%s41 + $0x4c0] sm:$0xff] %v346
        %v348 = vld [vmem:[%s40 + $0x4c8] sm:$0xff]
        %349 = vst [vmem:[%s41 + $0x4c8] sm:$0xff] %v348
        %v350 = vld [vmem:[%s40 + $0x4d0] sm:$0xff]
        %351 = vst [vmem:[%s41 + $0x4d0] sm:$0xff] %v350
        %v352 = vld [vmem:[%s40 + $0x4d8] sm:$0xff]
        %353 = vst [vmem:[%s41 + $0x4d8] sm:$0xff] %v352
        %v354 = vld [vmem:[%s40 + $0x4e0] sm:$0xff]
        %355 = vst [vmem:[%s41 + $0x4e0] sm:$0xff] %v354
        %v356 = vld [vmem:[%s40 + $0x4e8] sm:$0xff]
        %357 = vst [vmem:[%s41 + $0x4e8] sm:$0xff] %v356
        %v358 = vld [vmem:[%s40 + $0x4f0] sm:$0xff]
        %359 = vst [vmem:[%s41 + $0x4f0] sm:$0xff] %v358
        %v360 = vld [vmem:[%s40 + $0x4f8] sm:$0xff]
        %361 = vst [vmem:[%s41 + $0x4f8] sm:$0xff] %v360
        %v362 = vld [vmem:[%s40 + $0x500] sm:$0xff]
        %363 = vst [vmem:[%s41 + $0x500] sm:$0xff] %v362
        %v364 = vld [vmem:[%s40 + $0x508] sm:$0xff]
        %365 = vst [vmem:[%s41 + $0x508] sm:$0xff] %v364
        %v366 = vld [vmem:[%s40 + $0x510] sm:$0xff]
        %367 = vst [vmem:[%s41 + $0x510] sm:$0xff] %v366
        %v368 = vld [vmem:[%s40 + $0x518] sm:$0xff]
        %369 = vst [vmem:[%s41 + $0x518] sm:$0xff] %v368
        %v370 = vld [vmem:[%s40 + $0x520] sm:$0xff]
        %371 = vst [vmem:[%s41 + $0x520] sm:$0xff] %v370
        %v372 = vld [vmem:[%s40 + $0x528] sm:$0xff]
        %373 = vst [vmem:[%s41 + $0x528] sm:$0xff] %v372
        %v374 = vld [vmem:[%s40 + $0x530] sm:$0xff]
        %375 = vst [vmem:[%s41 + $0x530] sm:$0xff] %v374
        %v376 = vld [vmem:[%s40 + $0x538] sm:$0xff]
        %377 = vst [vmem:[%s41 + $0x538] sm:$0xff] %v376
        %v378 = vld [vmem:[%s40 + $0x540] sm:$0xff]
        %379 = vst [vmem:[%s41 + $0x540] sm:$0xff] %v378
        %v380 = vld [vmem:[%s40 + $0x548] sm:$0xff]
        %381 = vst [vmem:[%s41 + $0x548] sm:$0xff] %v380
        %v382 = vld [vmem:[%s40 + $0x550] sm:$0xff]
        %383 = vst [vmem:[%s41 + $0x550] sm:$0xff] %v382
        %v384 = vld [vmem:[%s40 + $0x558] sm:$0xff]
        %385 = vst [vmem:[%s41 + $0x558] sm:$0xff] %v384
        %v386 = vld [vmem:[%s40 + $0x560] sm:$0xff]
        %387 = vst [vmem:[%s41 + $0x560] sm:$0xff] %v386
        %v388 = vld [vmem:[%s40 + $0x568] sm:$0xff]
        %389 = vst [vmem:[%s41 + $0x568] sm:$0xff] %v388
        %v390 = vld [vmem:[%s40 + $0x570] sm:$0xff]
        %391 = vst [vmem:[%s41 + $0x570] sm:$0xff] %v390
        %v392 = vld [vmem:[%s40 + $0x578] sm:$0xff]
        %393 = vst [vmem:[%s41 + $0x578] sm:$0xff] %v392
        %v394 = vld [vmem:[%s40 + $0x580] sm:$0xff]
        %395 = vst [vmem:[%s41 + $0x580] sm:$0xff] %v394
        %v396 = vld [vmem:[%s40 + $0x588] sm:$0xff]
        %397 = vst [vmem:[%s41 + $0x588] sm:$0xff] %v396
        %v398 = vld [vmem:[%s40 + $0x590] sm:$0xff]
        %399 = vst [vmem:[%s41 + $0x590] sm:$0xff] %v398
        %v400 = vld [vmem:[%s40 + $0x598] sm:$0xff]
        %401 = vst [vmem:[%s41 + $0x598] sm:$0xff] %v400
        %v402 = vld [vmem:[%s40 + $0x5a0] sm:$0xff]
        %403 = vst [vmem:[%s41 + $0x5a0] sm:$0xff] %v402
        %v404 = vld [vmem:[%s40 + $0x5a8] sm:$0xff]
        %405 = vst [vmem:[%s41 + $0x5a8] sm:$0xff] %v404
        %v406 = vld [vmem:[%s40 + $0x5b0] sm:$0xff]
        %407 = vst [vmem:[%s41 + $0x5b0] sm:$0xff] %v406
        %v408 = vld [vmem:[%s40 + $0x5b8] sm:$0xff]
        %409 = vst [vmem:[%s41 + $0x5b8] sm:$0xff] %v408
        %v410 = vld [vmem:[%s40 + $0x5c0] sm:$0xff]
        %411 = vst [vmem:[%s41 + $0x5c0] sm:$0xff] %v410
        %v412 = vld [vmem:[%s40 + $0x5c8] sm:$0xff]
        %413 = vst [vmem:[%s41 + $0x5c8] sm:$0xff] %v412
        %v414 = vld [vmem:[%s40 + $0x5d0] sm:$0xff]
        %415 = vst [vmem:[%s41 + $0x5d0] sm:$0xff] %v414
        %v416 = vld [vmem:[%s40 + $0x5d8] sm:$0xff]
        %417 = vst [vmem:[%s41 + $0x5d8] sm:$0xff] %v416
        %v418 = vld [vmem:[%s40 + $0x5e0] sm:$0xff]
        %419 = vst [vmem:[%s41 + $0x5e0] sm:$0xff] %v418
        %v420 = vld [vmem:[%s40 + $0x5e8] sm:$0xff]
        %421 = vst [vmem:[%s41 + $0x5e8] sm:$0xff] %v420
        %v422 = vld [vmem:[%s40 + $0x5f0] sm:$0xff]
        %423 = vst [vmem:[%s41 + $0x5f0] sm:$0xff] %v422
        %v424 = vld [vmem:[%s40 + $0x5f8] sm:$0xff]
        %425 = vst [vmem:[%s41 + $0x5f8] sm:$0xff] %v424
        %v426 = vld [vmem:[%s40 + $0x600] sm:$0xff]
        %427 = vst [vmem:[%s41 + $0x600] sm:$0xff] %v426
        %v428 = vld [vmem:[%s40 + $0x608] sm:$0xff]
        %429 = vst [vmem:[%s41 + $0x608] sm:$0xff] %v428
        %v430 = vld [vmem:[%s40 + $0x610] sm:$0xff]
        %431 = vst [vmem:[%s41 + $0x610] sm:$0xff] %v430
        %v432 = vld [vmem:[%s40 + $0x618] sm:$0xff]
        %433 = vst [vmem:[%s41 + $0x618] sm:$0xff] %v432
        %v434 = vld [vmem:[%s40 + $0x620] sm:$0xff]
        %435 = vst [vmem:[%s41 + $0x620] sm:$0xff] %v434
        %v436 = vld [vmem:[%s40 + $0x628] sm:$0xff]
        %437 = vst [vmem:[%s41 + $0x628] sm:$0xff] %v436
        %v438 = vld [vmem:[%s40 + $0x630] sm:$0xff]
        %439 = vst [vmem:[%s41 + $0x630] sm:$0xff] %v438
        %v440 = vld [vmem:[%s40 + $0x638] sm:$0xff]
        %441 = vst [vmem:[%s41 + $0x638] sm:$0xff] %v440
        %v442 = vld [vmem:[%s40 + $0x640] sm:$0xff]
        %443 = vst [vmem:[%s41 + $0x640] sm:$0xff] %v442
        %v444 = vld [vmem:[%s40 + $0x648] sm:$0xff]
        %445 = vst [vmem:[%s41 + $0x648] sm:$0xff] %v444
        %v446 = vld [vmem:[%s40 + $0x650] sm:$0xff]
        %447 = vst [vmem:[%s41 + $0x650] sm:$0xff] %v446
        %v448 = vld [vmem:[%s40 + $0x658] sm:$0xff]
        %449 = vst [vmem:[%s41 + $0x658] sm:$0xff] %v448
        %v450 = vld [vmem:[%s40 + $0x660] sm:$0xff]
        %451 = vst [vmem:[%s41 + $0x660] sm:$0xff] %v450
        %v452 = vld [vmem:[%s40 + $0x668] sm:$0xff]
        %453 = vst [vmem:[%s41 + $0x668] sm:$0xff] %v452
        %v454 = vld [vmem:[%s40 + $0x670] sm:$0xff]
        %455 = vst [vmem:[%s41 + $0x670] sm:$0xff] %v454
        %v456 = vld [vmem:[%s40 + $0x678] sm:$0xff]
        %457 = vst [vmem:[%s41 + $0x678] sm:$0xff] %v456
        %v458 = vld [vmem:[%s40 + $0x680] sm:$0xff]
        %459 = vst [vmem:[%s41 + $0x680] sm:$0xff] %v458
        %v460 = vld [vmem:[%s40 + $0x688] sm:$0xff]
        %461 = vst [vmem:[%s41 + $0x688] sm:$0xff] %v460
        %v462 = vld [vmem:[%s40 + $0x690] sm:$0xff]
        %463 = vst [vmem:[%s41 + $0x690] sm:$0xff] %v462
        %v464 = vld [vmem:[%s40 + $0x698] sm:$0xff]
        %465 = vst [vmem:[%s41 + $0x698] sm:$0xff] %v464
        %v466 = vld [vmem:[%s40 + $0x6a0] sm:$0xff]
        %467 = vst [vmem:[%s41 + $0x6a0] sm:$0xff] %v466
        %v468 = vld [vmem:[%s40 + $0x6a8] sm:$0xff]
        %469 = vst [vmem:[%s41 + $0x6a8] sm:$0xff] %v468
        %v470 = vld [vmem:[%s40 + $0x6b0] sm:$0xff]
        %471 = vst [vmem:[%s41 + $0x6b0] sm:$0xff] %v470
        %v472 = vld [vmem:[%s40 + $0x6b8] sm:$0xff]
        %473 = vst [vmem:[%s41 + $0x6b8] sm:$0xff] %v472
        %v474 = vld [vmem:[%s40 + $0x6c0] sm:$0xff]
        %475 = vst [vmem:[%s41 + $0x6c0] sm:$0xff] %v474
        %v476 = vld [vmem:[%s40 + $0x6c8] sm:$0xff]
        %477 = vst [vmem:[%s41 + $0x6c8] sm:$0xff] %v476
        %v478 = vld [vmem:[%s40 + $0x6d0] sm:$0xff]
        %479 = vst [vmem:[%s41 + $0x6d0] sm:$0xff] %v478
        %v480 = vld [vmem:[%s40 + $0x6d8] sm:$0xff]
        %481 = vst [vmem:[%s41 + $0x6d8] sm:$0xff] %v480
        %v482 = vld [vmem:[%s40 + $0x6e0] sm:$0xff]
        %483 = vst [vmem:[%s41 + $0x6e0] sm:$0xff] %v482
        %v484 = vld [vmem:[%s40 + $0x6e8] sm:$0xff]
        %485 = vst [vmem:[%s41 + $0x6e8] sm:$0xff] %v484
        %v486 = vld [vmem:[%s40 + $0x6f0] sm:$0xff]
        %487 = vst [vmem:[%s41 + $0x6f0] sm:$0xff] %v486
        %v488 = vld [vmem:[%s40 + $0x6f8] sm:$0xff]
        %489 = vst [vmem:[%s41 + $0x6f8] sm:$0xff] %v488
        %v490 = vld [vmem:[%s40 + $0x700] sm:$0xff]
        %491 = vst [vmem:[%s41 + $0x700] sm:$0xff] %v490
        %v492 = vld [vmem:[%s40 + $0x708] sm:$0xff]
        %493 = vst [vmem:[%s41 + $0x708] sm:$0xff] %v492
        %v494 = vld [vmem:[%s40 + $0x710] sm:$0xff]
        %495 = vst [vmem:[%s41 + $0x710] sm:$0xff] %v494
        %v496 = vld [vmem:[%s40 + $0x718] sm:$0xff]
        %497 = vst [vmem:[%s41 + $0x718] sm:$0xff] %v496
        %v498 = vld [vmem:[%s40 + $0x720] sm:$0xff]
        %499 = vst [vmem:[%s41 + $0x720] sm:$0xff] %v498
        %v500 = vld [vmem:[%s40 + $0x728] sm:$0xff]
        %501 = vst [vmem:[%s41 + $0x728] sm:$0xff] %v500
        %v502 = vld [vmem:[%s40 + $0x730] sm:$0xff]
        %503 = vst [vmem:[%s41 + $0x730] sm:$0xff] %v502
        %v504 = vld [vmem:[%s40 + $0x738] sm:$0xff]
        %505 = vst [vmem:[%s41 + $0x738] sm:$0xff] %v504
        %v506 = vld [vmem:[%s40 + $0x740] sm:$0xff]
        %507 = vst [vmem:[%s41 + $0x740] sm:$0xff] %v506
        %v508 = vld [vmem:[%s40 + $0x748] sm:$0xff]
        %509 = vst [vmem:[%s41 + $0x748] sm:$0xff] %v508
        %v510 = vld [vmem:[%s40 + $0x750] sm:$0xff]
        %511 = vst [vmem:[%s41 + $0x750] sm:$0xff] %v510
        %v512 = vld [vmem:[%s40 + $0x758] sm:$0xff]
        %513 = vst [vmem:[%s41 + $0x758] sm:$0xff] %v512
        %v514 = vld [vmem:[%s40 + $0x760] sm:$0xff]
        %515 = vst [vmem:[%s41 + $0x760] sm:$0xff] %v514
        %v516 = vld [vmem:[%s40 + $0x768] sm:$0xff]
        %517 = vst [vmem:[%s41 + $0x768] sm:$0xff] %v516
        %v518 = vld [vmem:[%s40 + $0x770] sm:$0xff]
        %519 = vst [vmem:[%s41 + $0x770] sm:$0xff] %v518
        %v520 = vld [vmem:[%s40 + $0x778] sm:$0xff]
        %521 = vst [vmem:[%s41 + $0x778] sm:$0xff] %v520
        %v522 = vld [vmem:[%s40 + $0x780] sm:$0xff]
        %523 = vst [vmem:[%s41 + $0x780] sm:$0xff] %v522
        %v524 = vld [vmem:[%s40 + $0x788] sm:$0xff]
        %525 = vst [vmem:[%s41 + $0x788] sm:$0xff] %v524
        %v526 = vld [vmem:[%s40 + $0x790] sm:$0xff]
        %527 = vst [vmem:[%s41 + $0x790] sm:$0xff] %v526
        %v528 = vld [vmem:[%s40 + $0x798] sm:$0xff]
        %529 = vst [vmem:[%s41 + $0x798] sm:$0xff] %v528
        %v530 = vld [vmem:[%s40 + $0x7a0] sm:$0xff]
        %531 = vst [vmem:[%s41 + $0x7a0] sm:$0xff] %v530
        %v532 = vld [vmem:[%s40 + $0x7a8] sm:$0xff]
        %533 = vst [vmem:[%s41 + $0x7a8] sm:$0xff] %v532
        %v534 = vld [vmem:[%s40 + $0x7b0] sm:$0xff]
        %535 = vst [vmem:[%s41 + $0x7b0] sm:$0xff] %v534
        %v536 = vld [vmem:[%s40 + $0x7b8] sm:$0xff]
        %537 = vst [vmem:[%s41 + $0x7b8] sm:$0xff] %v536
        %v538 = vld [vmem:[%s40 + $0x7c0] sm:$0xff]
        %539 = vst [vmem:[%s41 + $0x7c0] sm:$0xff] %v538
        %v540 = vld [vmem:[%s40 + $0x7c8] sm:$0xff]
        %541 = vst [vmem:[%s41 + $0x7c8] sm:$0xff] %v540
        %v542 = vld [vmem:[%s40 + $0x7d0] sm:$0xff]
        %543 = vst [vmem:[%s41 + $0x7d0] sm:$0xff] %v542
        %v544 = vld [vmem:[%s40 + $0x7d8] sm:$0xff]
        %545 = vst [vmem:[%s41 + $0x7d8] sm:$0xff] %v544
        %v546 = vld [vmem:[%s40 + $0x7e0] sm:$0xff]
        %547 = vst [vmem:[%s41 + $0x7e0] sm:$0xff] %v546
        %v548 = vld [vmem:[%s40 + $0x7e8] sm:$0xff]
        %549 = vst [vmem:[%s41 + $0x7e8] sm:$0xff] %v548
        %v550 = vld [vmem:[%s40 + $0x7f0] sm:$0xff]
        %551 = vst [vmem:[%s41 + $0x7f0] sm:$0xff] %v550
        %v552 = vld [vmem:[%s40 + $0x7f8] sm:$0xff]
        %553 = vst [vmem:[%s41 + $0x7f8] sm:$0xff] %v552
        %v554 = vld [vmem:[%s40 + $0x800] sm:$0xff]
        %555 = vst [vmem:[%s41 + $0x800] sm:$0xff] %v554
        %v556 = vld [vmem:[%s40 + $0x808] sm:$0xff]
        %557 = vst [vmem:[%s41 + $0x808] sm:$0xff] %v556
        %v558 = vld [vmem:[%s40 + $0x810] sm:$0xff]
        %559 = vst [vmem:[%s41 + $0x810] sm:$0xff] %v558
        %v560 = vld [vmem:[%s40 + $0x818] sm:$0xff]
        %561 = vst [vmem:[%s41 + $0x818] sm:$0xff] %v560
        %v562 = vld [vmem:[%s40 + $0x820] sm:$0xff]
        %563 = vst [vmem:[%s41 + $0x820] sm:$0xff] %v562
        %v564 = vld [vmem:[%s40 + $0x828] sm:$0xff]
        %565 = vst [vmem:[%s41 + $0x828] sm:$0xff] %v564
        %v566 = vld [vmem:[%s40 + $0x830] sm:$0xff]
        %567 = vst [vmem:[%s41 + $0x830] sm:$0xff] %v566
        %v568 = vld [vmem:[%s40 + $0x838] sm:$0xff]
        %569 = vst [vmem:[%s41 + $0x838] sm:$0xff] %v568
        %v570 = vld [vmem:[%s40 + $0x840] sm:$0xff]
        %571 = vst [vmem:[%s41 + $0x840] sm:$0xff] %v570
        %v572 = vld [vmem:[%s40 + $0x848] sm:$0xff]
        %573 = vst [vmem:[%s41 + $0x848] sm:$0xff] %v572
        %v574 = vld [vmem:[%s40 + $0x850] sm:$0xff]
        %575 = vst [vmem:[%s41 + $0x850] sm:$0xff] %v574
        %v576 = vld [vmem:[%s40 + $0x858] sm:$0xff]
        %577 = vst [vmem:[%s41 + $0x858] sm:$0xff] %v576
        %v578 = vld [vmem:[%s40 + $0x860] sm:$0xff]
        %579 = vst [vmem:[%s41 + $0x860] sm:$0xff] %v578
        %v580 = vld [vmem:[%s40 + $0x868] sm:$0xff]
        %581 = vst [vmem:[%s41 + $0x868] sm:$0xff] %v580
        %v582 = vld [vmem:[%s40 + $0x870] sm:$0xff]
        %583 = vst [vmem:[%s41 + $0x870] sm:$0xff] %v582
        %v584 = vld [vmem:[%s40 + $0x878] sm:$0xff]
        %585 = vst [vmem:[%s41 + $0x878] sm:$0xff] %v584
        %v586 = vld [vmem:[%s40 + $0x880] sm:$0xff]
        %587 = vst [vmem:[%s41 + $0x880] sm:$0xff] %v586
        %v588 = vld [vmem:[%s40 + $0x888] sm:$0xff]
        %589 = vst [vmem:[%s41 + $0x888] sm:$0xff] %v588
        %v590 = vld [vmem:[%s40 + $0x890] sm:$0xff]
        %591 = vst [vmem:[%s41 + $0x890] sm:$0xff] %v590
        %v592 = vld [vmem:[%s40 + $0x898] sm:$0xff]
        %593 = vst [vmem:[%s41 + $0x898] sm:$0xff] %v592
        %v594 = vld [vmem:[%s40 + $0x8a0] sm:$0xff]
        %595 = vst [vmem:[%s41 + $0x8a0] sm:$0xff] %v594
        %v596 = vld [vmem:[%s40 + $0x8a8] sm:$0xff]
        %597 = vst [vmem:[%s41 + $0x8a8] sm:$0xff] %v596
        %v598 = vld [vmem:[%s40 + $0x8b0] sm:$0xff]
        %599 = vst [vmem:[%s41 + $0x8b0] sm:$0xff] %v598
        %v600 = vld [vmem:[%s40 + $0x8b8] sm:$0xff]
        %601 = vst [vmem:[%s41 + $0x8b8] sm:$0xff] %v600
        %v602 = vld [vmem:[%s40 + $0x8c0] sm:$0xff]
        %603 = vst [vmem:[%s41 + $0x8c0] sm:$0xff] %v602
        %v604 = vld [vmem:[%s40 + $0x8c8] sm:$0xff]
        %605 = vst [vmem:[%s41 + $0x8c8] sm:$0xff] %v604
        %v606 = vld [vmem:[%s40 + $0x8d0] sm:$0xff]
        %607 = vst [vmem:[%s41 + $0x8d0] sm:$0xff] %v606
        %v608 = vld [vmem:[%s40 + $0x8d8] sm:$0xff]
        %609 = vst [vmem:[%s41 + $0x8d8] sm:$0xff] %v608
        %v610 = vld [vmem:[%s40 + $0x8e0] sm:$0xff]
        %611 = vst [vmem:[%s41 + $0x8e0] sm:$0xff] %v610
        %v612 = vld [vmem:[%s40 + $0x8e8] sm:$0xff]
        %613 = vst [vmem:[%s41 + $0x8e8] sm:$0xff] %v612
        %v614 = vld [vmem:[%s40 + $0x8f0] sm:$0xff]
        %615 = vst [vmem:[%s41 + $0x8f0] sm:$0xff] %v614
        %v616 = vld [vmem:[%s40 + $0x8f8] sm:$0xff]
        %617 = vst [vmem:[%s41 + $0x8f8] sm:$0xff] %v616
        %v618 = vld [vmem:[%s40 + $0x900] sm:$0xff]
        %619 = vst [vmem:[%s41 + $0x900] sm:$0xff] %v618
        %v620 = vld [vmem:[%s40 + $0x908] sm:$0xff]
        %621 = vst [vmem:[%s41 + $0x908] sm:$0xff] %v620
        %v622 = vld [vmem:[%s40 + $0x910] sm:$0xff]
        %623 = vst [vmem:[%s41 + $0x910] sm:$0xff] %v622
        %v624 = vld [vmem:[%s40 + $0x918] sm:$0xff]
        %625 = vst [vmem:[%s41 + $0x918] sm:$0xff] %v624
        %v626 = vld [vmem:[%s40 + $0x920] sm:$0xff]
        %627 = vst [vmem:[%s41 + $0x920] sm:$0xff] %v626
        %v628 = vld [vmem:[%s40 + $0x928] sm:$0xff]
        %629 = vst [vmem:[%s41 + $0x928] sm:$0xff] %v628
        %v630 = vld [vmem:[%s40 + $0x930] sm:$0xff]
        %631 = vst [vmem:[%s41 + $0x930] sm:$0xff] %v630
        %v632 = vld [vmem:[%s40 + $0x938] sm:$0xff]
        %633 = vst [vmem:[%s41 + $0x938] sm:$0xff] %v632
        %v634 = vld [vmem:[%s40 + $0x940] sm:$0xff]
        %635 = vst [vmem:[%s41 + $0x940] sm:$0xff] %v634
        %v636 = vld [vmem:[%s40 + $0x948] sm:$0xff]
        %637 = vst [vmem:[%s41 + $0x948] sm:$0xff] %v636
        %v638 = vld [vmem:[%s40 + $0x950] sm:$0xff]
        %639 = vst [vmem:[%s41 + $0x950] sm:$0xff] %v638
        %v640 = vld [vmem:[%s40 + $0x958] sm:$0xff]
        %641 = vst [vmem:[%s41 + $0x958] sm:$0xff] %v640
        %v642 = vld [vmem:[%s40 + $0x960] sm:$0xff]
        %643 = vst [vmem:[%s41 + $0x960] sm:$0xff] %v642
        %v644 = vld [vmem:[%s40 + $0x968] sm:$0xff]
        %645 = vst [vmem:[%s41 + $0x968] sm:$0xff] %v644
        %v646 = vld [vmem:[%s40 + $0x970] sm:$0xff]
        %647 = vst [vmem:[%s41 + $0x970] sm:$0xff] %v646
        %v648 = vld [vmem:[%s40 + $0x978] sm:$0xff]
        %649 = vst [vmem:[%s41 + $0x978] sm:$0xff] %v648
        %v650 = vld [vmem:[%s40 + $0x980] sm:$0xff]
        %651 = vst [vmem:[%s41 + $0x980] sm:$0xff] %v650
        %v652 = vld [vmem:[%s40 + $0x988] sm:$0xff]
        %653 = vst [vmem:[%s41 + $0x988] sm:$0xff] %v652
        %v654 = vld [vmem:[%s40 + $0x990] sm:$0xff]
        %655 = vst [vmem:[%s41 + $0x990] sm:$0xff] %v654
        %v656 = vld [vmem:[%s40 + $0x998] sm:$0xff]
        %657 = vst [vmem:[%s41 + $0x998] sm:$0xff] %v656
        %v658 = vld [vmem:[%s40 + $0x9a0] sm:$0xff]
        %659 = vst [vmem:[%s41 + $0x9a0] sm:$0xff] %v658
        %v660 = vld [vmem:[%s40 + $0x9a8] sm:$0xff]
        %661 = vst [vmem:[%s41 + $0x9a8] sm:$0xff] %v660
        %v662 = vld [vmem:[%s40 + $0x9b0] sm:$0xff]
        %663 = vst [vmem:[%s41 + $0x9b0] sm:$0xff] %v662
        %v664 = vld [vmem:[%s40 + $0x9b8] sm:$0xff]
        %665 = vst [vmem:[%s41 + $0x9b8] sm:$0xff] %v664
        %v666 = vld [vmem:[%s40 + $0x9c0] sm:$0xff]
        %667 = vst [vmem:[%s41 + $0x9c0] sm:$0xff] %v666
        %v668 = vld [vmem:[%s40 + $0x9c8] sm:$0xff]
        %669 = vst [vmem:[%s41 + $0x9c8] sm:$0xff] %v668
        %v670 = vld [vmem:[%s40 + $0x9d0] sm:$0xff]
        %671 = vst [vmem:[%s41 + $0x9d0] sm:$0xff] %v670
        %v672 = vld [vmem:[%s40 + $0x9d8] sm:$0xff]
        %673 = vst [vmem:[%s41 + $0x9d8] sm:$0xff] %v672
        %v674 = vld [vmem:[%s40 + $0x9e0] sm:$0xff]
        %675 = vst [vmem:[%s41 + $0x9e0] sm:$0xff] %v674
        %v676 = vld [vmem:[%s40 + $0x9e8] sm:$0xff]
        %677 = vst [vmem:[%s41 + $0x9e8] sm:$0xff] %v676
        %v678 = vld [vmem:[%s40 + $0x9f0] sm:$0xff]
        %679 = vst [vmem:[%s41 + $0x9f0] sm:$0xff] %v678
        %v680 = vld [vmem:[%s40 + $0x9f8] sm:$0xff]
        %681 = vst [vmem:[%s41 + $0x9f8] sm:$0xff] %v680
        %v682 = vld [vmem:[%s40 + $0xa00] sm:$0xff]
        %683 = vst [vmem:[%s41 + $0xa00] sm:$0xff] %v682
        %v684 = vld [vmem:[%s40 + $0xa08] sm:$0xff]
        %685 = vst [vmem:[%s41 + $0xa08] sm:$0xff] %v684
        %v686 = vld [vmem:[%s40 + $0xa10] sm:$0xff]
        %687 = vst [vmem:[%s41 + $0xa10] sm:$0xff] %v686
        %v688 = vld [vmem:[%s40 + $0xa18] sm:$0xff]
        %689 = vst [vmem:[%s41 + $0xa18] sm:$0xff] %v688
        %v690 = vld [vmem:[%s40 + $0xa20] sm:$0xff]
        %691 = vst [vmem:[%s41 + $0xa20] sm:$0xff] %v690
        %v692 = vld [vmem:[%s40 + $0xa28] sm:$0xff]
        %693 = vst [vmem:[%s41 + $0xa28] sm:$0xff] %v692
        %v694 = vld [vmem:[%s40 + $0xa30] sm:$0xff]
        %695 = vst [vmem:[%s41 + $0xa30] sm:$0xff] %v694
        %v696 = vld [vmem:[%s40 + $0xa38] sm:$0xff]
        %697 = vst [vmem:[%s41 + $0xa38] sm:$0xff] %v696
        %v698 = vld [vmem:[%s40 + $0xa40] sm:$0xff]
        %699 = vst [vmem:[%s41 + $0xa40] sm:$0xff] %v698
        %v700 = vld [vmem:[%s40 + $0xa48] sm:$0xff]
        %701 = vst [vmem:[%s41 + $0xa48] sm:$0xff] %v700
        %v702 = vld [vmem:[%s40 + $0xa50] sm:$0xff]
        %703 = vst [vmem:[%s41 + $0xa50] sm:$0xff] %v702
        %v704 = vld [vmem:[%s40 + $0xa58] sm:$0xff]
        %705 = vst [vmem:[%s41 + $0xa58] sm:$0xff] %v704
        %v706 = vld [vmem:[%s40 + $0xa60] sm:$0xff]
        %707 = vst [vmem:[%s41 + $0xa60] sm:$0xff] %v706
        %v708 = vld [vmem:[%s40 + $0xa68] sm:$0xff]
        %709 = vst [vmem:[%s41 + $0xa68] sm:$0xff] %v708
        %v710 = vld [vmem:[%s40 + $0xa70] sm:$0xff]
        %711 = vst [vmem:[%s41 + $0xa70] sm:$0xff] %v710
        %v712 = vld [vmem:[%s40 + $0xa78] sm:$0xff]
        %713 = vst [vmem:[%s41 + $0xa78] sm:$0xff] %v712
        %v714 = vld [vmem:[%s40 + $0xa80] sm:$0xff]
        %715 = vst [vmem:[%s41 + $0xa80] sm:$0xff] %v714
        %v716 = vld [vmem:[%s40 + $0xa88] sm:$0xff]
        %717 = vst [vmem:[%s41 + $0xa88] sm:$0xff] %v716
        %v718 = vld [vmem:[%s40 + $0xa90] sm:$0xff]
        %719 = vst [vmem:[%s41 + $0xa90] sm:$0xff] %v718
        %v720 = vld [vmem:[%s40 + $0xa98] sm:$0xff]
        %721 = vst [vmem:[%s41 + $0xa98] sm:$0xff] %v720
        %v722 = vld [vmem:[%s40 + $0xaa0] sm:$0xff]
        %723 = vst [vmem:[%s41 + $0xaa0] sm:$0xff] %v722
        %v724 = vld [vmem:[%s40 + $0xaa8] sm:$0xff]
        %725 = vst [vmem:[%s41 + $0xaa8] sm:$0xff] %v724
        %v726 = vld [vmem:[%s40 + $0xab0] sm:$0xff]
        %727 = vst [vmem:[%s41 + $0xab0] sm:$0xff] %v726
        %v728 = vld [vmem:[%s40 + $0xab8] sm:$0xff]
        %729 = vst [vmem:[%s41 + $0xab8] sm:$0xff] %v728
        %v730 = vld [vmem:[%s40 + $0xac0] sm:$0xff]
        %731 = vst [vmem:[%s41 + $0xac0] sm:$0xff] %v730
        %v732 = vld [vmem:[%s40 + $0xac8] sm:$0xff]
        %733 = vst [vmem:[%s41 + $0xac8] sm:$0xff] %v732
        %v734 = vld [vmem:[%s40 + $0xad0] sm:$0xff]
        %735 = vst [vmem:[%s41 + $0xad0] sm:$0xff] %v734
        %v736 = vld [vmem:[%s40 + $0xad8] sm:$0xff]
        %737 = vst [vmem:[%s41 + $0xad8] sm:$0xff] %v736
        %v738 = vld [vmem:[%s40 + $0xae0] sm:$0xff]
        %739 = vst [vmem:[%s41 + $0xae0] sm:$0xff] %v738
        %v740 = vld [vmem:[%s40 + $0xae8] sm:$0xff]
        %741 = vst [vmem:[%s41 + $0xae8] sm:$0xff] %v740
        %v742 = vld [vmem:[%s40 + $0xaf0] sm:$0xff]
        %743 = vst [vmem:[%s41 + $0xaf0] sm:$0xff] %v742
        %v744 = vld [vmem:[%s40 + $0xaf8] sm:$0xff]
        %745 = vst [vmem:[%s41 + $0xaf8] sm:$0xff] %v744
        %v746 = vld [vmem:[%s40 + $0xb00] sm:$0xff]
        %747 = vst [vmem:[%s41 + $0xb00] sm:$0xff] %v746
        %v748 = vld [vmem:[%s40 + $0xb08] sm:$0xff]
        %749 = vst [vmem:[%s41 + $0xb08] sm:$0xff] %v748
        %v750 = vld [vmem:[%s40 + $0xb10] sm:$0xff]
        %751 = vst [vmem:[%s41 + $0xb10] sm:$0xff] %v750
        %v752 = vld [vmem:[%s40 + $0xb18] sm:$0xff]
        %753 = vst [vmem:[%s41 + $0xb18] sm:$0xff] %v752
        %v754 = vld [vmem:[%s40 + $0xb20] sm:$0xff]
        %755 = vst [vmem:[%s41 + $0xb20] sm:$0xff] %v754
        %v756 = vld [vmem:[%s40 + $0xb28] sm:$0xff]
        %757 = vst [vmem:[%s41 + $0xb28] sm:$0xff] %v756
        %v758 = vld [vmem:[%s40 + $0xb30] sm:$0xff]
        %759 = vst [vmem:[%s41 + $0xb30] sm:$0xff] %v758
        %v760 = vld [vmem:[%s40 + $0xb38] sm:$0xff]
        %761 = vst [vmem:[%s41 + $0xb38] sm:$0xff] %v760
        %v762 = vld [vmem:[%s40 + $0xb40] sm:$0xff]
        %763 = vst [vmem:[%s41 + $0xb40] sm:$0xff] %v762
        %v764 = vld [vmem:[%s40 + $0xb48] sm:$0xff]
        %765 = vst [vmem:[%s41 + $0xb48] sm:$0xff] %v764
        %v766 = vld [vmem:[%s40 + $0xb50] sm:$0xff]
        %767 = vst [vmem:[%s41 + $0xb50] sm:$0xff] %v766
        %v768 = vld [vmem:[%s40 + $0xb58] sm:$0xff]
        %769 = vst [vmem:[%s41 + $0xb58] sm:$0xff] %v768
        %v770 = vld [vmem:[%s40 + $0xb60] sm:$0xff]
        %771 = vst [vmem:[%s41 + $0xb60] sm:$0xff] %v770
        %v772 = vld [vmem:[%s40 + $0xb68] sm:$0xff]
        %773 = vst [vmem:[%s41 + $0xb68] sm:$0xff] %v772
        %v774 = vld [vmem:[%s40 + $0xb70] sm:$0xff]
        %775 = vst [vmem:[%s41 + $0xb70] sm:$0xff] %v774
        %v776 = vld [vmem:[%s40 + $0xb78] sm:$0xff]
        %777 = vst [vmem:[%s41 + $0xb78] sm:$0xff] %v776
        %v778 = vld [vmem:[%s40 + $0xb80] sm:$0xff]
        %779 = vst [vmem:[%s41 + $0xb80] sm:$0xff] %v778
        %v780 = vld [vmem:[%s40 + $0xb88] sm:$0xff]
        %781 = vst [vmem:[%s41 + $0xb88] sm:$0xff] %v780
        %v782 = vld [vmem:[%s40 + $0xb90] sm:$0xff]
        %783 = vst [vmem:[%s41 + $0xb90] sm:$0xff] %v782
        %v784 = vld [vmem:[%s40 + $0xb98] sm:$0xff]
        %785 = vst [vmem:[%s41 + $0xb98] sm:$0xff] %v784
        %v786 = vld [vmem:[%s40 + $0xba0] sm:$0xff]
        %787 = vst [vmem:[%s41 + $0xba0] sm:$0xff] %v786
        %v788 = vld [vmem:[%s40 + $0xba8] sm:$0xff]
        %789 = vst [vmem:[%s41 + $0xba8] sm:$0xff] %v788
        %v790 = vld [vmem:[%s40 + $0xbb0] sm:$0xff]
        %791 = vst [vmem:[%s41 + $0xbb0] sm:$0xff] %v790
        %v792 = vld [vmem:[%s40 + $0xbb8] sm:$0xff]
        %793 = vst [vmem:[%s41 + $0xbb8] sm:$0xff] %v792
        %v794 = vld [vmem:[%s40 + $0xbc0] sm:$0xff]
        %795 = vst [vmem:[%s41 + $0xbc0] sm:$0xff] %v794
        %v796 = vld [vmem:[%s40 + $0xbc8] sm:$0xff]
        %797 = vst [vmem:[%s41 + $0xbc8] sm:$0xff] %v796
        %v798 = vld [vmem:[%s40 + $0xbd0] sm:$0xff]
        %799 = vst [vmem:[%s41 + $0xbd0] sm:$0xff] %v798
        %v800 = vld [vmem:[%s40 + $0xbd8] sm:$0xff]
        %801 = vst [vmem:[%s41 + $0xbd8] sm:$0xff] %v800
        %v802 = vld [vmem:[%s40 + $0xbe0] sm:$0xff]
        %803 = vst [vmem:[%s41 + $0xbe0] sm:$0xff] %v802
        %v804 = vld [vmem:[%s40 + $0xbe8] sm:$0xff]
        %805 = vst [vmem:[%s41 + $0xbe8] sm:$0xff] %v804
        %v806 = vld [vmem:[%s40 + $0xbf0] sm:$0xff]
        %807 = vst [vmem:[%s41 + $0xbf0] sm:$0xff] %v806
        %v808 = vld [vmem:[%s40 + $0xbf8] sm:$0xff]
        %809 = vst [vmem:[%s41 + $0xbf8] sm:$0xff] %v808
        %v810 = vld [vmem:[%s40 + $0xc00] sm:$0xff]
        %811 = vst [vmem:[%s41 + $0xc00] sm:$0xff] %v810
        %v812 = vld [vmem:[%s40 + $0xc08] sm:$0xff]
        %813 = vst [vmem:[%s41 + $0xc08] sm:$0xff] %v812
        %v814 = vld [vmem:[%s40 + $0xc10] sm:$0xff]
        %815 = vst [vmem:[%s41 + $0xc10] sm:$0xff] %v814
        %v816 = vld [vmem:[%s40 + $0xc18] sm:$0xff]
        %817 = vst [vmem:[%s41 + $0xc18] sm:$0xff] %v816
        %v818 = vld [vmem:[%s40 + $0xc20] sm:$0xff]
        %819 = vst [vmem:[%s41 + $0xc20] sm:$0xff] %v818
        %v820 = vld [vmem:[%s40 + $0xc28] sm:$0xff]
        %821 = vst [vmem:[%s41 + $0xc28] sm:$0xff] %v820
        %v822 = vld [vmem:[%s40 + $0xc30] sm:$0xff]
        %823 = vst [vmem:[%s41 + $0xc30] sm:$0xff] %v822
        %v824 = vld [vmem:[%s40 + $0xc38] sm:$0xff]
        %825 = vst [vmem:[%s41 + $0xc38] sm:$0xff] %v824
        %v826 = vld [vmem:[%s40 + $0xc40] sm:$0xff]
        %827 = vst [vmem:[%s41 + $0xc40] sm:$0xff] %v826
        %v828 = vld [vmem:[%s40 + $0xc48] sm:$0xff]
        %829 = vst [vmem:[%s41 + $0xc48] sm:$0xff] %v828
        %v830 = vld [vmem:[%s40 + $0xc50] sm:$0xff]
        %831 = vst [vmem:[%s41 + $0xc50] sm:$0xff] %v830
        %v832 = vld [vmem:[%s40 + $0xc58] sm:$0xff]
        %833 = vst [vmem:[%s41 + $0xc58] sm:$0xff] %v832
        %v834 = vld [vmem:[%s40 + $0xc60] sm:$0xff]
        %835 = vst [vmem:[%s41 + $0xc60] sm:$0xff] %v834
        %v836 = vld [vmem:[%s40 + $0xc68] sm:$0xff]
        %837 = vst [vmem:[%s41 + $0xc68] sm:$0xff] %v836
        %v838 = vld [vmem:[%s40 + $0xc70] sm:$0xff]
        %839 = vst [vmem:[%s41 + $0xc70] sm:$0xff] %v838
        %v840 = vld [vmem:[%s40 + $0xc78] sm:$0xff]
        %841 = vst [vmem:[%s41 + $0xc78] sm:$0xff] %v840
      $region42: #{cnn_forward.1} parent=36 // loop_footer
        %s39 = sadd.s32 1, %s35
      $region43: #{cnn_forward.1} parent=36 // loop_footer_branch
        %34 = sbr.rel target = $region39
      $region44: #{cnn_forward.1} parent=36 // loop_exit
        _
    $region37: #{cnn_forward.1} parent=1 // pred_fallthru
      _
    // Predicated region
    $region45: #{cnn_forward.1} parent=1 // pred_check
      _
    $region46: #{cnn_forward.1} parent=1 // pred_check_branch
      %843 = sbr.rel target = $region48
    $region47: #{cnn_forward.1} parent=1 // pred_region
      _
    $region48: #{cnn_forward.1} parent=1 // pred_fallthru
      _
    // Predicated region
    $region49: #{cnn_forward.1} parent=1 // pred_check
      _
    $region50: #{cnn_forward.1} parent=1 // pred_check_branch
      %846 = sbr.rel (0) target = $region52
    $region51: #{cnn_forward.1} parent=1 // pred_region
      %847 = vsyncadd [#allocation5], 51200
    $region52: #{cnn_forward.1} parent=1 // pred_fallthru
      _
    %v848 = vld [vmem:[%s0] sm:$0xff]
    %v849 = vld [vmem:[%s0 + $0x8] sm:$0xff]
    %v850 = vld [vmem:[%s0 + $0x10] sm:$0xff]
    %v851 = vld [vmem:[%s0 + $0x18] sm:$0xff]
    %v852 = vld [vmem:[%s0 + $0x20] sm:$0xff]
    %v853 = vld [vmem:[%s0 + $0x28] sm:$0xff]
    %v854 = vld [vmem:[%s0 + $0x30] sm:$0xff]
    %v855 = vld [vmem:[%s0 + $0x38] sm:$0xff]
    %v856 = vld [vmem:[%s0 + $0x40] sm:$0xff]
    %v857 = vld [vmem:[%s0 + $0x48] sm:$0xff]
    %v858 = vld [vmem:[%s0 + $0x50] sm:$0xff]
    %v859 = vld [vmem:[%s0 + $0x58] sm:$0xff]
    %v860 = vld [vmem:[%s0 + $0x60] sm:$0xff]
    %v861 = vld [vmem:[%s0 + $0x68] sm:$0xff]
    %v862 = vld [vmem:[%s0 + $0x70] sm:$0xff]
    %v863 = vld [vmem:[%s0 + $0x78] sm:$0xff]
    %v864 = vld [vmem:[%s0 + $0x80] sm:$0xff]
    %v865 = vld [vmem:[%s0 + $0x88] sm:$0xff]
    %v866 = vld [vmem:[%s0 + $0x90] sm:$0xff]
    %v867 = vld [vmem:[%s0 + $0x98] sm:$0xff]
    %v868 = vld [vmem:[%s0 + $0xa0] sm:$0xff]
    %v869 = vld [vmem:[%s0 + $0xa8] sm:$0xff]
    %v870 = vld [vmem:[%s0 + $0xb0] sm:$0xff]
    %v871 = vld [vmem:[%s0 + $0xb8] sm:$0xff]
    %v872 = vld [vmem:[%s0 + $0xc0] sm:$0xff]
    %v873 = vld [vmem:[%s0 + $0xc8] sm:$0xff]
    %v874 = vld [vmem:[%s0 + $0xd0] sm:$0xff]
    %v875 = vld [vmem:[%s0 + $0xd8] sm:$0xff]
    %v876 = vld [vmem:[%s0 + $0xe0] sm:$0xff]
    %v877 = vld [vmem:[%s0 + $0xe8] sm:$0xff]
    %v878 = vld [vmem:[%s0 + $0xf0] sm:$0xff]
    %v879 = vld [vmem:[%s0 + $0xf8] sm:$0xff]
    %v880 = vld [vmem:[%s0 + $0x100] sm:$0xff]
    %v881 = vld [vmem:[%s0 + $0x108] sm:$0xff]
    %v882 = vld [vmem:[%s0 + $0x110] sm:$0xff]
    %v883 = vld [vmem:[%s0 + $0x118] sm:$0xff]
    %v884 = vld [vmem:[%s0 + $0x120] sm:$0xff]
    %v885 = vld [vmem:[%s0 + $0x128] sm:$0xff]
    %v886 = vld [vmem:[%s0 + $0x130] sm:$0xff]
    %v887 = vld [vmem:[%s0 + $0x138] sm:$0xff]
    %v888 = vld [vmem:[%s0 + $0x140] sm:$0xff]
    %v889 = vld [vmem:[%s0 + $0x148] sm:$0xff]
    %v890 = vld [vmem:[%s0 + $0x150] sm:$0xff]
    %v891 = vld [vmem:[%s0 + $0x158] sm:$0xff]
    %v892 = vld [vmem:[%s0 + $0x160] sm:$0xff]
    %v893 = vld [vmem:[%s0 + $0x168] sm:$0xff]
    %v894 = vld [vmem:[%s0 + $0x170] sm:$0xff]
    %v895 = vld [vmem:[%s0 + $0x178] sm:$0xff]
    %v896 = vld [vmem:[%s0 + $0x180] sm:$0xff]
    %v897 = vld [vmem:[%s0 + $0x188] sm:$0xff]
    %v898 = vld [vmem:[%s0 + $0x190] sm:$0xff]
    %v899 = vld [vmem:[%s0 + $0x198] sm:$0xff]
    %v900 = vld [vmem:[%s0 + $0x1a0] sm:$0xff]
    %v901 = vld [vmem:[%s0 + $0x1a8] sm:$0xff]
    %v902 = vld [vmem:[%s0 + $0x1b0] sm:$0xff]
    %v903 = vld [vmem:[%s0 + $0x1b8] sm:$0xff]
    %v904 = vld [vmem:[%s0 + $0x1c0] sm:$0xff]
    %v905 = vld [vmem:[%s0 + $0x1c8] sm:$0xff]
    %v906 = vld [vmem:[%s0 + $0x1d0] sm:$0xff]
    %v907 = vld [vmem:[%s0 + $0x1d8] sm:$0xff]
    %v908 = vld [vmem:[%s0 + $0x1e0] sm:$0xff]
    %v909 = vld [vmem:[%s0 + $0x1e8] sm:$0xff]
    %v910 = vld [vmem:[%s0 + $0x1f0] sm:$0xff]
    %v911 = vld [vmem:[%s0 + $0x1f8] sm:$0xff]
    %v912 = vld [vmem:[%s0 + $0x200] sm:$0xff]
    %v913 = vld [vmem:[%s0 + $0x208] sm:$0xff]
    %v914 = vld [vmem:[%s0 + $0x210] sm:$0xff]
    %v915 = vld [vmem:[%s0 + $0x218] sm:$0xff]
    %v916 = vld [vmem:[%s0 + $0x220] sm:$0xff]
    %v917 = vld [vmem:[%s0 + $0x228] sm:$0xff]
    %v918 = vld [vmem:[%s0 + $0x230] sm:$0xff]
    %v919 = vld [vmem:[%s0 + $0x238] sm:$0xff]
    %v920 = vld [vmem:[%s0 + $0x240] sm:$0xff]
    %v921 = vld [vmem:[%s0 + $0x248] sm:$0xff]
    %v922 = vld [vmem:[%s0 + $0x250] sm:$0xff]
    %v923 = vld [vmem:[%s0 + $0x258] sm:$0xff]
    %v924 = vld [vmem:[%s0 + $0x260] sm:$0xff]
    %v925 = vld [vmem:[%s0 + $0x268] sm:$0xff]
    %v926 = vld [vmem:[%s0 + $0x270] sm:$0xff]
    %v927 = vld [vmem:[%s0 + $0x278] sm:$0xff]
    %v928 = vld [vmem:[%s0 + $0x280] sm:$0xff]
    %v929 = vld [vmem:[%s0 + $0x288] sm:$0xff]
    %v930 = vld [vmem:[%s0 + $0x290] sm:$0xff]
    %v931 = vld [vmem:[%s0 + $0x298] sm:$0xff]
    %v932 = vld [vmem:[%s0 + $0x2a0] sm:$0xff]
    %v933 = vld [vmem:[%s0 + $0x2a8] sm:$0xff]
    %v934 = vld [vmem:[%s0 + $0x2b0] sm:$0xff]
    %v935 = vld [vmem:[%s0 + $0x2b8] sm:$0xff]
    %v936 = vld [vmem:[%s0 + $0x2c0] sm:$0xff]
    %v937 = vld [vmem:[%s0 + $0x2c8] sm:$0xff]
    %v938 = vld [vmem:[%s0 + $0x2d0] sm:$0xff]
    %v939 = vld [vmem:[%s0 + $0x2d8] sm:$0xff]
    %v940 = vld [vmem:[%s0 + $0x2e0] sm:$0xff]
    %v941 = vld [vmem:[%s0 + $0x2e8] sm:$0xff]
    %v942 = vld [vmem:[%s0 + $0x2f0] sm:$0xff]
    %v943 = vld [vmem:[%s0 + $0x2f8] sm:$0xff]
    %v944 = vld [vmem:[%s0 + $0x300] sm:$0xff]
    %v945 = vld [vmem:[%s0 + $0x308] sm:$0xff]
    %v946 = vld [vmem:[%s0 + $0x310] sm:$0xff]
    %v947 = vld [vmem:[%s0 + $0x318] sm:$0xff]
    %v948 = vld [vmem:[%s0 + $0x320] sm:$0xff]
    %v949 = vld [vmem:[%s0 + $0x328] sm:$0xff]
    %v950 = vld [vmem:[%s0 + $0x330] sm:$0xff]
    %v951 = vld [vmem:[%s0 + $0x338] sm:$0xff]
    %v952 = vld [vmem:[%s0 + $0x340] sm:$0xff]
    %v953 = vld [vmem:[%s0 + $0x348] sm:$0xff]
    %v954 = vld [vmem:[%s0 + $0x350] sm:$0xff]
    %v955 = vld [vmem:[%s0 + $0x358] sm:$0xff]
    %v956 = vld [vmem:[%s0 + $0x360] sm:$0xff]
    %v957 = vld [vmem:[%s0 + $0x368] sm:$0xff]
    %v958 = vld [vmem:[%s0 + $0x370] sm:$0xff]
    %v959 = vld [vmem:[%s0 + $0x378] sm:$0xff]
    %v960 = vld [vmem:[%s1] sm:$0xff]
    %v961 = vld [vmem:[%s1 + $0x8] sm:$0xff]
    %v962 = vld [vmem:[%s1 + $0x10] sm:$0xff]
    %v963 = vld [vmem:[%s1 + $0x18] sm:$0xff]
    %vm964 = vcmask 261120
    %v966 = vsel %vm964, %v848, 0
    %v969 = vsel %vm964, %v849, 0
    %v972 = vsel %vm964, %v850, 0
    %v975 = vsel %vm964, %v851, 0
    %v978 = vsel %vm964, %v852, 0
    %v981 = vsel %vm964, %v853, 0
    %v984 = vsel %vm964, %v854, 0
    %v987 = vsel %vm964, %v855, 0
    %v990 = vsel %vm964, %v856, 0
    %v993 = vsel %vm964, %v857, 0
    %v996 = vsel %vm964, %v858, 0
    %v999 = vsel %vm964, %v859, 0
    %v1002 = vsel %vm964, %v860, 0
    %v1005 = vsel %vm964, %v861, 0
    %v1008 = vsel %vm964, %v862, 0
    %v1011 = vsel %vm964, %v863, 0
    %v1014 = vsel %vm964, %v864, 0
    %v1017 = vsel %vm964, %v865, 0
    %v1020 = vsel %vm964, %v866, 0
    %v1023 = vsel %vm964, %v867, 0
    %v1026 = vsel %vm964, %v868, 0
    %v1029 = vsel %vm964, %v869, 0
    %v1032 = vsel %vm964, %v870, 0
    %v1035 = vsel %vm964, %v871, 0
    %v1038 = vsel %vm964, %v872, 0
    %v1041 = vsel %vm964, %v873, 0
    %v1044 = vsel %vm964, %v874, 0
    %v1047 = vsel %vm964, %v875, 0
    %v1050 = vsel %vm964, %v876, 0
    %v1053 = vsel %vm964, %v877, 0
    %v1056 = vsel %vm964, %v878, 0
    %v1059 = vsel %vm964, %v879, 0
    %v1062 = vsel %vm964, %v880, 0
    %v1065 = vsel %vm964, %v881, 0
    %v1068 = vsel %vm964, %v882, 0
    %v1071 = vsel %vm964, %v883, 0
    %v1074 = vsel %vm964, %v884, 0
    %v1077 = vsel %vm964, %v885, 0
    %v1080 = vsel %vm964, %v886, 0
    %v1083 = vsel %vm964, %v887, 0
    %v1086 = vsel %vm964, %v888, 0
    %v1089 = vsel %vm964, %v889, 0
    %v1092 = vsel %vm964, %v890, 0
    %v1095 = vsel %vm964, %v891, 0
    %v1098 = vsel %vm964, %v892, 0
    %v1101 = vsel %vm964, %v893, 0
    %v1104 = vsel %vm964, %v894, 0
    %v1107 = vsel %vm964, %v895, 0
    %v1110 = vsel %vm964, %v896, 0
    %v1113 = vsel %vm964, %v897, 0
    %v1116 = vsel %vm964, %v898, 0
    %v1119 = vsel %vm964, %v899, 0
    %v1122 = vsel %vm964, %v900, 0
    %v1125 = vsel %vm964, %v901, 0
    %v1128 = vsel %vm964, %v902, 0
    %v1131 = vsel %vm964, %v903, 0
    %v1134 = vsel %vm964, %v904, 0
    %v1137 = vsel %vm964, %v905, 0
    %v1140 = vsel %vm964, %v906, 0
    %v1143 = vsel %vm964, %v907, 0
    %v1146 = vsel %vm964, %v908, 0
    %v1149 = vsel %vm964, %v909, 0
    %v1152 = vsel %vm964, %v910, 0
    %v1155 = vsel %vm964, %v911, 0
    %v1158 = vsel %vm964, %v912, 0
    %v1161 = vsel %vm964, %v913, 0
    %v1164 = vsel %vm964, %v914, 0
    %v1167 = vsel %vm964, %v915, 0
    %v1170 = vsel %vm964, %v916, 0
    %v1173 = vsel %vm964, %v917, 0
    %v1176 = vsel %vm964, %v918, 0
    %v1179 = vsel %vm964, %v919, 0
    %v1182 = vsel %vm964, %v920, 0
    %v1185 = vsel %vm964, %v921, 0
    %v1188 = vsel %vm964, %v922, 0
    %v1191 = vsel %vm964, %v923, 0
    %v1194 = vsel %vm964, %v924, 0
    %v1197 = vsel %vm964, %v925, 0
    %v1200 = vsel %vm964, %v926, 0
    %v1203 = vsel %vm964, %v927, 0
    %v1206 = vsel %vm964, %v928, 0
    %v1209 = vsel %vm964, %v929, 0
    %v1212 = vsel %vm964, %v930, 0
    %v1215 = vsel %vm964, %v931, 0
    %v1218 = vsel %vm964, %v932, 0
    %v1221 = vsel %vm964, %v933, 0
    %v1224 = vsel %vm964, %v934, 0
    %v1227 = vsel %vm964, %v935, 0
    %v1230 = vsel %vm964, %v936, 0
    %v1233 = vsel %vm964, %v937, 0
    %v1236 = vsel %vm964, %v938, 0
    %v1239 = vsel %vm964, %v939, 0
    %v1242 = vsel %vm964, %v940, 0
    %v1245 = vsel %vm964, %v941, 0
    %v1248 = vsel %vm964, %v942, 0
    %v1251 = vsel %vm964, %v943, 0
    %v1254 = vsel %vm964, %v944, 0
    %v1257 = vsel %vm964, %v945, 0
    %v1260 = vsel %vm964, %v946, 0
    %v1263 = vsel %vm964, %v947, 0
    %v1266 = vsel %vm964, %v948, 0
    %v1269 = vsel %vm964, %v949, 0
    %v1272 = vsel %vm964, %v950, 0
    %v1275 = vsel %vm964, %v951, 0
    %v1278 = vsel %vm964, %v952, 0
    %v1281 = vsel %vm964, %v953, 0
    %v1284 = vsel %vm964, %v954, 0
    %v1287 = vsel %vm964, %v955, 0
    %v1290 = vsel %vm964, %v956, 0
    %v1293 = vsel %vm964, %v957, 0
    %v1296 = vsel %vm964, %v958, 0
    %v1299 = vsel %vm964, %v959, 0
    %1301 = vmatpush.msra.mxu0 0.0
    %1302 = vmatpush.msra.mxu0 0.0
    %1303 = vmatpush.msra.mxu0 0.0
    %1304 = vmatpush.msra.mxu0 0.0
    %1305 = vmatpush.msra.mxu0 0.0
    %1306 = vmatpush.msra.mxu0 0.0
    %1307 = vmatpush.msra.mxu0 0.0
    %1308 = vmatpush.msra.mxu0 0.0
    %1309 = vmatpush.msra.mxu0 0.0
    %1310 = vmatpush.msra.mxu0 0.0
    %1311 = vmatpush.msra.mxu0 0.0
    %1312 = vmatpush.msra.mxu0 0.0
    %1313 = vmatpush.msra.mxu0 %v963
    %1314 = vmatpush.msra.mxu0 %v962
    %1315 = vmatpush.msra.mxu0 %v961
    %1316 = vmatpush.msra.mxu0 %v960
    %1317 = vmatmul.f32.gmra.mxu0 %v966
    %v1318 = vpop.f32.mrf.mxu0
    %v1319 = vadd.f32 0.0, %v1318
    %1320 = vmatmul.f32.gmra.mxu0 %v969
    %v1321 = vpop.f32.mrf.mxu0
    %v1322 = vadd.f32 0.0, %v1321
    %1323 = vmatmul.f32.gmra.mxu0 %v972
    %v1324 = vpop.f32.mrf.mxu0
    %v1325 = vadd.f32 0.0, %v1324
    %1326 = vmatmul.f32.gmra.mxu0 %v975
    %v1327 = vpop.f32.mrf.mxu0
    %v1328 = vadd.f32 0.0, %v1327
    %1329 = vmatmul.f32.gmra.mxu0 %v978
    %v1330 = vpop.f32.mrf.mxu0
    %v1331 = vadd.f32 0.0, %v1330
    %1332 = vmatmul.f32.gmra.mxu0 %v981
    %v1333 = vpop.f32.mrf.mxu0
    %v1334 = vadd.f32 0.0, %v1333
    %1335 = vmatmul.f32.gmra.mxu0 %v984
    %v1336 = vpop.f32.mrf.mxu0
    %v1337 = vadd.f32 0.0, %v1336
    %1338 = vmatmul.f32.gmra.mxu0 %v987
    %v1339 = vpop.f32.mrf.mxu0
    %v1340 = vadd.f32 0.0, %v1339
    %1341 = vmatmul.f32.gmra.mxu0 %v990
    %v1342 = vpop.f32.mrf.mxu0
    %v1343 = vadd.f32 0.0, %v1342
    %1344 = vmatmul.f32.gmra.mxu0 %v993
    %v1345 = vpop.f32.mrf.mxu0
    %v1346 = vadd.f32 0.0, %v1345
    %1347 = vmatmul.f32.gmra.mxu0 %v996
    %v1348 = vpop.f32.mrf.mxu0
    %v1349 = vadd.f32 0.0, %v1348
    %1350 = vmatmul.f32.gmra.mxu0 %v999
    %v1351 = vpop.f32.mrf.mxu0
    %v1352 = vadd.f32 0.0, %v1351
    %1353 = vmatmul.f32.gmra.mxu0 %v1002
    %v1354 = vpop.f32.mrf.mxu0
    %v1355 = vadd.f32 0.0, %v1354
    %1356 = vmatmul.f32.gmra.mxu0 %v1005
    %v1357 = vpop.f32.mrf.mxu0
    %v1358 = vadd.f32 0.0, %v1357
    %1359 = vmatmul.f32.gmra.mxu0 %v1008
    %v1360 = vpop.f32.mrf.mxu0
    %v1361 = vadd.f32 0.0, %v1360
    %1362 = vmatmul.f32.gmra.mxu0 %v1011
    %v1363 = vpop.f32.mrf.mxu0
    %v1364 = vadd.f32 0.0, %v1363
    %1365 = vmatmul.f32.gmra.mxu0 %v1014
    %v1366 = vpop.f32.mrf.mxu0
    %v1367 = vadd.f32 0.0, %v1366
    %1368 = vmatmul.f32.gmra.mxu0 %v1017
    %v1369 = vpop.f32.mrf.mxu0
    %v1370 = vadd.f32 0.0, %v1369
    %1371 = vmatmul.f32.gmra.mxu0 %v1020
    %v1372 = vpop.f32.mrf.mxu0
    %v1373 = vadd.f32 0.0, %v1372
    %1374 = vmatmul.f32.gmra.mxu0 %v1023
    %v1375 = vpop.f32.mrf.mxu0
    %v1376 = vadd.f32 0.0, %v1375
    %1377 = vmatmul.f32.gmra.mxu0 %v1026
    %v1378 = vpop.f32.mrf.mxu0
    %v1379 = vadd.f32 0.0, %v1378
    %1380 = vmatmul.f32.gmra.mxu0 %v1029
    %v1381 = vpop.f32.mrf.mxu0
    %v1382 = vadd.f32 0.0, %v1381
    %1383 = vmatmul.f32.gmra.mxu0 %v1032
    %v1384 = vpop.f32.mrf.mxu0
    %v1385 = vadd.f32 0.0, %v1384
    %1386 = vmatmul.f32.gmra.mxu0 %v1035
    %v1387 = vpop.f32.mrf.mxu0
    %v1388 = vadd.f32 0.0, %v1387
    %1389 = vmatmul.f32.gmra.mxu0 %v1038
    %v1390 = vpop.f32.mrf.mxu0
    %v1391 = vadd.f32 0.0, %v1390
    %1392 = vmatmul.f32.gmra.mxu0 %v1041
    %v1393 = vpop.f32.mrf.mxu0
    %v1394 = vadd.f32 0.0, %v1393
    %1395 = vmatmul.f32.gmra.mxu0 %v1044
    %v1396 = vpop.f32.mrf.mxu0
    %v1397 = vadd.f32 0.0, %v1396
    %1398 = vmatmul.f32.gmra.mxu0 %v1047
    %v1399 = vpop.f32.mrf.mxu0
    %v1400 = vadd.f32 0.0, %v1399
    %1401 = vmatmul.f32.gmra.mxu0 %v1050
    %v1402 = vpop.f32.mrf.mxu0
    %v1403 = vadd.f32 0.0, %v1402
    %1404 = vmatmul.f32.gmra.mxu0 %v1053
    %v1405 = vpop.f32.mrf.mxu0
    %v1406 = vadd.f32 0.0, %v1405
    %1407 = vmatmul.f32.gmra.mxu0 %v1056
    %v1408 = vpop.f32.mrf.mxu0
    %v1409 = vadd.f32 0.0, %v1408
    %1410 = vmatmul.f32.gmra.mxu0 %v1059
    %v1411 = vpop.f32.mrf.mxu0
    %v1412 = vadd.f32 0.0, %v1411
    %1413 = vmatmul.f32.gmra.mxu0 %v1062
    %v1414 = vpop.f32.mrf.mxu0
    %v1415 = vadd.f32 0.0, %v1414
    %1416 = vmatmul.f32.gmra.mxu0 %v1065
    %v1417 = vpop.f32.mrf.mxu0
    %v1418 = vadd.f32 0.0, %v1417
    %1419 = vmatmul.f32.gmra.mxu0 %v1068
    %v1420 = vpop.f32.mrf.mxu0
    %v1421 = vadd.f32 0.0, %v1420
    %1422 = vmatmul.f32.gmra.mxu0 %v1071
    %v1423 = vpop.f32.mrf.mxu0
    %v1424 = vadd.f32 0.0, %v1423
    %1425 = vmatmul.f32.gmra.mxu0 %v1074
    %v1426 = vpop.f32.mrf.mxu0
    %v1427 = vadd.f32 0.0, %v1426
    %1428 = vmatmul.f32.gmra.mxu0 %v1077
    %v1429 = vpop.f32.mrf.mxu0
    %v1430 = vadd.f32 0.0, %v1429
    %1431 = vmatmul.f32.gmra.mxu0 %v1080
    %v1432 = vpop.f32.mrf.mxu0
    %v1433 = vadd.f32 0.0, %v1432
    %1434 = vmatmul.f32.gmra.mxu0 %v1083
    %v1435 = vpop.f32.mrf.mxu0
    %v1436 = vadd.f32 0.0, %v1435
    %1437 = vmatmul.f32.gmra.mxu0 %v1086
    %v1438 = vpop.f32.mrf.mxu0
    %v1439 = vadd.f32 0.0, %v1438
    %1440 = vmatmul.f32.gmra.mxu0 %v1089
    %v1441 = vpop.f32.mrf.mxu0
    %v1442 = vadd.f32 0.0, %v1441
    %1443 = vmatmul.f32.gmra.mxu0 %v1092
    %v1444 = vpop.f32.mrf.mxu0
    %v1445 = vadd.f32 0.0, %v1444
    %1446 = vmatmul.f32.gmra.mxu0 %v1095
    %v1447 = vpop.f32.mrf.mxu0
    %v1448 = vadd.f32 0.0, %v1447
    %1449 = vmatmul.f32.gmra.mxu0 %v1098
    %v1450 = vpop.f32.mrf.mxu0
    %v1451 = vadd.f32 0.0, %v1450
    %1452 = vmatmul.f32.gmra.mxu0 %v1101
    %v1453 = vpop.f32.mrf.mxu0
    %v1454 = vadd.f32 0.0, %v1453
    %1455 = vmatmul.f32.gmra.mxu0 %v1104
    %v1456 = vpop.f32.mrf.mxu0
    %v1457 = vadd.f32 0.0, %v1456
    %1458 = vmatmul.f32.gmra.mxu0 %v1107
    %v1459 = vpop.f32.mrf.mxu0
    %v1460 = vadd.f32 0.0, %v1459
    %1461 = vmatmul.f32.gmra.mxu0 %v1110
    %v1462 = vpop.f32.mrf.mxu0
    %v1463 = vadd.f32 0.0, %v1462
    %1464 = vmatmul.f32.gmra.mxu0 %v1113
    %v1465 = vpop.f32.mrf.mxu0
    %v1466 = vadd.f32 0.0, %v1465
    %1467 = vmatmul.f32.gmra.mxu0 %v1116
    %v1468 = vpop.f32.mrf.mxu0
    %v1469 = vadd.f32 0.0, %v1468
    %1470 = vmatmul.f32.gmra.mxu0 %v1119
    %v1471 = vpop.f32.mrf.mxu0
    %v1472 = vadd.f32 0.0, %v1471
    %1473 = vmatmul.f32.gmra.mxu0 %v1122
    %v1474 = vpop.f32.mrf.mxu0
    %v1475 = vadd.f32 0.0, %v1474
    %1476 = vmatmul.f32.gmra.mxu0 %v1125
    %v1477 = vpop.f32.mrf.mxu0
    %v1478 = vadd.f32 0.0, %v1477
    %1479 = vmatmul.f32.gmra.mxu0 %v1128
    %v1480 = vpop.f32.mrf.mxu0
    %v1481 = vadd.f32 0.0, %v1480
    %1482 = vmatmul.f32.gmra.mxu0 %v1131
    %v1483 = vpop.f32.mrf.mxu0
    %v1484 = vadd.f32 0.0, %v1483
    %1485 = vmatmul.f32.gmra.mxu0 %v1134
    %v1486 = vpop.f32.mrf.mxu0
    %v1487 = vadd.f32 0.0, %v1486
    %1488 = vmatmul.f32.gmra.mxu0 %v1137
    %v1489 = vpop.f32.mrf.mxu0
    %v1490 = vadd.f32 0.0, %v1489
    %1491 = vmatmul.f32.gmra.mxu0 %v1140
    %v1492 = vpop.f32.mrf.mxu0
    %v1493 = vadd.f32 0.0, %v1492
    %1494 = vmatmul.f32.gmra.mxu0 %v1143
    %v1495 = vpop.f32.mrf.mxu0
    %v1496 = vadd.f32 0.0, %v1495
    %1497 = vmatmul.f32.gmra.mxu0 %v1146
    %v1498 = vpop.f32.mrf.mxu0
    %v1499 = vadd.f32 0.0, %v1498
    %1500 = vmatmul.f32.gmra.mxu0 %v1149
    %v1501 = vpop.f32.mrf.mxu0
    %v1502 = vadd.f32 0.0, %v1501
    %1503 = vmatmul.f32.gmra.mxu0 %v1152
    %v1504 = vpop.f32.mrf.mxu0
    %v1505 = vadd.f32 0.0, %v1504
    %1506 = vmatmul.f32.gmra.mxu0 %v1155
    %v1507 = vpop.f32.mrf.mxu0
    %v1508 = vadd.f32 0.0, %v1507
    %1509 = vmatmul.f32.gmra.mxu0 %v1158
    %v1510 = vpop.f32.mrf.mxu0
    %v1511 = vadd.f32 0.0, %v1510
    %1512 = vmatmul.f32.gmra.mxu0 %v1161
    %v1513 = vpop.f32.mrf.mxu0
    %v1514 = vadd.f32 0.0, %v1513
    %1515 = vmatmul.f32.gmra.mxu0 %v1164
    %v1516 = vpop.f32.mrf.mxu0
    %v1517 = vadd.f32 0.0, %v1516
    %1518 = vmatmul.f32.gmra.mxu0 %v1167
    %v1519 = vpop.f32.mrf.mxu0
    %v1520 = vadd.f32 0.0, %v1519
    %1521 = vmatmul.f32.gmra.mxu0 %v1170
    %v1522 = vpop.f32.mrf.mxu0
    %v1523 = vadd.f32 0.0, %v1522
    %1524 = vmatmul.f32.gmra.mxu0 %v1173
    %v1525 = vpop.f32.mrf.mxu0
    %v1526 = vadd.f32 0.0, %v1525
    %1527 = vmatmul.f32.gmra.mxu0 %v1176
    %v1528 = vpop.f32.mrf.mxu0
    %v1529 = vadd.f32 0.0, %v1528
    %1530 = vmatmul.f32.gmra.mxu0 %v1179
    %v1531 = vpop.f32.mrf.mxu0
    %v1532 = vadd.f32 0.0, %v1531
    %1533 = vmatmul.f32.gmra.mxu0 %v1182
    %v1534 = vpop.f32.mrf.mxu0
    %v1535 = vadd.f32 0.0, %v1534
    %1536 = vmatmul.f32.gmra.mxu0 %v1185
    %v1537 = vpop.f32.mrf.mxu0
    %v1538 = vadd.f32 0.0, %v1537
    %1539 = vmatmul.f32.gmra.mxu0 %v1188
    %v1540 = vpop.f32.mrf.mxu0
    %v1541 = vadd.f32 0.0, %v1540
    %1542 = vmatmul.f32.gmra.mxu0 %v1191
    %v1543 = vpop.f32.mrf.mxu0
    %v1544 = vadd.f32 0.0, %v1543
    %1545 = vmatmul.f32.gmra.mxu0 %v1194
    %v1546 = vpop.f32.mrf.mxu0
    %v1547 = vadd.f32 0.0, %v1546
    %1548 = vmatmul.f32.gmra.mxu0 %v1197
    %v1549 = vpop.f32.mrf.mxu0
    %v1550 = vadd.f32 0.0, %v1549
    %1551 = vmatmul.f32.gmra.mxu0 %v1200
    %v1552 = vpop.f32.mrf.mxu0
    %v1553 = vadd.f32 0.0, %v1552
    %1554 = vmatmul.f32.gmra.mxu0 %v1203
    %v1555 = vpop.f32.mrf.mxu0
    %v1556 = vadd.f32 0.0, %v1555
    %1557 = vmatmul.f32.gmra.mxu0 %v1206
    %v1558 = vpop.f32.mrf.mxu0
    %v1559 = vadd.f32 0.0, %v1558
    %1560 = vmatmul.f32.gmra.mxu0 %v1209
    %v1561 = vpop.f32.mrf.mxu0
    %v1562 = vadd.f32 0.0, %v1561
    %1563 = vmatmul.f32.gmra.mxu0 %v1212
    %v1564 = vpop.f32.mrf.mxu0
    %v1565 = vadd.f32 0.0, %v1564
    %1566 = vmatmul.f32.gmra.mxu0 %v1215
    %v1567 = vpop.f32.mrf.mxu0
    %v1568 = vadd.f32 0.0, %v1567
    %1569 = vmatmul.f32.gmra.mxu0 %v1218
    %v1570 = vpop.f32.mrf.mxu0
    %v1571 = vadd.f32 0.0, %v1570
    %1572 = vmatmul.f32.gmra.mxu0 %v1221
    %v1573 = vpop.f32.mrf.mxu0
    %v1574 = vadd.f32 0.0, %v1573
    %1575 = vmatmul.f32.gmra.mxu0 %v1224
    %v1576 = vpop.f32.mrf.mxu0
    %v1577 = vadd.f32 0.0, %v1576
    %1578 = vmatmul.f32.gmra.mxu0 %v1227
    %v1579 = vpop.f32.mrf.mxu0
    %v1580 = vadd.f32 0.0, %v1579
    %1581 = vmatmul.f32.gmra.mxu0 %v1230
    %v1582 = vpop.f32.mrf.mxu0
    %v1583 = vadd.f32 0.0, %v1582
    %1584 = vmatmul.f32.gmra.mxu0 %v1233
    %v1585 = vpop.f32.mrf.mxu0
    %v1586 = vadd.f32 0.0, %v1585
    %1587 = vmatmul.f32.gmra.mxu0 %v1236
    %v1588 = vpop.f32.mrf.mxu0
    %v1589 = vadd.f32 0.0, %v1588
    %1590 = vmatmul.f32.gmra.mxu0 %v1239
    %v1591 = vpop.f32.mrf.mxu0
    %v1592 = vadd.f32 0.0, %v1591
    %1593 = vmatmul.f32.gmra.mxu0 %v1242
    %v1594 = vpop.f32.mrf.mxu0
    %v1595 = vadd.f32 0.0, %v1594
    %1596 = vmatmul.f32.gmra.mxu0 %v1245
    %v1597 = vpop.f32.mrf.mxu0
    %v1598 = vadd.f32 0.0, %v1597
    %1599 = vmatmul.f32.gmra.mxu0 %v1248
    %v1600 = vpop.f32.mrf.mxu0
    %v1601 = vadd.f32 0.0, %v1600
    %1602 = vmatmul.f32.gmra.mxu0 %v1251
    %v1603 = vpop.f32.mrf.mxu0
    %v1604 = vadd.f32 0.0, %v1603
    %1605 = vmatmul.f32.gmra.mxu0 %v1254
    %v1606 = vpop.f32.mrf.mxu0
    %v1607 = vadd.f32 0.0, %v1606
    %1608 = vmatmul.f32.gmra.mxu0 %v1257
    %v1609 = vpop.f32.mrf.mxu0
    %v1610 = vadd.f32 0.0, %v1609
    %1611 = vmatmul.f32.gmra.mxu0 %v1260
    %v1612 = vpop.f32.mrf.mxu0
    %v1613 = vadd.f32 0.0, %v1612
    %1614 = vmatmul.f32.gmra.mxu0 %v1263
    %v1615 = vpop.f32.mrf.mxu0
    %v1616 = vadd.f32 0.0, %v1615
    %1617 = vmatmul.f32.gmra.mxu0 %v1266
    %v1618 = vpop.f32.mrf.mxu0
    %v1619 = vadd.f32 0.0, %v1618
    %1620 = vmatmul.f32.gmra.mxu0 %v1269
    %v1621 = vpop.f32.mrf.mxu0
    %v1622 = vadd.f32 0.0, %v1621
    %1623 = vmatmul.f32.gmra.mxu0 %v1272
    %v1624 = vpop.f32.mrf.mxu0
    %v1625 = vadd.f32 0.0, %v1624
    %1626 = vmatmul.f32.gmra.mxu0 %v1275
    %v1627 = vpop.f32.mrf.mxu0
    %v1628 = vadd.f32 0.0, %v1627
    %1629 = vmatmul.f32.gmra.mxu0 %v1278
    %v1630 = vpop.f32.mrf.mxu0
    %v1631 = vadd.f32 0.0, %v1630
    %1632 = vmatmul.f32.gmra.mxu0 %v1281
    %v1633 = vpop.f32.mrf.mxu0
    %v1634 = vadd.f32 0.0, %v1633
    %1635 = vmatmul.f32.gmra.mxu0 %v1284
    %v1636 = vpop.f32.mrf.mxu0
    %v1637 = vadd.f32 0.0, %v1636
    %1638 = vmatmul.f32.gmra.mxu0 %v1287
    %v1639 = vpop.f32.mrf.mxu0
    %v1640 = vadd.f32 0.0, %v1639
    %1641 = vmatmul.f32.gmra.mxu0 %v1290
    %v1642 = vpop.f32.mrf.mxu0
    %v1643 = vadd.f32 0.0, %v1642
    %1644 = vmatmul.f32.gmra.mxu0 %v1293
    %v1645 = vpop.f32.mrf.mxu0
    %v1646 = vadd.f32 0.0, %v1645
    %1647 = vmatmul.f32.gmra.mxu0 %v1296
    %v1648 = vpop.f32.mrf.mxu0
    %v1649 = vadd.f32 0.0, %v1648
    %1650 = vmatmul.f32.gmra.mxu0 %v1299
    %v1651 = vpop.f32.mrf.mxu0
    %v1652 = vadd.f32 0.0, %v1651
    %1653 = vdwg.mxu0
    %v1654 = vld [vmem:[%s2] sm:$0x1]
    %v1656 = vperm.slane %v1654, 0
    %v1658 = vadd.f32 %v1319, %v1656
    %v1659 = vadd.f32 %v1322, %v1656
    %v1660 = vadd.f32 %v1325, %v1656
    %v1661 = vadd.f32 %v1328, %v1656
    %v1662 = vadd.f32 %v1331, %v1656
    %v1663 = vadd.f32 %v1334, %v1656
    %v1664 = vadd.f32 %v1337, %v1656
    %v1665 = vmax.f32 %v1658, 0.0
    %v1666 = vmax.f32 %v1659, 0.0
    %v1667 = vmax.f32 %v1660, 0.0
    %v1668 = vmax.f32 %v1661, 0.0
    %v1669 = vmax.f32 %v1662, 0.0
    %v1670 = vmax.f32 %v1663, 0.0
    %v1671 = vmax.f32 %v1664, 0.0
    %v1672 = vadd.f32 %v1665, 0.0
    %v1673 = vadd.f32 %v1666, 0.0
    %v1674 = vadd.f32 %v1667, 0.0
    %v1675 = vadd.f32 %v1668, 0.0
    %v1676 = vadd.f32 %v1669, 0.0
    %v1677 = vadd.f32 %v1670, 0.0
    %v1678 = vadd.f32 %v1671, 0.0
    %v1679 = vadd.f32 %v1340, %v1656
    %v1680 = vadd.f32 %v1343, %v1656
    %v1681 = vadd.f32 %v1346, %v1656
    %v1682 = vadd.f32 %v1349, %v1656
    %v1683 = vadd.f32 %v1352, %v1656
    %v1684 = vadd.f32 %v1355, %v1656
    %v1685 = vadd.f32 %v1358, %v1656
    %v1686 = vmax.f32 %v1679, 0.0
    %v1687 = vmax.f32 %v1680, 0.0
    %v1688 = vmax.f32 %v1681, 0.0
    %v1689 = vmax.f32 %v1682, 0.0
    %v1690 = vmax.f32 %v1683, 0.0
    %v1691 = vmax.f32 %v1684, 0.0
    %v1692 = vmax.f32 %v1685, 0.0
    %v1693 = vadd.f32 %v1672, %v1686
    %v1694 = vadd.f32 %v1673, %v1687
    %v1695 = vadd.f32 %v1674, %v1688
    %v1696 = vadd.f32 %v1675, %v1689
    %v1697 = vadd.f32 %v1676, %v1690
    %v1698 = vadd.f32 %v1677, %v1691
    %v1699 = vadd.f32 %v1678, %v1692
    %v1700 = vadd.f32 %v1361, %v1656
    %v1701 = vadd.f32 %v1364, %v1656
    %v1702 = vadd.f32 %v1367, %v1656
    %v1703 = vadd.f32 %v1370, %v1656
    %v1704 = vadd.f32 %v1373, %v1656
    %v1705 = vadd.f32 %v1376, %v1656
    %v1706 = vadd.f32 %v1379, %v1656
    %v1707 = vmax.f32 %v1700, 0.0
    %v1708 = vmax.f32 %v1701, 0.0
    %v1709 = vmax.f32 %v1702, 0.0
    %v1710 = vmax.f32 %v1703, 0.0
    %v1711 = vmax.f32 %v1704, 0.0
    %v1712 = vmax.f32 %v1705, 0.0
    %v1713 = vmax.f32 %v1706, 0.0
    %v1714 = vadd.f32 %v1693, %v1707
    %v1715 = vadd.f32 %v1694, %v1708
    %v1716 = vadd.f32 %v1695, %v1709
    %v1717 = vadd.f32 %v1696, %v1710
    %v1718 = vadd.f32 %v1697, %v1711
    %v1719 = vadd.f32 %v1698, %v1712
    %v1720 = vadd.f32 %v1699, %v1713
    %v1721 = vadd.f32 %v1382, %v1656
    %v1722 = vadd.f32 %v1385, %v1656
    %v1723 = vadd.f32 %v1388, %v1656
    %v1724 = vadd.f32 %v1391, %v1656
    %v1725 = vadd.f32 %v1394, %v1656
    %v1726 = vadd.f32 %v1397, %v1656
    %v1727 = vadd.f32 %v1400, %v1656
    %v1728 = vmax.f32 %v1721, 0.0
    %v1729 = vmax.f32 %v1722, 0.0
    %v1730 = vmax.f32 %v1723, 0.0
    %v1731 = vmax.f32 %v1724, 0.0
    %v1732 = vmax.f32 %v1725, 0.0
    %v1733 = vmax.f32 %v1726, 0.0
    %v1734 = vmax.f32 %v1727, 0.0
    %v1735 = vadd.f32 %v1714, %v1728
    %v1736 = vadd.f32 %v1715, %v1729
    %v1737 = vadd.f32 %v1716, %v1730
    %v1738 = vadd.f32 %v1717, %v1731
    %v1739 = vadd.f32 %v1718, %v1732
    %v1740 = vadd.f32 %v1719, %v1733
    %v1741 = vadd.f32 %v1720, %v1734
    %v1742 = vadd.f32 %v1403, %v1656
    %v1743 = vadd.f32 %v1406, %v1656
    %v1744 = vadd.f32 %v1409, %v1656
    %v1745 = vadd.f32 %v1412, %v1656
    %v1746 = vadd.f32 %v1415, %v1656
    %v1747 = vadd.f32 %v1418, %v1656
    %v1748 = vadd.f32 %v1421, %v1656
    %v1749 = vmax.f32 %v1742, 0.0
    %v1750 = vmax.f32 %v1743, 0.0
    %v1751 = vmax.f32 %v1744, 0.0
    %v1752 = vmax.f32 %v1745, 0.0
    %v1753 = vmax.f32 %v1746, 0.0
    %v1754 = vmax.f32 %v1747, 0.0
    %v1755 = vmax.f32 %v1748, 0.0
    %v1756 = vadd.f32 %v1735, %v1749
    %v1757 = vadd.f32 %v1736, %v1750
    %v1758 = vadd.f32 %v1737, %v1751
    %v1759 = vadd.f32 %v1738, %v1752
    %v1760 = vadd.f32 %v1739, %v1753
    %v1761 = vadd.f32 %v1740, %v1754
    %v1762 = vadd.f32 %v1741, %v1755
    %v1763 = vadd.f32 %v1424, %v1656
    %v1764 = vadd.f32 %v1427, %v1656
    %v1765 = vadd.f32 %v1430, %v1656
    %v1766 = vadd.f32 %v1433, %v1656
    %v1767 = vadd.f32 %v1436, %v1656
    %v1768 = vadd.f32 %v1439, %v1656
    %v1769 = vadd.f32 %v1442, %v1656
    %v1770 = vmax.f32 %v1763, 0.0
    %v1771 = vmax.f32 %v1764, 0.0
    %v1772 = vmax.f32 %v1765, 0.0
    %v1773 = vmax.f32 %v1766, 0.0
    %v1774 = vmax.f32 %v1767, 0.0
    %v1775 = vmax.f32 %v1768, 0.0
    %v1776 = vmax.f32 %v1769, 0.0
    %v1777 = vadd.f32 %v1756, %v1770
    %v1778 = vadd.f32 %v1757, %v1771
    %v1779 = vadd.f32 %v1758, %v1772
    %v1780 = vadd.f32 %v1759, %v1773
    %v1781 = vadd.f32 %v1760, %v1774
    %v1782 = vadd.f32 %v1761, %v1775
    %v1783 = vadd.f32 %v1762, %v1776
    %v1784 = vadd.f32 %v1445, %v1656
    %v1785 = vadd.f32 %v1448, %v1656
    %v1786 = vadd.f32 %v1451, %v1656
    %v1787 = vadd.f32 %v1454, %v1656
    %v1788 = vadd.f32 %v1457, %v1656
    %v1789 = vadd.f32 %v1460, %v1656
    %v1790 = vadd.f32 %v1463, %v1656
    %v1791 = vmax.f32 %v1784, 0.0
    %v1792 = vmax.f32 %v1785, 0.0
    %v1793 = vmax.f32 %v1786, 0.0
    %v1794 = vmax.f32 %v1787, 0.0
    %v1795 = vmax.f32 %v1788, 0.0
    %v1796 = vmax.f32 %v1789, 0.0
    %v1797 = vmax.f32 %v1790, 0.0
    %v1798 = vadd.f32 %v1777, %v1791
    %v1799 = vadd.f32 %v1778, %v1792
    %v1800 = vadd.f32 %v1779, %v1793
    %v1801 = vadd.f32 %v1780, %v1794
    %v1802 = vadd.f32 %v1781, %v1795
    %v1803 = vadd.f32 %v1782, %v1796
    %v1804 = vadd.f32 %v1783, %v1797
    %v1805 = vadd.f32 %v1466, %v1656
    %v1806 = vadd.f32 %v1469, %v1656
    %v1807 = vadd.f32 %v1472, %v1656
    %v1808 = vadd.f32 %v1475, %v1656
    %v1809 = vadd.f32 %v1478, %v1656
    %v1810 = vadd.f32 %v1481, %v1656
    %v1811 = vadd.f32 %v1484, %v1656
    %v1812 = vmax.f32 %v1805, 0.0
    %v1813 = vmax.f32 %v1806, 0.0
    %v1814 = vmax.f32 %v1807, 0.0
    %v1815 = vmax.f32 %v1808, 0.0
    %v1816 = vmax.f32 %v1809, 0.0
    %v1817 = vmax.f32 %v1810, 0.0
    %v1818 = vmax.f32 %v1811, 0.0
    %v1819 = vadd.f32 %v1798, %v1812
    %v1820 = vadd.f32 %v1799, %v1813
    %v1821 = vadd.f32 %v1800, %v1814
    %v1822 = vadd.f32 %v1801, %v1815
    %v1823 = vadd.f32 %v1802, %v1816
    %v1824 = vadd.f32 %v1803, %v1817
    %v1825 = vadd.f32 %v1804, %v1818
    %v1826 = vadd.f32 %v1487, %v1656
    %v1827 = vadd.f32 %v1490, %v1656
    %v1828 = vadd.f32 %v1493, %v1656
    %v1829 = vadd.f32 %v1496, %v1656
    %v1830 = vadd.f32 %v1499, %v1656
    %v1831 = vadd.f32 %v1502, %v1656
    %v1832 = vadd.f32 %v1505, %v1656
    %v1833 = vmax.f32 %v1826, 0.0
    %v1834 = vmax.f32 %v1827, 0.0
    %v1835 = vmax.f32 %v1828, 0.0
    %v1836 = vmax.f32 %v1829, 0.0
    %v1837 = vmax.f32 %v1830, 0.0
    %v1838 = vmax.f32 %v1831, 0.0
    %v1839 = vmax.f32 %v1832, 0.0
    %v1840 = vadd.f32 %v1819, %v1833
    %v1841 = vadd.f32 %v1820, %v1834
    %v1842 = vadd.f32 %v1821, %v1835
    %v1843 = vadd.f32 %v1822, %v1836
    %v1844 = vadd.f32 %v1823, %v1837
    %v1845 = vadd.f32 %v1824, %v1838
    %v1846 = vadd.f32 %v1825, %v1839
    %v1847 = vadd.f32 %v1508, %v1656
    %v1848 = vadd.f32 %v1511, %v1656
    %v1849 = vadd.f32 %v1514, %v1656
    %v1850 = vadd.f32 %v1517, %v1656
    %v1851 = vadd.f32 %v1520, %v1656
    %v1852 = vadd.f32 %v1523, %v1656
    %v1853 = vadd.f32 %v1526, %v1656
    %v1854 = vmax.f32 %v1847, 0.0
    %v1855 = vmax.f32 %v1848, 0.0
    %v1856 = vmax.f32 %v1849, 0.0
    %v1857 = vmax.f32 %v1850, 0.0
    %v1858 = vmax.f32 %v1851, 0.0
    %v1859 = vmax.f32 %v1852, 0.0
    %v1860 = vmax.f32 %v1853, 0.0
    %v1861 = vadd.f32 %v1840, %v1854
    %v1862 = vadd.f32 %v1841, %v1855
    %v1863 = vadd.f32 %v1842, %v1856
    %v1864 = vadd.f32 %v1843, %v1857
    %v1865 = vadd.f32 %v1844, %v1858
    %v1866 = vadd.f32 %v1845, %v1859
    %v1867 = vadd.f32 %v1846, %v1860
    %v1868 = vadd.f32 %v1529, %v1656
    %v1869 = vadd.f32 %v1532, %v1656
    %v1870 = vadd.f32 %v1535, %v1656
    %v1871 = vadd.f32 %v1538, %v1656
    %v1872 = vadd.f32 %v1541, %v1656
    %v1873 = vadd.f32 %v1544, %v1656
    %v1874 = vadd.f32 %v1547, %v1656
    %v1875 = vmax.f32 %v1868, 0.0
    %v1876 = vmax.f32 %v1869, 0.0
    %v1877 = vmax.f32 %v1870, 0.0
    %v1878 = vmax.f32 %v1871, 0.0
    %v1879 = vmax.f32 %v1872, 0.0
    %v1880 = vmax.f32 %v1873, 0.0
    %v1881 = vmax.f32 %v1874, 0.0
    %v1882 = vadd.f32 %v1861, %v1875
    %v1883 = vadd.f32 %v1862, %v1876
    %v1884 = vadd.f32 %v1863, %v1877
    %v1885 = vadd.f32 %v1864, %v1878
    %v1886 = vadd.f32 %v1865, %v1879
    %v1887 = vadd.f32 %v1866, %v1880
    %v1888 = vadd.f32 %v1867, %v1881
    %v1889 = vadd.f32 %v1550, %v1656
    %v1890 = vadd.f32 %v1553, %v1656
    %v1891 = vadd.f32 %v1556, %v1656
    %v1892 = vadd.f32 %v1559, %v1656
    %v1893 = vadd.f32 %v1562, %v1656
    %v1894 = vadd.f32 %v1565, %v1656
    %v1895 = vadd.f32 %v1568, %v1656
    %v1896 = vmax.f32 %v1889, 0.0
    %v1897 = vmax.f32 %v1890, 0.0
    %v1898 = vmax.f32 %v1891, 0.0
    %v1899 = vmax.f32 %v1892, 0.0
    %v1900 = vmax.f32 %v1893, 0.0
    %v1901 = vmax.f32 %v1894, 0.0
    %v1902 = vmax.f32 %v1895, 0.0
    %v1903 = vadd.f32 %v1882, %v1896
    %v1904 = vadd.f32 %v1883, %v1897
    %v1905 = vadd.f32 %v1884, %v1898
    %v1906 = vadd.f32 %v1885, %v1899
    %v1907 = vadd.f32 %v1886, %v1900
    %v1908 = vadd.f32 %v1887, %v1901
    %v1909 = vadd.f32 %v1888, %v1902
    %v1910 = vadd.f32 %v1571, %v1656
    %v1911 = vadd.f32 %v1574, %v1656
    %v1912 = vadd.f32 %v1577, %v1656
    %v1913 = vadd.f32 %v1580, %v1656
    %v1914 = vadd.f32 %v1583, %v1656
    %v1915 = vadd.f32 %v1586, %v1656
    %v1916 = vadd.f32 %v1589, %v1656
    %v1917 = vmax.f32 %v1910, 0.0
    %v1918 = vmax.f32 %v1911, 0.0
    %v1919 = vmax.f32 %v1912, 0.0
    %v1920 = vmax.f32 %v1913, 0.0
    %v1921 = vmax.f32 %v1914, 0.0
    %v1922 = vmax.f32 %v1915, 0.0
    %v1923 = vmax.f32 %v1916, 0.0
    %v1924 = vadd.f32 %v1903, %v1917
    %v1925 = vadd.f32 %v1904, %v1918
    %v1926 = vadd.f32 %v1905, %v1919
    %v1927 = vadd.f32 %v1906, %v1920
    %v1928 = vadd.f32 %v1907, %v1921
    %v1929 = vadd.f32 %v1908, %v1922
    %v1930 = vadd.f32 %v1909, %v1923
    %v1931 = vadd.f32 %v1592, %v1656
    %v1932 = vadd.f32 %v1595, %v1656
    %v1933 = vadd.f32 %v1598, %v1656
    %v1934 = vadd.f32 %v1601, %v1656
    %v1935 = vadd.f32 %v1604, %v1656
    %v1936 = vadd.f32 %v1607, %v1656
    %v1937 = vadd.f32 %v1610, %v1656
    %v1938 = vmax.f32 %v1931, 0.0
    %v1939 = vmax.f32 %v1932, 0.0
    %v1940 = vmax.f32 %v1933, 0.0
    %v1941 = vmax.f32 %v1934, 0.0
    %v1942 = vmax.f32 %v1935, 0.0
    %v1943 = vmax.f32 %v1936, 0.0
    %v1944 = vmax.f32 %v1937, 0.0
    %v1945 = vadd.f32 %v1924, %v1938
    %v1946 = vadd.f32 %v1925, %v1939
    %v1947 = vadd.f32 %v1926, %v1940
    %v1948 = vadd.f32 %v1927, %v1941
    %v1949 = vadd.f32 %v1928, %v1942
    %v1950 = vadd.f32 %v1929, %v1943
    %v1951 = vadd.f32 %v1930, %v1944
    %v1952 = vadd.f32 %v1613, %v1656
    %v1953 = vadd.f32 %v1616, %v1656
    %v1954 = vadd.f32 %v1619, %v1656
    %v1955 = vadd.f32 %v1622, %v1656
    %v1956 = vadd.f32 %v1625, %v1656
    %v1957 = vadd.f32 %v1628, %v1656
    %v1958 = vadd.f32 %v1631, %v1656
    %v1959 = vmax.f32 %v1952, 0.0
    %v1960 = vmax.f32 %v1953, 0.0
    %v1961 = vmax.f32 %v1954, 0.0
    %v1962 = vmax.f32 %v1955, 0.0
    %v1963 = vmax.f32 %v1956, 0.0
    %v1964 = vmax.f32 %v1957, 0.0
    %v1965 = vmax.f32 %v1958, 0.0
    %v1966 = vadd.f32 %v1945, %v1959
    %v1967 = vadd.f32 %v1946, %v1960
    %v1968 = vadd.f32 %v1947, %v1961
    %v1969 = vadd.f32 %v1948, %v1962
    %v1970 = vadd.f32 %v1949, %v1963
    %v1971 = vadd.f32 %v1950, %v1964
    %v1972 = vadd.f32 %v1951, %v1965
    %v1973 = vadd.f32 %v1634, %v1656
    %v1974 = vadd.f32 %v1637, %v1656
    %v1975 = vadd.f32 %v1640, %v1656
    %v1976 = vadd.f32 %v1643, %v1656
    %v1977 = vadd.f32 %v1646, %v1656
    %v1978 = vadd.f32 %v1649, %v1656
    %v1979 = vadd.f32 %v1652, %v1656
    %v1980 = vmax.f32 %v1973, 0.0
    %v1981 = vmax.f32 %v1974, 0.0
    %v1982 = vmax.f32 %v1975, 0.0
    %v1983 = vmax.f32 %v1976, 0.0
    %v1984 = vmax.f32 %v1977, 0.0
    %v1985 = vmax.f32 %v1978, 0.0
    %v1986 = vmax.f32 %v1979, 0.0
    %v1987 = vadd.f32 %v1966, %v1980
    %v1988 = vadd.f32 %v1967, %v1981
    %v1989 = vadd.f32 %v1968, %v1982
    %v1990 = vadd.f32 %v1969, %v1983
    %v1991 = vadd.f32 %v1970, %v1984
    %v1992 = vadd.f32 %v1971, %v1985
    %v1993 = vadd.f32 %v1972, %v1986
    %v1994 = vmul.f32 %v1987, 0.0625
    %v1995 = vmul.f32 %v1988, 0.0625
    %v1996 = vmul.f32 %v1989, 0.0625
    %v1997 = vmul.f32 %v1990, 0.0625
    %v1998 = vmul.f32 %v1991, 0.0625
    %v1999 = vmul.f32 %v1992, 0.0625
    %v2000 = vmul.f32 %v1993, 0.0625
    %vm2001 = vcmask 523264
    %2002 = vst.msk [vmem:[#allocation3] sm:$0xff] %vm2001, %v1994
    %2003 = vst.msk [vmem:[#allocation3 + $0x8] sm:$0xff] %vm2001, %v1995
    %2004 = vst.msk [vmem:[#allocation3 + $0x10] sm:$0xff] %vm2001, %v1996
    %2005 = vst.msk [vmem:[#allocation3 + $0x18] sm:$0xff] %vm2001, %v1997
    %2006 = vst.msk [vmem:[#allocation3 + $0x20] sm:$0xff] %vm2001, %v1998
    %2007 = vst.msk [vmem:[#allocation3 + $0x28] sm:$0xff] %vm2001, %v1999
    %2008 = vst.msk [vmem:[#allocation3 + $0x30] sm:$0xff] %vm2001, %v2000
    %v2009 = vld [vmem:[#allocation3] sm:$0x3]
    %vm2010 = vcmask 517120
    %2011 = vst.msk [vmem:[#allocation4] sm:$0x3] %vm2010, %v2009
    %v2012 = vld [vmem:[#allocation3 + $0x2] sm:$0x3]
    %2014 = vrot.lane.b32.xlu0 %v2012, 64
    %v2015 = vpop.permute.xlu0 %2014
    %vm2017 = vcmask 1041920
    %2018 = vst.msk [vmem:[#allocation4] sm:$0x3] %vm2017, %v2015
    %v2019 = vld [vmem:[#allocation3 + $0x4] sm:$0x3]
    %2020 = vst.msk [vmem:[#allocation4 + $0x2] sm:$0x3] %vm2010, %v2019
    %v2021 = vld [vmem:[#allocation3 + $0x6] sm:$0x3]
    %2023 = vrot.lane.b32.xlu0 %v2021, 64
    %v2024 = vpop.permute.xlu0 %2023
    %2026 = vst.msk [vmem:[#allocation4 + $0x2] sm:$0x3] %vm2017, %v2024
    %v2027 = vld [vmem:[#allocation3 + $0x8] sm:$0x3]
    %2028 = vst.msk [vmem:[#allocation4 + $0x4] sm:$0x3] %vm2010, %v2027
    %v2029 = vld [vmem:[#allocation3 + $0xa] sm:$0x3]
    %2031 = vrot.lane.b32.xlu0 %v2029, 64
    %v2032 = vpop.permute.xlu0 %2031
    %2034 = vst.msk [vmem:[#allocation4 + $0x4] sm:$0x3] %vm2017, %v2032
    %v2035 = vld [vmem:[#allocation3 + $0xc] sm:$0x3]
    %2036 = vst.msk [vmem:[#allocation4 + $0x6] sm:$0x3] %vm2010, %v2035
    %v2037 = vld [vmem:[#allocation3 + $0xe] sm:$0x3]
    %2039 = vrot.lane.b32.xlu0 %v2037, 64
    %v2040 = vpop.permute.xlu0 %2039
    %2042 = vst.msk [vmem:[#allocation4 + $0x6] sm:$0x3] %vm2017, %v2040
    %v2043 = vld [vmem:[#allocation3 + $0x10] sm:$0x3]
    %2044 = vst.msk [vmem:[#allocation4 + $0x8] sm:$0x3] %vm2010, %v2043
    %v2045 = vld [vmem:[#allocation3 + $0x12] sm:$0x3]
    %2047 = vrot.lane.b32.xlu0 %v2045, 64
    %v2048 = vpop.permute.xlu0 %2047
    %2050 = vst.msk [vmem:[#allocation4 + $0x8] sm:$0x3] %vm2017, %v2048
    %v2051 = vld [vmem:[#allocation3 + $0x14] sm:$0x3]
    %2052 = vst.msk [vmem:[#allocation4 + $0xa] sm:$0x3] %vm2010, %v2051
    %v2053 = vld [vmem:[#allocation3 + $0x16] sm:$0x3]
    %2055 = vrot.lane.b32.xlu0 %v2053, 64
    %v2056 = vpop.permute.xlu0 %2055
    %2058 = vst.msk [vmem:[#allocation4 + $0xa] sm:$0x3] %vm2017, %v2056
    %v2059 = vld [vmem:[#allocation3 + $0x18] sm:$0x3]
    %2060 = vst.msk [vmem:[#allocation4 + $0xc] sm:$0x3] %vm2010, %v2059
    %v2061 = vld [vmem:[#allocation3 + $0x1a] sm:$0x3]
    %2063 = vrot.lane.b32.xlu0 %v2061, 64
    %v2064 = vpop.permute.xlu0 %2063
    %2066 = vst.msk [vmem:[#allocation4 + $0xc] sm:$0x3] %vm2017, %v2064
    %v2067 = vld [vmem:[#allocation3 + $0x1c] sm:$0x3]
    %2068 = vst.msk [vmem:[#allocation4 + $0xe] sm:$0x3] %vm2010, %v2067
    %v2069 = vld [vmem:[#allocation3 + $0x1e] sm:$0x3]
    %2071 = vrot.lane.b32.xlu0 %v2069, 64
    %v2072 = vpop.permute.xlu0 %2071
    %2074 = vst.msk [vmem:[#allocation4 + $0xe] sm:$0x3] %vm2017, %v2072
    %v2075 = vld [vmem:[#allocation3 + $0x20] sm:$0x3]
    %2076 = vst.msk [vmem:[#allocation4 + $0x10] sm:$0x3] %vm2010, %v2075
    %v2077 = vld [vmem:[#allocation3 + $0x22] sm:$0x3]
    %2079 = vrot.lane.b32.xlu0 %v2077, 64
    %v2080 = vpop.permute.xlu0 %2079
    %2082 = vst.msk [vmem:[#allocation4 + $0x10] sm:$0x3] %vm2017, %v2080
    %v2083 = vld [vmem:[#allocation3 + $0x24] sm:$0x3]
    %2084 = vst.msk [vmem:[#allocation4 + $0x12] sm:$0x3] %vm2010, %v2083
    %v2085 = vld [vmem:[#allocation3 + $0x26] sm:$0x3]
    %2087 = vrot.lane.b32.xlu0 %v2085, 64
    %v2088 = vpop.permute.xlu0 %2087
    %2090 = vst.msk [vmem:[#allocation4 + $0x12] sm:$0x3] %vm2017, %v2088
    %v2091 = vld [vmem:[#allocation3 + $0x28] sm:$0x3]
    %2092 = vst.msk [vmem:[#allocation4 + $0x14] sm:$0x3] %vm2010, %v2091
    %v2093 = vld [vmem:[#allocation3 + $0x2a] sm:$0x3]
    %2095 = vrot.lane.b32.xlu0 %v2093, 64
    %v2096 = vpop.permute.xlu0 %2095
    %2098 = vst.msk [vmem:[#allocation4 + $0x14] sm:$0x3] %vm2017, %v2096
    %v2099 = vld [vmem:[#allocation3 + $0x2c] sm:$0x3]
    %2100 = vst.msk [vmem:[#allocation4 + $0x16] sm:$0x3] %vm2010, %v2099
    %v2101 = vld [vmem:[#allocation3 + $0x2e] sm:$0x3]
    %2103 = vrot.lane.b32.xlu0 %v2101, 64
    %v2104 = vpop.permute.xlu0 %2103
    %2106 = vst.msk [vmem:[#allocation4 + $0x16] sm:$0x3] %vm2017, %v2104
    %v2107 = vld [vmem:[#allocation3 + $0x30] sm:$0x3]
    %2108 = vst.msk [vmem:[#allocation4 + $0x18] sm:$0x3] %vm2010, %v2107
    %s2109 = smul.u32 4, 200
    %s2110 = smul.u32 %s2109, 4
    %s2111 = sshll.u32 %s2110, 4
    %2112 = dma.done [#allocation5], %s2111
    %v2113 = vld [vmem:[#allocation4] sm:$0xff]
    %v2114 = vld [vmem:[#allocation4 + $0x8] sm:$0xff]
    %v2115 = vld [vmem:[#allocation4 + $0x10] sm:$0xff]
    %v2116 = vld [vmem:[#allocation4 + $0x18] sm:$0x3]
    %2121 = vst [vmem:[#allocation1] ss:$4 sm:$0xff] %v2113
    %s2122 = scalar_lea.vmem [#allocation1], 32
    %2123 = vst [vmem:[%s2122] ss:$4 sm:$0xff] %v2114
    %v2124 = vld.sshfl [vmem:[#allocation1] sm:$0xff pattern:$0x73625140]
    %v2125 = vld.sshfl [vmem:[#allocation1 + $0x8] sm:$0xff pattern:$0x73625140]
    %v2126 = vld.sshfl [vmem:[#allocation1 + $0x10] sm:$0xff pattern:$0x73625140]
    %v2127 = vld.sshfl [vmem:[#allocation1 + $0x18] sm:$0xff pattern:$0x73625140]
    %v2128 = vld.sshfl [vmem:[#allocation1 + $0x20] sm:$0xff pattern:$0x73625140]
    %v2129 = vld.sshfl [vmem:[#allocation1 + $0x28] sm:$0xff pattern:$0x73625140]
    %v2130 = vld.sshfl [vmem:[#allocation1 + $0x30] sm:$0xff pattern:$0x73625140]
    %v2131 = vld.sshfl [vmem:[#allocation1 + $0x38] sm:$0xff pattern:$0x73625140]
    %2132 = vst [vmem:[#allocation1] ss:$4 sm:$0xff] %v2115
    %2133 = vst [vmem:[%s2122] ss:$4 sm:$0xff] %v2116
    %v2134 = vld.sshfl [vmem:[#allocation1] sm:$0xff pattern:$0x73625140]
    %v2135 = vld.sshfl [vmem:[#allocation1 + $0x8] sm:$0xff pattern:$0x73625140]
    %v2136 = vld.sshfl [vmem:[#allocation1 + $0x10] sm:$0xff pattern:$0x73625140]
    %v2137 = vld.sshfl [vmem:[#allocation1 + $0x18] sm:$0xff pattern:$0x73625140]
    %v2138 = vld.sshfl [vmem:[#allocation1 + $0x20] sm:$0xff pattern:$0x73625140]
    %v2152 = vpack.c.bf16 %v2124, %v2124
    %v2153 = vpack.c.bf16 %v2125, %v2125
    %v2154 = vpack.c.bf16 %v2126, %v2126
    %v2155 = vpack.c.bf16 %v2127, %v2127
    %v2156 = vpack.c.bf16 %v2128, %v2128
    %v2157 = vpack.c.bf16 %v2129, %v2129
    %v2158 = vpack.c.bf16 %v2130, %v2130
    %v2159 = vpack.c.bf16 %v2131, %v2131
    %v2160 = vpack.c.bf16 %v2134, %v2134
    %v2161 = vpack.c.bf16 %v2135, %v2135
    %v2162 = vpack.c.bf16 %v2136, %v2136
    %v2163 = vpack.c.bf16 %v2137, %v2137
    %v2164 = vpack.c.bf16 %v2138, %v2138
    %v2165 = vld [vmem:[#allocation2] sm:$0xff]
    %v2166 = vld [vmem:[#allocation2 + $0x8] sm:$0xff]
    %v2167 = vld [vmem:[#allocation2 + $0x10] sm:$0xff]
    %v2168 = vld [vmem:[#allocation2 + $0x18] sm:$0xff]
    %v2169 = vld [vmem:[#allocation2 + $0x20] sm:$0xff]
    %v2170 = vld [vmem:[#allocation2 + $0x28] sm:$0xff]
    %v2171 = vld [vmem:[#allocation2 + $0x30] sm:$0xff]
    %v2172 = vld [vmem:[#allocation2 + $0x38] sm:$0xff]
    %v2173 = vld [vmem:[#allocation2 + $0x40] sm:$0xff]
    %v2174 = vld [vmem:[#allocation2 + $0x48] sm:$0xff]
    %v2175 = vld [vmem:[#allocation2 + $0x50] sm:$0xff]
    %v2176 = vld [vmem:[#allocation2 + $0x58] sm:$0xff]
    %v2177 = vld [vmem:[#allocation2 + $0x60] sm:$0xff]
    %v2178 = vld [vmem:[#allocation2 + $0x68] sm:$0xff]
    %v2179 = vld [vmem:[#allocation2 + $0x70] sm:$0xff]
    %v2180 = vld [vmem:[#allocation2 + $0x78] sm:$0xff]
    %v2181 = vld [vmem:[#allocation2 + $0x80] sm:$0xff]
    %v2182 = vld [vmem:[#allocation2 + $0x88] sm:$0xff]
    %v2183 = vld [vmem:[#allocation2 + $0x90] sm:$0xff]
    %v2184 = vld [vmem:[#allocation2 + $0x98] sm:$0xff]
    %v2185 = vld [vmem:[#allocation2 + $0xa0] sm:$0xff]
    %v2186 = vld [vmem:[#allocation2 + $0xa8] sm:$0xff]
    %v2187 = vld [vmem:[#allocation2 + $0xb0] sm:$0xff]
    %v2188 = vld [vmem:[#allocation2 + $0xb8] sm:$0xff]
    %v2189 = vld [vmem:[#allocation2 + $0xc0] sm:$0xff]
    %v2190 = vld [vmem:[#allocation2 + $0xc8] sm:$0xff]
    %v2191 = vld [vmem:[#allocation2 + $0xd0] sm:$0xff]
    %v2192 = vld [vmem:[#allocation2 + $0xd8] sm:$0xff]
    %v2193 = vld [vmem:[#allocation2 + $0xe0] sm:$0xff]
    %v2194 = vld [vmem:[#allocation2 + $0xe8] sm:$0xff]
    %v2195 = vld [vmem:[#allocation2 + $0xf0] sm:$0xff]
    %v2196 = vld [vmem:[#allocation2 + $0xf8] sm:$0xff]
    %v2197 = vld [vmem:[#allocation2 + $0x100] sm:$0xff]
    %v2198 = vld [vmem:[#allocation2 + $0x108] sm:$0xff]
    %v2199 = vld [vmem:[#allocation2 + $0x110] sm:$0xff]
    %v2200 = vld [vmem:[#allocation2 + $0x118] sm:$0xff]
    %v2201 = vld [vmem:[#allocation2 + $0x120] sm:$0xff]
    %v2202 = vld [vmem:[#allocation2 + $0x128] sm:$0xff]
    %v2203 = vld [vmem:[#allocation2 + $0x130] sm:$0xff]
    %v2204 = vld [vmem:[#allocation2 + $0x138] sm:$0xff]
    %v2205 = vld [vmem:[#allocation2 + $0x140] sm:$0xff]
    %v2206 = vld [vmem:[#allocation2 + $0x148] sm:$0xff]
    %v2207 = vld [vmem:[#allocation2 + $0x150] sm:$0xff]
    %v2208 = vld [vmem:[#allocation2 + $0x158] sm:$0xff]
    %v2209 = vld [vmem:[#allocation2 + $0x160] sm:$0xff]
    %v2210 = vld [vmem:[#allocation2 + $0x168] sm:$0xff]
    %v2211 = vld [vmem:[#allocation2 + $0x170] sm:$0xff]
    %v2212 = vld [vmem:[#allocation2 + $0x178] sm:$0xff]
    %v2213 = vld [vmem:[#allocation2 + $0x180] sm:$0xff]
    %v2214 = vld [vmem:[#allocation2 + $0x188] sm:$0xff]
    %v2215 = vld [vmem:[#allocation2 + $0x190] sm:$0xff]
    %v2216 = vld [vmem:[#allocation2 + $0x198] sm:$0xff]
    %v2217 = vld [vmem:[#allocation2 + $0x1a0] sm:$0xff]
    %v2218 = vld [vmem:[#allocation2 + $0x1a8] sm:$0xff]
    %v2219 = vld [vmem:[#allocation2 + $0x1b0] sm:$0xff]
    %v2220 = vld [vmem:[#allocation2 + $0x1b8] sm:$0xff]
    %v2221 = vld [vmem:[#allocation2 + $0x1c0] sm:$0xff]
    %v2222 = vld [vmem:[#allocation2 + $0x1c8] sm:$0xff]
    %v2223 = vld [vmem:[#allocation2 + $0x1d0] sm:$0xff]
    %v2224 = vld [vmem:[#allocation2 + $0x1d8] sm:$0xff]
    %v2225 = vld [vmem:[#allocation2 + $0x1e0] sm:$0xff]
    %v2226 = vld [vmem:[#allocation2 + $0x1e8] sm:$0xff]
    %v2227 = vld [vmem:[#allocation2 + $0x1f0] sm:$0xff]
    %v2228 = vld [vmem:[#allocation2 + $0x1f8] sm:$0xff]
    %v2229 = vld [vmem:[#allocation2 + $0x200] sm:$0xff]
    %v2230 = vld [vmem:[#allocation2 + $0x208] sm:$0xff]
    %v2231 = vld [vmem:[#allocation2 + $0x210] sm:$0xff]
    %v2232 = vld [vmem:[#allocation2 + $0x218] sm:$0xff]
    %v2233 = vld [vmem:[#allocation2 + $0x220] sm:$0xff]
    %v2234 = vld [vmem:[#allocation2 + $0x228] sm:$0xff]
    %v2235 = vld [vmem:[#allocation2 + $0x230] sm:$0xff]
    %v2236 = vld [vmem:[#allocation2 + $0x238] sm:$0xff]
    %v2237 = vld [vmem:[#allocation2 + $0x240] sm:$0xff]
    %v2238 = vld [vmem:[#allocation2 + $0x248] sm:$0xff]
    %v2239 = vld [vmem:[#allocation2 + $0x250] sm:$0xff]
    %v2240 = vld [vmem:[#allocation2 + $0x258] sm:$0xff]
    %v2241 = vld [vmem:[#allocation2 + $0x260] sm:$0xff]
    %v2242 = vld [vmem:[#allocation2 + $0x268] sm:$0xff]
    %v2243 = vld [vmem:[#allocation2 + $0x270] sm:$0xff]
    %v2244 = vld [vmem:[#allocation2 + $0x278] sm:$0xff]
    %v2245 = vld [vmem:[#allocation2 + $0x280] sm:$0xff]
    %v2246 = vld [vmem:[#allocation2 + $0x288] sm:$0xff]
    %v2247 = vld [vmem:[#allocation2 + $0x290] sm:$0xff]
    %v2248 = vld [vmem:[#allocation2 + $0x298] sm:$0xff]
    %v2249 = vld [vmem:[#allocation2 + $0x2a0] sm:$0xff]
    %v2250 = vld [vmem:[#allocation2 + $0x2a8] sm:$0xff]
    %v2251 = vld [vmem:[#allocation2 + $0x2b0] sm:$0xff]
    %v2252 = vld [vmem:[#allocation2 + $0x2b8] sm:$0xff]
    %v2253 = vld [vmem:[#allocation2 + $0x2c0] sm:$0xff]
    %v2254 = vld [vmem:[#allocation2 + $0x2c8] sm:$0xff]
    %v2255 = vld [vmem:[#allocation2 + $0x2d0] sm:$0xff]
    %v2256 = vld [vmem:[#allocation2 + $0x2d8] sm:$0xff]
    %v2257 = vld [vmem:[#allocation2 + $0x2e0] sm:$0xff]
    %v2258 = vld [vmem:[#allocation2 + $0x2e8] sm:$0xff]
    %v2259 = vld [vmem:[#allocation2 + $0x2f0] sm:$0xff]
    %v2260 = vld [vmem:[#allocation2 + $0x2f8] sm:$0xff]
    %v2261 = vld [vmem:[#allocation2 + $0x300] sm:$0xff]
    %v2262 = vld [vmem:[#allocation2 + $0x308] sm:$0xff]
    %v2263 = vld [vmem:[#allocation2 + $0x310] sm:$0xff]
    %v2264 = vld [vmem:[#allocation2 + $0x318] sm:$0xff]
    %v2265 = vld [vmem:[#allocation2 + $0x320] sm:$0xff]
    %v2266 = vld [vmem:[#allocation2 + $0x328] sm:$0xff]
    %v2267 = vld [vmem:[#allocation2 + $0x330] sm:$0xff]
    %v2268 = vld [vmem:[#allocation2 + $0x338] sm:$0xff]
    %v2269 = vld [vmem:[#allocation2 + $0x340] sm:$0xff]
    %v2270 = vld [vmem:[#allocation2 + $0x348] sm:$0xff]
    %v2271 = vld [vmem:[#allocation2 + $0x350] sm:$0xff]
    %v2272 = vld [vmem:[#allocation2 + $0x358] sm:$0xff]
    %v2273 = vld [vmem:[#allocation2 + $0x360] sm:$0xff]
    %v2274 = vld [vmem:[#allocation2 + $0x368] sm:$0xff]
    %v2275 = vld [vmem:[#allocation2 + $0x370] sm:$0xff]
    %v2276 = vld [vmem:[#allocation2 + $0x378] sm:$0xff]
    %v2277 = vld [vmem:[#allocation2 + $0x380] sm:$0xff]
    %v2278 = vld [vmem:[#allocation2 + $0x388] sm:$0xff]
    %v2279 = vld [vmem:[#allocation2 + $0x390] sm:$0xff]
    %v2280 = vld [vmem:[#allocation2 + $0x398] sm:$0xff]
    %v2281 = vld [vmem:[#allocation2 + $0x3a0] sm:$0xff]
    %v2282 = vld [vmem:[#allocation2 + $0x3a8] sm:$0xff]
    %v2283 = vld [vmem:[#allocation2 + $0x3b0] sm:$0xff]
    %v2284 = vld [vmem:[#allocation2 + $0x3b8] sm:$0xff]
    %v2285 = vld [vmem:[#allocation2 + $0x3c0] sm:$0xff]
    %v2286 = vld [vmem:[#allocation2 + $0x3c8] sm:$0xff]
    %v2287 = vld [vmem:[#allocation2 + $0x3d0] sm:$0xff]
    %v2288 = vld [vmem:[#allocation2 + $0x3d8] sm:$0xff]
    %v2289 = vld [vmem:[#allocation2 + $0x3e0] sm:$0xff]
    %v2290 = vld [vmem:[#allocation2 + $0x3e8] sm:$0xff]
    %v2291 = vld [vmem:[#allocation2 + $0x3f0] sm:$0xff]
    %v2292 = vld [vmem:[#allocation2 + $0x3f8] sm:$0xff]
    %v2293 = vld [vmem:[#allocation2 + $0x400] sm:$0xff]
    %v2294 = vld [vmem:[#allocation2 + $0x408] sm:$0xff]
    %v2295 = vld [vmem:[#allocation2 + $0x410] sm:$0xff]
    %v2296 = vld [vmem:[#allocation2 + $0x418] sm:$0xff]
    %v2297 = vld [vmem:[#allocation2 + $0x420] sm:$0xff]
    %v2298 = vld [vmem:[#allocation2 + $0x428] sm:$0xff]
    %v2299 = vld [vmem:[#allocation2 + $0x430] sm:$0xff]
    %v2300 = vld [vmem:[#allocation2 + $0x438] sm:$0xff]
    %v2301 = vld [vmem:[#allocation2 + $0x440] sm:$0xff]
    %v2302 = vld [vmem:[#allocation2 + $0x448] sm:$0xff]
    %v2303 = vld [vmem:[#allocation2 + $0x450] sm:$0xff]
    %v2304 = vld [vmem:[#allocation2 + $0x458] sm:$0xff]
    %v2305 = vld [vmem:[#allocation2 + $0x460] sm:$0xff]
    %v2306 = vld [vmem:[#allocation2 + $0x468] sm:$0xff]
    %v2307 = vld [vmem:[#allocation2 + $0x470] sm:$0xff]
    %v2308 = vld [vmem:[#allocation2 + $0x478] sm:$0xff]
    %v2309 = vld [vmem:[#allocation2 + $0x480] sm:$0xff]
    %v2310 = vld [vmem:[#allocation2 + $0x488] sm:$0xff]
    %v2311 = vld [vmem:[#allocation2 + $0x490] sm:$0xff]
    %v2312 = vld [vmem:[#allocation2 + $0x498] sm:$0xff]
    %v2313 = vld [vmem:[#allocation2 + $0x4a0] sm:$0xff]
    %v2314 = vld [vmem:[#allocation2 + $0x4a8] sm:$0xff]
    %v2315 = vld [vmem:[#allocation2 + $0x4b0] sm:$0xff]
    %v2316 = vld [vmem:[#allocation2 + $0x4b8] sm:$0xff]
    %v2317 = vld [vmem:[#allocation2 + $0x4c0] sm:$0xff]
    %v2318 = vld [vmem:[#allocation2 + $0x4c8] sm:$0xff]
    %v2319 = vld [vmem:[#allocation2 + $0x4d0] sm:$0xff]
    %v2320 = vld [vmem:[#allocation2 + $0x4d8] sm:$0xff]
    %v2321 = vld [vmem:[#allocation2 + $0x4e0] sm:$0xff]
    %v2322 = vld [vmem:[#allocation2 + $0x4e8] sm:$0xff]
    %v2323 = vld [vmem:[#allocation2 + $0x4f0] sm:$0xff]
    %v2324 = vld [vmem:[#allocation2 + $0x4f8] sm:$0xff]
    %v2325 = vld [vmem:[#allocation2 + $0x500] sm:$0xff]
    %v2326 = vld [vmem:[#allocation2 + $0x508] sm:$0xff]
    %v2327 = vld [vmem:[#allocation2 + $0x510] sm:$0xff]
    %v2328 = vld [vmem:[#allocation2 + $0x518] sm:$0xff]
    %v2329 = vld [vmem:[#allocation2 + $0x520] sm:$0xff]
    %v2330 = vld [vmem:[#allocation2 + $0x528] sm:$0xff]
    %v2331 = vld [vmem:[#allocation2 + $0x530] sm:$0xff]
    %v2332 = vld [vmem:[#allocation2 + $0x538] sm:$0xff]
    %v2333 = vld [vmem:[#allocation2 + $0x540] sm:$0xff]
    %v2334 = vld [vmem:[#allocation2 + $0x548] sm:$0xff]
    %v2335 = vld [vmem:[#allocation2 + $0x550] sm:$0xff]
    %v2336 = vld [vmem:[#allocation2 + $0x558] sm:$0xff]
    %v2337 = vld [vmem:[#allocation2 + $0x560] sm:$0xff]
    %v2338 = vld [vmem:[#allocation2 + $0x568] sm:$0xff]
    %v2339 = vld [vmem:[#allocation2 + $0x570] sm:$0xff]
    %v2340 = vld [vmem:[#allocation2 + $0x578] sm:$0xff]
    %v2341 = vld [vmem:[#allocation2 + $0x580] sm:$0xff]
    %v2342 = vld [vmem:[#allocation2 + $0x588] sm:$0xff]
    %v2343 = vld [vmem:[#allocation2 + $0x590] sm:$0xff]
    %v2344 = vld [vmem:[#allocation2 + $0x598] sm:$0xff]
    %v2345 = vld [vmem:[#allocation2 + $0x5a0] sm:$0xff]
    %v2346 = vld [vmem:[#allocation2 + $0x5a8] sm:$0xff]
    %v2347 = vld [vmem:[#allocation2 + $0x5b0] sm:$0xff]
    %v2348 = vld [vmem:[#allocation2 + $0x5b8] sm:$0xff]
    %v2349 = vld [vmem:[#allocation2 + $0x5c0] sm:$0xff]
    %v2350 = vld [vmem:[#allocation2 + $0x5c8] sm:$0xff]
    %v2351 = vld [vmem:[#allocation2 + $0x5d0] sm:$0xff]
    %v2352 = vld [vmem:[#allocation2 + $0x5d8] sm:$0xff]
    %v2353 = vld [vmem:[#allocation2 + $0x5e0] sm:$0xff]
    %v2354 = vld [vmem:[#allocation2 + $0x5e8] sm:$0xff]
    %v2355 = vld [vmem:[#allocation2 + $0x5f0] sm:$0xff]
    %v2356 = vld [vmem:[#allocation2 + $0x5f8] sm:$0xff]
    %v2357 = vld [vmem:[#allocation2 + $0x600] sm:$0xff]
    %v2358 = vld [vmem:[#allocation2 + $0x608] sm:$0xff]
    %v2359 = vld [vmem:[#allocation2 + $0x610] sm:$0xff]
    %v2360 = vld [vmem:[#allocation2 + $0x618] sm:$0xff]
    %v2361 = vld [vmem:[#allocation2 + $0x620] sm:$0xff]
    %v2362 = vld [vmem:[#allocation2 + $0x628] sm:$0xff]
    %v2363 = vld [vmem:[#allocation2 + $0x630] sm:$0xff]
    %v2364 = vld [vmem:[#allocation2 + $0x638] sm:$0xff]
    %v2365 = vld [vmem:[#allocation2 + $0x640] sm:$0xff]
    %v2366 = vld [vmem:[#allocation2 + $0x648] sm:$0xff]
    %v2367 = vld [vmem:[#allocation2 + $0x650] sm:$0xff]
    %v2368 = vld [vmem:[#allocation2 + $0x658] sm:$0xff]
    %v2369 = vld [vmem:[#allocation2 + $0x660] sm:$0xff]
    %v2370 = vld [vmem:[#allocation2 + $0x668] sm:$0xff]
    %v2371 = vld [vmem:[#allocation2 + $0x670] sm:$0xff]
    %v2372 = vld [vmem:[#allocation2 + $0x678] sm:$0xff]
    %v2373 = vld [vmem:[#allocation2 + $0x680] sm:$0xff]
    %v2374 = vld [vmem:[#allocation2 + $0x688] sm:$0xff]
    %v2375 = vld [vmem:[#allocation2 + $0x690] sm:$0xff]
    %v2376 = vld [vmem:[#allocation2 + $0x698] sm:$0xff]
    %v2377 = vld [vmem:[#allocation2 + $0x6a0] sm:$0xff]
    %v2378 = vld [vmem:[#allocation2 + $0x6a8] sm:$0xff]
    %v2379 = vld [vmem:[#allocation2 + $0x6b0] sm:$0xff]
    %v2380 = vld [vmem:[#allocation2 + $0x6b8] sm:$0xff]
    %v2381 = vld [vmem:[#allocation2 + $0x6c0] sm:$0xff]
    %v2382 = vld [vmem:[#allocation2 + $0x6c8] sm:$0xff]
    %v2383 = vld [vmem:[#allocation2 + $0x6d0] sm:$0xff]
    %v2384 = vld [vmem:[#allocation2 + $0x6d8] sm:$0xff]
    %v2385 = vld [vmem:[#allocation2 + $0x6e0] sm:$0xff]
    %v2386 = vld [vmem:[#allocation2 + $0x6e8] sm:$0xff]
    %v2387 = vld [vmem:[#allocation2 + $0x6f0] sm:$0xff]
    %v2388 = vld [vmem:[#allocation2 + $0x6f8] sm:$0xff]
    %v2389 = vld [vmem:[#allocation2 + $0x700] sm:$0xff]
    %v2390 = vld [vmem:[#allocation2 + $0x708] sm:$0xff]
    %v2391 = vld [vmem:[#allocation2 + $0x710] sm:$0xff]
    %v2392 = vld [vmem:[#allocation2 + $0x718] sm:$0xff]
    %v2393 = vld [vmem:[#allocation2 + $0x720] sm:$0xff]
    %v2394 = vld [vmem:[#allocation2 + $0x728] sm:$0xff]
    %v2395 = vld [vmem:[#allocation2 + $0x730] sm:$0xff]
    %v2396 = vld [vmem:[#allocation2 + $0x738] sm:$0xff]
    %v2397 = vld [vmem:[#allocation2 + $0x740] sm:$0xff]
    %v2398 = vld [vmem:[#allocation2 + $0x748] sm:$0xff]
    %v2399 = vld [vmem:[#allocation2 + $0x750] sm:$0xff]
    %v2400 = vld [vmem:[#allocation2 + $0x758] sm:$0xff]
    %v2401 = vld [vmem:[#allocation2 + $0x760] sm:$0xff]
    %v2402 = vld [vmem:[#allocation2 + $0x768] sm:$0xff]
    %v2403 = vld [vmem:[#allocation2 + $0x770] sm:$0xff]
    %v2404 = vld [vmem:[#allocation2 + $0x778] sm:$0xff]
    %v2405 = vld [vmem:[#allocation2 + $0x780] sm:$0xff]
    %v2406 = vld [vmem:[#allocation2 + $0x788] sm:$0xff]
    %v2407 = vld [vmem:[#allocation2 + $0x790] sm:$0xff]
    %v2408 = vld [vmem:[#allocation2 + $0x798] sm:$0xff]
    %v2409 = vld [vmem:[#allocation2 + $0x7a0] sm:$0xff]
    %v2410 = vld [vmem:[#allocation2 + $0x7a8] sm:$0xff]
    %v2411 = vld [vmem:[#allocation2 + $0x7b0] sm:$0xff]
    %v2412 = vld [vmem:[#allocation2 + $0x7b8] sm:$0xff]
    %v2413 = vld [vmem:[#allocation2 + $0x7c0] sm:$0xff]
    %v2414 = vld [vmem:[#allocation2 + $0x7c8] sm:$0xff]
    %v2415 = vld [vmem:[#allocation2 + $0x7d0] sm:$0xff]
    %v2416 = vld [vmem:[#allocation2 + $0x7d8] sm:$0xff]
    %v2417 = vld [vmem:[#allocation2 + $0x7e0] sm:$0xff]
    %v2418 = vld [vmem:[#allocation2 + $0x7e8] sm:$0xff]
    %v2419 = vld [vmem:[#allocation2 + $0x7f0] sm:$0xff]
    %v2420 = vld [vmem:[#allocation2 + $0x7f8] sm:$0xff]
    %v2421 = vld [vmem:[#allocation2 + $0x800] sm:$0xff]
    %v2422 = vld [vmem:[#allocation2 + $0x808] sm:$0xff]
    %v2423 = vld [vmem:[#allocation2 + $0x810] sm:$0xff]
    %v2424 = vld [vmem:[#allocation2 + $0x818] sm:$0xff]
    %v2425 = vld [vmem:[#allocation2 + $0x820] sm:$0xff]
    %v2426 = vld [vmem:[#allocation2 + $0x828] sm:$0xff]
    %v2427 = vld [vmem:[#allocation2 + $0x830] sm:$0xff]
    %v2428 = vld [vmem:[#allocation2 + $0x838] sm:$0xff]
    %v2429 = vld [vmem:[#allocation2 + $0x840] sm:$0xff]
    %v2430 = vld [vmem:[#allocation2 + $0x848] sm:$0xff]
    %v2431 = vld [vmem:[#allocation2 + $0x850] sm:$0xff]
    %v2432 = vld [vmem:[#allocation2 + $0x858] sm:$0xff]
    %v2433 = vld [vmem:[#allocation2 + $0x860] sm:$0xff]
    %v2434 = vld [vmem:[#allocation2 + $0x868] sm:$0xff]
    %v2435 = vld [vmem:[#allocation2 + $0x870] sm:$0xff]
    %v2436 = vld [vmem:[#allocation2 + $0x878] sm:$0xff]
    %v2437 = vld [vmem:[#allocation2 + $0x880] sm:$0xff]
    %v2438 = vld [vmem:[#allocation2 + $0x888] sm:$0xff]
    %v2439 = vld [vmem:[#allocation2 + $0x890] sm:$0xff]
    %v2440 = vld [vmem:[#allocation2 + $0x898] sm:$0xff]
    %v2441 = vld [vmem:[#allocation2 + $0x8a0] sm:$0xff]
    %v2442 = vld [vmem:[#allocation2 + $0x8a8] sm:$0xff]
    %v2443 = vld [vmem:[#allocation2 + $0x8b0] sm:$0xff]
    %v2444 = vld [vmem:[#allocation2 + $0x8b8] sm:$0xff]
    %v2445 = vld [vmem:[#allocation2 + $0x8c0] sm:$0xff]
    %v2446 = vld [vmem:[#allocation2 + $0x8c8] sm:$0xff]
    %v2447 = vld [vmem:[#allocation2 + $0x8d0] sm:$0xff]
    %v2448 = vld [vmem:[#allocation2 + $0x8d8] sm:$0xff]
    %v2449 = vld [vmem:[#allocation2 + $0x8e0] sm:$0xff]
    %v2450 = vld [vmem:[#allocation2 + $0x8e8] sm:$0xff]
    %v2451 = vld [vmem:[#allocation2 + $0x8f0] sm:$0xff]
    %v2452 = vld [vmem:[#allocation2 + $0x8f8] sm:$0xff]
    %v2453 = vld [vmem:[#allocation2 + $0x900] sm:$0xff]
    %v2454 = vld [vmem:[#allocation2 + $0x908] sm:$0xff]
    %v2455 = vld [vmem:[#allocation2 + $0x910] sm:$0xff]
    %v2456 = vld [vmem:[#allocation2 + $0x918] sm:$0xff]
    %v2457 = vld [vmem:[#allocation2 + $0x920] sm:$0xff]
    %v2458 = vld [vmem:[#allocation2 + $0x928] sm:$0xff]
    %v2459 = vld [vmem:[#allocation2 + $0x930] sm:$0xff]
    %v2460 = vld [vmem:[#allocation2 + $0x938] sm:$0xff]
    %v2461 = vld [vmem:[#allocation2 + $0x940] sm:$0xff]
    %v2462 = vld [vmem:[#allocation2 + $0x948] sm:$0xff]
    %v2463 = vld [vmem:[#allocation2 + $0x950] sm:$0xff]
    %v2464 = vld [vmem:[#allocation2 + $0x958] sm:$0xff]
    %v2465 = vld [vmem:[#allocation2 + $0x960] sm:$0xff]
    %v2466 = vld [vmem:[#allocation2 + $0x968] sm:$0xff]
    %v2467 = vld [vmem:[#allocation2 + $0x970] sm:$0xff]
    %v2468 = vld [vmem:[#allocation2 + $0x978] sm:$0xff]
    %v2469 = vld [vmem:[#allocation2 + $0x980] sm:$0xff]
    %v2470 = vld [vmem:[#allocation2 + $0x988] sm:$0xff]
    %v2471 = vld [vmem:[#allocation2 + $0x990] sm:$0xff]
    %v2472 = vld [vmem:[#allocation2 + $0x998] sm:$0xff]
    %v2473 = vld [vmem:[#allocation2 + $0x9a0] sm:$0xff]
    %v2474 = vld [vmem:[#allocation2 + $0x9a8] sm:$0xff]
    %v2475 = vld [vmem:[#allocation2 + $0x9b0] sm:$0xff]
    %v2476 = vld [vmem:[#allocation2 + $0x9b8] sm:$0xff]
    %v2477 = vld [vmem:[#allocation2 + $0x9c0] sm:$0xff]
    %v2478 = vld [vmem:[#allocation2 + $0x9c8] sm:$0xff]
    %v2479 = vld [vmem:[#allocation2 + $0x9d0] sm:$0xff]
    %v2480 = vld [vmem:[#allocation2 + $0x9d8] sm:$0xff]
    %v2481 = vld [vmem:[#allocation2 + $0x9e0] sm:$0xff]
    %v2482 = vld [vmem:[#allocation2 + $0x9e8] sm:$0xff]
    %v2483 = vld [vmem:[#allocation2 + $0x9f0] sm:$0xff]
    %v2484 = vld [vmem:[#allocation2 + $0x9f8] sm:$0xff]
    %v2485 = vld [vmem:[#allocation2 + $0xa00] sm:$0xff]
    %v2486 = vld [vmem:[#allocation2 + $0xa08] sm:$0xff]
    %v2487 = vld [vmem:[#allocation2 + $0xa10] sm:$0xff]
    %v2488 = vld [vmem:[#allocation2 + $0xa18] sm:$0xff]
    %v2489 = vld [vmem:[#allocation2 + $0xa20] sm:$0xff]
    %v2490 = vld [vmem:[#allocation2 + $0xa28] sm:$0xff]
    %v2491 = vld [vmem:[#allocation2 + $0xa30] sm:$0xff]
    %v2492 = vld [vmem:[#allocation2 + $0xa38] sm:$0xff]
    %v2493 = vld [vmem:[#allocation2 + $0xa40] sm:$0xff]
    %v2494 = vld [vmem:[#allocation2 + $0xa48] sm:$0xff]
    %v2495 = vld [vmem:[#allocation2 + $0xa50] sm:$0xff]
    %v2496 = vld [vmem:[#allocation2 + $0xa58] sm:$0xff]
    %v2497 = vld [vmem:[#allocation2 + $0xa60] sm:$0xff]
    %v2498 = vld [vmem:[#allocation2 + $0xa68] sm:$0xff]
    %v2499 = vld [vmem:[#allocation2 + $0xa70] sm:$0xff]
    %v2500 = vld [vmem:[#allocation2 + $0xa78] sm:$0xff]
    %v2501 = vld [vmem:[#allocation2 + $0xa80] sm:$0xff]
    %v2502 = vld [vmem:[#allocation2 + $0xa88] sm:$0xff]
    %v2503 = vld [vmem:[#allocation2 + $0xa90] sm:$0xff]
    %v2504 = vld [vmem:[#allocation2 + $0xa98] sm:$0xff]
    %v2505 = vld [vmem:[#allocation2 + $0xaa0] sm:$0xff]
    %v2506 = vld [vmem:[#allocation2 + $0xaa8] sm:$0xff]
    %v2507 = vld [vmem:[#allocation2 + $0xab0] sm:$0xff]
    %v2508 = vld [vmem:[#allocation2 + $0xab8] sm:$0xff]
    %v2509 = vld [vmem:[#allocation2 + $0xac0] sm:$0xff]
    %v2510 = vld [vmem:[#allocation2 + $0xac8] sm:$0xff]
    %v2511 = vld [vmem:[#allocation2 + $0xad0] sm:$0xff]
    %v2512 = vld [vmem:[#allocation2 + $0xad8] sm:$0xff]
    %v2513 = vld [vmem:[#allocation2 + $0xae0] sm:$0xff]
    %v2514 = vld [vmem:[#allocation2 + $0xae8] sm:$0xff]
    %v2515 = vld [vmem:[#allocation2 + $0xaf0] sm:$0xff]
    %v2516 = vld [vmem:[#allocation2 + $0xaf8] sm:$0xff]
    %v2517 = vld [vmem:[#allocation2 + $0xb00] sm:$0xff]
    %v2518 = vld [vmem:[#allocation2 + $0xb08] sm:$0xff]
    %v2519 = vld [vmem:[#allocation2 + $0xb10] sm:$0xff]
    %v2520 = vld [vmem:[#allocation2 + $0xb18] sm:$0xff]
    %v2521 = vld [vmem:[#allocation2 + $0xb20] sm:$0xff]
    %v2522 = vld [vmem:[#allocation2 + $0xb28] sm:$0xff]
    %v2523 = vld [vmem:[#allocation2 + $0xb30] sm:$0xff]
    %v2524 = vld [vmem:[#allocation2 + $0xb38] sm:$0xff]
    %v2525 = vld [vmem:[#allocation2 + $0xb40] sm:$0xff]
    %v2526 = vld [vmem:[#allocation2 + $0xb48] sm:$0xff]
    %v2527 = vld [vmem:[#allocation2 + $0xb50] sm:$0xff]
    %v2528 = vld [vmem:[#allocation2 + $0xb58] sm:$0xff]
    %v2529 = vld [vmem:[#allocation2 + $0xb60] sm:$0xff]
    %v2530 = vld [vmem:[#allocation2 + $0xb68] sm:$0xff]
    %v2531 = vld [vmem:[#allocation2 + $0xb70] sm:$0xff]
    %v2532 = vld [vmem:[#allocation2 + $0xb78] sm:$0xff]
    %v2533 = vld [vmem:[#allocation2 + $0xb80] sm:$0xff]
    %v2534 = vld [vmem:[#allocation2 + $0xb88] sm:$0xff]
    %v2535 = vld [vmem:[#allocation2 + $0xb90] sm:$0xff]
    %v2536 = vld [vmem:[#allocation2 + $0xb98] sm:$0xff]
    %v2537 = vld [vmem:[#allocation2 + $0xba0] sm:$0xff]
    %v2538 = vld [vmem:[#allocation2 + $0xba8] sm:$0xff]
    %v2539 = vld [vmem:[#allocation2 + $0xbb0] sm:$0xff]
    %v2540 = vld [vmem:[#allocation2 + $0xbb8] sm:$0xff]
    %v2541 = vld [vmem:[#allocation2 + $0xbc0] sm:$0xff]
    %v2542 = vld [vmem:[#allocation2 + $0xbc8] sm:$0xff]
    %v2543 = vld [vmem:[#allocation2 + $0xbd0] sm:$0xff]
    %v2544 = vld [vmem:[#allocation2 + $0xbd8] sm:$0xff]
    %v2545 = vld [vmem:[#allocation2 + $0xbe0] sm:$0xff]
    %v2546 = vld [vmem:[#allocation2 + $0xbe8] sm:$0xff]
    %v2547 = vld [vmem:[#allocation2 + $0xbf0] sm:$0xff]
    %v2548 = vld [vmem:[#allocation2 + $0xbf8] sm:$0xff]
    %v2549 = vld [vmem:[#allocation2 + $0xc00] sm:$0xff]
    %v2550 = vld [vmem:[#allocation2 + $0xc08] sm:$0xff]
    %v2551 = vld [vmem:[#allocation2 + $0xc10] sm:$0xff]
    %v2552 = vld [vmem:[#allocation2 + $0xc18] sm:$0xff]
    %v2553 = vld [vmem:[#allocation2 + $0xc20] sm:$0xff]
    %v2554 = vld [vmem:[#allocation2 + $0xc28] sm:$0xff]
    %v2555 = vld [vmem:[#allocation2 + $0xc30] sm:$0xff]
    %v2556 = vld [vmem:[#allocation2 + $0xc38] sm:$0xff]
    %v2557 = vld [vmem:[#allocation2 + $0xc40] sm:$0xff]
    %v2558 = vld [vmem:[#allocation2 + $0xc48] sm:$0xff]
    %v2559 = vld [vmem:[#allocation2 + $0xc50] sm:$0xff]
    %v2560 = vld [vmem:[#allocation2 + $0xc58] sm:$0xff]
    %v2561 = vld [vmem:[#allocation2 + $0xc60] sm:$0xff]
    %v2562 = vld [vmem:[#allocation2 + $0xc68] sm:$0xff]
    %v2563 = vld [vmem:[#allocation2 + $0xc70] sm:$0xff]
    %v2564 = vld [vmem:[#allocation2 + $0xc78] sm:$0xff]
    %v2565 = vld [vmem:[%s4] sm:$0xf]
    %v2567 = vperm.slane %v2565, 0
    %v2568 = vperm.slane %v2565, 1
    %v2569 = vperm.slane %v2565, 2
    %v2570 = vperm.slane %v2565, 3
    %v2975 = vunpack.c.l.b16 %v2165
    %v2976 = vunpack.c.h.b16 %v2165
    %v2977 = vunpack.c.l.b16 %v2166
    %v2978 = vunpack.c.h.b16 %v2166
    %v2979 = vunpack.c.l.b16 %v2167
    %v2980 = vunpack.c.h.b16 %v2167
    %v2981 = vunpack.c.l.b16 %v2168
    %v2982 = vunpack.c.h.b16 %v2168
    %v2983 = vunpack.c.l.b16 %v2169
    %v2984 = vunpack.c.h.b16 %v2169
    %v2985 = vunpack.c.l.b16 %v2170
    %v2986 = vunpack.c.h.b16 %v2170
    %v2987 = vunpack.c.l.b16 %v2171
    %v2988 = vunpack.c.h.b16 %v2171
    %v2989 = vunpack.c.l.b16 %v2172
    %v2990 = vunpack.c.h.b16 %v2172
    %v2991 = vunpack.c.l.b16 %v2173
    %v2992 = vunpack.c.h.b16 %v2173
    %v2993 = vunpack.c.l.b16 %v2174
    %v2994 = vunpack.c.h.b16 %v2174
    %v2995 = vunpack.c.l.b16 %v2175
    %v2996 = vunpack.c.h.b16 %v2175
    %v2997 = vunpack.c.l.b16 %v2176
    %v2998 = vunpack.c.h.b16 %v2176
    %v2999 = vunpack.c.l.b16 %v2177
    %v3000 = vunpack.c.h.b16 %v2177
    %v3001 = vunpack.c.l.b16 %v2178
    %v3002 = vunpack.c.h.b16 %v2178
    %v3003 = vunpack.c.l.b16 %v2179
    %v3004 = vunpack.c.h.b16 %v2179
    %v3005 = vunpack.c.l.b16 %v2180
    %v3006 = vunpack.c.h.b16 %v2180
    %v3007 = vunpack.c.l.b16 %v2181
    %v3008 = vunpack.c.h.b16 %v2181
    %v3009 = vunpack.c.l.b16 %v2182
    %v3010 = vunpack.c.h.b16 %v2182
    %v3011 = vunpack.c.l.b16 %v2183
    %v3012 = vunpack.c.h.b16 %v2183
    %v3013 = vunpack.c.l.b16 %v2184
    %v3014 = vunpack.c.h.b16 %v2184
    %v3015 = vunpack.c.l.b16 %v2185
    %v3016 = vunpack.c.h.b16 %v2185
    %v3017 = vunpack.c.l.b16 %v2186
    %v3018 = vunpack.c.h.b16 %v2186
    %v3019 = vunpack.c.l.b16 %v2187
    %v3020 = vunpack.c.h.b16 %v2187
    %v3021 = vunpack.c.l.b16 %v2188
    %v3022 = vunpack.c.h.b16 %v2188
    %v3023 = vunpack.c.l.b16 %v2189
    %v3024 = vunpack.c.h.b16 %v2189
    %v3025 = vunpack.c.l.b16 %v2190
    %v3026 = vunpack.c.h.b16 %v2190
    %v3027 = vunpack.c.l.b16 %v2191
    %v3028 = vunpack.c.h.b16 %v2191
    %v3029 = vunpack.c.l.b16 %v2192
    %v3030 = vunpack.c.h.b16 %v2192
    %v3031 = vunpack.c.l.b16 %v2193
    %v3032 = vunpack.c.h.b16 %v2193
    %v3033 = vunpack.c.l.b16 %v2194
    %v3034 = vunpack.c.h.b16 %v2194
    %v3035 = vunpack.c.l.b16 %v2195
    %v3036 = vunpack.c.h.b16 %v2195
    %v3037 = vunpack.c.l.b16 %v2196
    %v3038 = vunpack.c.h.b16 %v2196
    %v3039 = vunpack.c.l.b16 %v2197
    %v3040 = vunpack.c.h.b16 %v2197
    %v3041 = vunpack.c.l.b16 %v2198
    %v3042 = vunpack.c.h.b16 %v2198
    %v3043 = vunpack.c.l.b16 %v2199
    %v3044 = vunpack.c.h.b16 %v2199
    %v3045 = vunpack.c.l.b16 %v2200
    %v3046 = vunpack.c.h.b16 %v2200
    %v3047 = vunpack.c.l.b16 %v2201
    %v3048 = vunpack.c.h.b16 %v2201
    %v3049 = vunpack.c.l.b16 %v2202
    %v3050 = vunpack.c.h.b16 %v2202
    %v3051 = vunpack.c.l.b16 %v2203
    %v3052 = vunpack.c.h.b16 %v2203
    %v3053 = vunpack.c.l.b16 %v2204
    %v3054 = vunpack.c.h.b16 %v2204
    %v3055 = vunpack.c.l.b16 %v2205
    %v3056 = vunpack.c.h.b16 %v2205
    %v3057 = vunpack.c.l.b16 %v2206
    %v3058 = vunpack.c.h.b16 %v2206
    %v3059 = vunpack.c.l.b16 %v2207
    %v3060 = vunpack.c.h.b16 %v2207
    %v3061 = vunpack.c.l.b16 %v2208
    %v3062 = vunpack.c.h.b16 %v2208
    %v3063 = vunpack.c.l.b16 %v2209
    %v3064 = vunpack.c.h.b16 %v2209
    %v3065 = vunpack.c.l.b16 %v2210
    %v3066 = vunpack.c.h.b16 %v2210
    %v3067 = vunpack.c.l.b16 %v2211
    %v3068 = vunpack.c.h.b16 %v2211
    %v3069 = vunpack.c.l.b16 %v2212
    %v3070 = vunpack.c.h.b16 %v2212
    %v3071 = vunpack.c.l.b16 %v2213
    %v3072 = vunpack.c.h.b16 %v2213
    %v3073 = vunpack.c.l.b16 %v2214
    %v3074 = vunpack.c.h.b16 %v2214
    %v3075 = vunpack.c.l.b16 %v2215
    %v3076 = vunpack.c.h.b16 %v2215
    %v3077 = vunpack.c.l.b16 %v2216
    %v3078 = vunpack.c.h.b16 %v2216
    %v3079 = vunpack.c.l.b16 %v2217
    %v3080 = vunpack.c.h.b16 %v2217
    %v3081 = vunpack.c.l.b16 %v2218
    %v3082 = vunpack.c.h.b16 %v2218
    %v3083 = vunpack.c.l.b16 %v2219
    %v3084 = vunpack.c.h.b16 %v2219
    %v3085 = vunpack.c.l.b16 %v2220
    %v3086 = vunpack.c.h.b16 %v2220
    %v3087 = vunpack.c.l.b16 %v2221
    %v3088 = vunpack.c.h.b16 %v2221
    %v3089 = vunpack.c.l.b16 %v2222
    %v3090 = vunpack.c.h.b16 %v2222
    %v3091 = vunpack.c.l.b16 %v2223
    %v3092 = vunpack.c.h.b16 %v2223
    %v3093 = vunpack.c.l.b16 %v2224
    %v3094 = vunpack.c.h.b16 %v2224
    %v3095 = vunpack.c.l.b16 %v2225
    %v3096 = vunpack.c.h.b16 %v2225
    %v3097 = vunpack.c.l.b16 %v2226
    %v3098 = vunpack.c.h.b16 %v2226
    %v3099 = vunpack.c.l.b16 %v2227
    %v3100 = vunpack.c.h.b16 %v2227
    %v3101 = vunpack.c.l.b16 %v2228
    %v3102 = vunpack.c.h.b16 %v2228
    %v3103 = vunpack.c.l.b16 %v2229
    %v3104 = vunpack.c.h.b16 %v2229
    %v3105 = vunpack.c.l.b16 %v2230
    %v3106 = vunpack.c.h.b16 %v2230
    %v3107 = vunpack.c.l.b16 %v2231
    %v3108 = vunpack.c.h.b16 %v2231
    %v3109 = vunpack.c.l.b16 %v2232
    %v3110 = vunpack.c.h.b16 %v2232
    %v3111 = vunpack.c.l.b16 %v2233
    %v3112 = vunpack.c.h.b16 %v2233
    %v3113 = vunpack.c.l.b16 %v2234
    %v3114 = vunpack.c.h.b16 %v2234
    %v3115 = vunpack.c.l.b16 %v2235
    %v3116 = vunpack.c.h.b16 %v2235
    %v3117 = vunpack.c.l.b16 %v2236
    %v3118 = vunpack.c.h.b16 %v2236
    %v3119 = vunpack.c.l.b16 %v2237
    %v3120 = vunpack.c.h.b16 %v2237
    %v3121 = vunpack.c.l.b16 %v2238
    %v3122 = vunpack.c.h.b16 %v2238
    %v3123 = vunpack.c.l.b16 %v2239
    %v3124 = vunpack.c.h.b16 %v2239
    %v3125 = vunpack.c.l.b16 %v2240
    %v3126 = vunpack.c.h.b16 %v2240
    %v3127 = vunpack.c.l.b16 %v2241
    %v3128 = vunpack.c.h.b16 %v2241
    %v3129 = vunpack.c.l.b16 %v2242
    %v3130 = vunpack.c.h.b16 %v2242
    %v3131 = vunpack.c.l.b16 %v2243
    %v3132 = vunpack.c.h.b16 %v2243
    %v3133 = vunpack.c.l.b16 %v2244
    %v3134 = vunpack.c.h.b16 %v2244
    %v3135 = vunpack.c.l.b16 %v2245
    %v3136 = vunpack.c.h.b16 %v2245
    %v3137 = vunpack.c.l.b16 %v2246
    %v3138 = vunpack.c.h.b16 %v2246
    %v3139 = vunpack.c.l.b16 %v2247
    %v3140 = vunpack.c.h.b16 %v2247
    %v3141 = vunpack.c.l.b16 %v2248
    %v3142 = vunpack.c.h.b16 %v2248
    %v3143 = vunpack.c.l.b16 %v2249
    %v3144 = vunpack.c.h.b16 %v2249
    %v3145 = vunpack.c.l.b16 %v2250
    %v3146 = vunpack.c.h.b16 %v2250
    %v3147 = vunpack.c.l.b16 %v2251
    %v3148 = vunpack.c.h.b16 %v2251
    %v3149 = vunpack.c.l.b16 %v2252
    %v3150 = vunpack.c.h.b16 %v2252
    %v3151 = vunpack.c.l.b16 %v2253
    %v3152 = vunpack.c.h.b16 %v2253
    %v3153 = vunpack.c.l.b16 %v2254
    %v3154 = vunpack.c.h.b16 %v2254
    %v3155 = vunpack.c.l.b16 %v2255
    %v3156 = vunpack.c.h.b16 %v2255
    %v3157 = vunpack.c.l.b16 %v2256
    %v3158 = vunpack.c.h.b16 %v2256
    %v3159 = vunpack.c.l.b16 %v2257
    %v3160 = vunpack.c.h.b16 %v2257
    %v3161 = vunpack.c.l.b16 %v2258
    %v3162 = vunpack.c.h.b16 %v2258
    %v3163 = vunpack.c.l.b16 %v2259
    %v3164 = vunpack.c.h.b16 %v2259
    %v3165 = vunpack.c.l.b16 %v2260
    %v3166 = vunpack.c.h.b16 %v2260
    %v3167 = vunpack.c.l.b16 %v2261
    %v3168 = vunpack.c.h.b16 %v2261
    %v3169 = vunpack.c.l.b16 %v2262
    %v3170 = vunpack.c.h.b16 %v2262
    %v3171 = vunpack.c.l.b16 %v2263
    %v3172 = vunpack.c.h.b16 %v2263
    %v3173 = vunpack.c.l.b16 %v2264
    %v3174 = vunpack.c.h.b16 %v2264
    %v3175 = vunpack.c.l.b16 %v2265
    %v3176 = vunpack.c.h.b16 %v2265
    %v3177 = vunpack.c.l.b16 %v2266
    %v3178 = vunpack.c.h.b16 %v2266
    %v3179 = vunpack.c.l.b16 %v2267
    %v3180 = vunpack.c.h.b16 %v2267
    %v3181 = vunpack.c.l.b16 %v2268
    %v3182 = vunpack.c.h.b16 %v2268
    %v3183 = vunpack.c.l.b16 %v2269
    %v3184 = vunpack.c.h.b16 %v2269
    %v3185 = vunpack.c.l.b16 %v2270
    %v3186 = vunpack.c.h.b16 %v2270
    %v3187 = vunpack.c.l.b16 %v2271
    %v3188 = vunpack.c.h.b16 %v2271
    %v3189 = vunpack.c.l.b16 %v2272
    %v3190 = vunpack.c.h.b16 %v2272
    %v3191 = vunpack.c.l.b16 %v2273
    %v3192 = vunpack.c.h.b16 %v2273
    %v3193 = vunpack.c.l.b16 %v2274
    %v3194 = vunpack.c.h.b16 %v2274
    %v3195 = vunpack.c.l.b16 %v2275
    %v3196 = vunpack.c.h.b16 %v2275
    %v3197 = vunpack.c.l.b16 %v2276
    %v3198 = vunpack.c.h.b16 %v2276
    %v3199 = vunpack.c.l.b16 %v2277
    %v3200 = vunpack.c.h.b16 %v2277
    %v3201 = vunpack.c.l.b16 %v2278
    %v3202 = vunpack.c.h.b16 %v2278
    %v3203 = vunpack.c.l.b16 %v2279
    %v3204 = vunpack.c.h.b16 %v2279
    %v3205 = vunpack.c.l.b16 %v2280
    %v3206 = vunpack.c.h.b16 %v2280
    %v3207 = vunpack.c.l.b16 %v2281
    %v3208 = vunpack.c.h.b16 %v2281
    %v3209 = vunpack.c.l.b16 %v2282
    %v3210 = vunpack.c.h.b16 %v2282
    %v3211 = vunpack.c.l.b16 %v2283
    %v3212 = vunpack.c.h.b16 %v2283
    %v3213 = vunpack.c.l.b16 %v2284
    %v3214 = vunpack.c.h.b16 %v2284
    %v3215 = vunpack.c.l.b16 %v2285
    %v3216 = vunpack.c.h.b16 %v2285
    %v3217 = vunpack.c.l.b16 %v2286
    %v3218 = vunpack.c.h.b16 %v2286
    %v3219 = vunpack.c.l.b16 %v2287
    %v3220 = vunpack.c.h.b16 %v2287
    %v3221 = vunpack.c.l.b16 %v2288
    %v3222 = vunpack.c.h.b16 %v2288
    %v3223 = vunpack.c.l.b16 %v2289
    %v3224 = vunpack.c.h.b16 %v2289
    %v3225 = vunpack.c.l.b16 %v2290
    %v3226 = vunpack.c.h.b16 %v2290
    %v3227 = vunpack.c.l.b16 %v2291
    %v3228 = vunpack.c.h.b16 %v2291
    %v3229 = vunpack.c.l.b16 %v2292
    %v3230 = vunpack.c.h.b16 %v2292
    %v3231 = vunpack.c.l.b16 %v2293
    %v3232 = vunpack.c.h.b16 %v2293
    %v3233 = vunpack.c.l.b16 %v2294
    %v3234 = vunpack.c.h.b16 %v2294
    %v3235 = vunpack.c.l.b16 %v2295
    %v3236 = vunpack.c.h.b16 %v2295
    %v3237 = vunpack.c.l.b16 %v2296
    %v3238 = vunpack.c.h.b16 %v2296
    %v3239 = vunpack.c.l.b16 %v2297
    %v3240 = vunpack.c.h.b16 %v2297
    %v3241 = vunpack.c.l.b16 %v2298
    %v3242 = vunpack.c.h.b16 %v2298
    %v3243 = vunpack.c.l.b16 %v2299
    %v3244 = vunpack.c.h.b16 %v2299
    %v3245 = vunpack.c.l.b16 %v2300
    %v3246 = vunpack.c.h.b16 %v2300
    %v3247 = vunpack.c.l.b16 %v2301
    %v3248 = vunpack.c.h.b16 %v2301
    %v3249 = vunpack.c.l.b16 %v2302
    %v3250 = vunpack.c.h.b16 %v2302
    %v3251 = vunpack.c.l.b16 %v2303
    %v3252 = vunpack.c.h.b16 %v2303
    %v3253 = vunpack.c.l.b16 %v2304
    %v3254 = vunpack.c.h.b16 %v2304
    %v3255 = vunpack.c.l.b16 %v2305
    %v3256 = vunpack.c.h.b16 %v2305
    %v3257 = vunpack.c.l.b16 %v2306
    %v3258 = vunpack.c.h.b16 %v2306
    %v3259 = vunpack.c.l.b16 %v2307
    %v3260 = vunpack.c.h.b16 %v2307
    %v3261 = vunpack.c.l.b16 %v2308
    %v3262 = vunpack.c.h.b16 %v2308
    %v3263 = vunpack.c.l.b16 %v2309
    %v3264 = vunpack.c.h.b16 %v2309
    %v3265 = vunpack.c.l.b16 %v2310
    %v3266 = vunpack.c.h.b16 %v2310
    %v3267 = vunpack.c.l.b16 %v2311
    %v3268 = vunpack.c.h.b16 %v2311
    %v3269 = vunpack.c.l.b16 %v2312
    %v3270 = vunpack.c.h.b16 %v2312
    %v3271 = vunpack.c.l.b16 %v2313
    %v3272 = vunpack.c.h.b16 %v2313
    %v3273 = vunpack.c.l.b16 %v2314
    %v3274 = vunpack.c.h.b16 %v2314
    %v3275 = vunpack.c.l.b16 %v2315
    %v3276 = vunpack.c.h.b16 %v2315
    %v3277 = vunpack.c.l.b16 %v2316
    %v3278 = vunpack.c.h.b16 %v2316
    %v3279 = vunpack.c.l.b16 %v2317
    %v3280 = vunpack.c.h.b16 %v2317
    %v3281 = vunpack.c.l.b16 %v2318
    %v3282 = vunpack.c.h.b16 %v2318
    %v3283 = vunpack.c.l.b16 %v2319
    %v3284 = vunpack.c.h.b16 %v2319
    %v3285 = vunpack.c.l.b16 %v2320
    %v3286 = vunpack.c.h.b16 %v2320
    %v3287 = vunpack.c.l.b16 %v2321
    %v3288 = vunpack.c.h.b16 %v2321
    %v3289 = vunpack.c.l.b16 %v2322
    %v3290 = vunpack.c.h.b16 %v2322
    %v3291 = vunpack.c.l.b16 %v2323
    %v3292 = vunpack.c.h.b16 %v2323
    %v3293 = vunpack.c.l.b16 %v2324
    %v3294 = vunpack.c.h.b16 %v2324
    %v3295 = vunpack.c.l.b16 %v2325
    %v3296 = vunpack.c.h.b16 %v2325
    %v3297 = vunpack.c.l.b16 %v2326
    %v3298 = vunpack.c.h.b16 %v2326
    %v3299 = vunpack.c.l.b16 %v2327
    %v3300 = vunpack.c.h.b16 %v2327
    %v3301 = vunpack.c.l.b16 %v2328
    %v3302 = vunpack.c.h.b16 %v2328
    %v3303 = vunpack.c.l.b16 %v2329
    %v3304 = vunpack.c.h.b16 %v2329
    %v3305 = vunpack.c.l.b16 %v2330
    %v3306 = vunpack.c.h.b16 %v2330
    %v3307 = vunpack.c.l.b16 %v2331
    %v3308 = vunpack.c.h.b16 %v2331
    %v3309 = vunpack.c.l.b16 %v2332
    %v3310 = vunpack.c.h.b16 %v2332
    %v3311 = vunpack.c.l.b16 %v2333
    %v3312 = vunpack.c.h.b16 %v2333
    %v3313 = vunpack.c.l.b16 %v2334
    %v3314 = vunpack.c.h.b16 %v2334
    %v3315 = vunpack.c.l.b16 %v2335
    %v3316 = vunpack.c.h.b16 %v2335
    %v3317 = vunpack.c.l.b16 %v2336
    %v3318 = vunpack.c.h.b16 %v2336
    %v3319 = vunpack.c.l.b16 %v2337
    %v3320 = vunpack.c.h.b16 %v2337
    %v3321 = vunpack.c.l.b16 %v2338
    %v3322 = vunpack.c.h.b16 %v2338
    %v3323 = vunpack.c.l.b16 %v2339
    %v3324 = vunpack.c.h.b16 %v2339
    %v3325 = vunpack.c.l.b16 %v2340
    %v3326 = vunpack.c.h.b16 %v2340
    %v3327 = vunpack.c.l.b16 %v2341
    %v3328 = vunpack.c.h.b16 %v2341
    %v3329 = vunpack.c.l.b16 %v2342
    %v3330 = vunpack.c.h.b16 %v2342
    %v3331 = vunpack.c.l.b16 %v2343
    %v3332 = vunpack.c.h.b16 %v2343
    %v3333 = vunpack.c.l.b16 %v2344
    %v3334 = vunpack.c.h.b16 %v2344
    %v3335 = vunpack.c.l.b16 %v2345
    %v3336 = vunpack.c.h.b16 %v2345
    %v3337 = vunpack.c.l.b16 %v2346
    %v3338 = vunpack.c.h.b16 %v2346
    %v3339 = vunpack.c.l.b16 %v2347
    %v3340 = vunpack.c.h.b16 %v2347
    %v3341 = vunpack.c.l.b16 %v2348
    %v3342 = vunpack.c.h.b16 %v2348
    %v3343 = vunpack.c.l.b16 %v2349
    %v3344 = vunpack.c.h.b16 %v2349
    %v3345 = vunpack.c.l.b16 %v2350
    %v3346 = vunpack.c.h.b16 %v2350
    %v3347 = vunpack.c.l.b16 %v2351
    %v3348 = vunpack.c.h.b16 %v2351
    %v3349 = vunpack.c.l.b16 %v2352
    %v3350 = vunpack.c.h.b16 %v2352
    %v3351 = vunpack.c.l.b16 %v2353
    %v3352 = vunpack.c.h.b16 %v2353
    %v3353 = vunpack.c.l.b16 %v2354
    %v3354 = vunpack.c.h.b16 %v2354
    %v3355 = vunpack.c.l.b16 %v2355
    %v3356 = vunpack.c.h.b16 %v2355
    %v3357 = vunpack.c.l.b16 %v2356
    %v3358 = vunpack.c.h.b16 %v2356
    %v3359 = vunpack.c.l.b16 %v2357
    %v3360 = vunpack.c.h.b16 %v2357
    %v3361 = vunpack.c.l.b16 %v2358
    %v3362 = vunpack.c.h.b16 %v2358
    %v3363 = vunpack.c.l.b16 %v2359
    %v3364 = vunpack.c.h.b16 %v2359
    %v3365 = vunpack.c.l.b16 %v2360
    %v3366 = vunpack.c.h.b16 %v2360
    %v3367 = vunpack.c.l.b16 %v2361
    %v3368 = vunpack.c.h.b16 %v2361
    %v3369 = vunpack.c.l.b16 %v2362
    %v3370 = vunpack.c.h.b16 %v2362
    %v3371 = vunpack.c.l.b16 %v2363
    %v3372 = vunpack.c.h.b16 %v2363
    %v3373 = vunpack.c.l.b16 %v2364
    %v3374 = vunpack.c.h.b16 %v2364
    %v3375 = vunpack.c.l.b16 %v2365
    %v3376 = vunpack.c.h.b16 %v2365
    %v3377 = vunpack.c.l.b16 %v2366
    %v3378 = vunpack.c.h.b16 %v2366
    %v3379 = vunpack.c.l.b16 %v2367
    %v3380 = vunpack.c.h.b16 %v2367
    %v3381 = vunpack.c.l.b16 %v2368
    %v3382 = vunpack.c.h.b16 %v2368
    %v3383 = vunpack.c.l.b16 %v2369
    %v3384 = vunpack.c.h.b16 %v2369
    %v3385 = vunpack.c.l.b16 %v2370
    %v3386 = vunpack.c.h.b16 %v2370
    %v3387 = vunpack.c.l.b16 %v2371
    %v3388 = vunpack.c.h.b16 %v2371
    %v3389 = vunpack.c.l.b16 %v2372
    %v3390 = vunpack.c.h.b16 %v2372
    %v3391 = vunpack.c.l.b16 %v2373
    %v3392 = vunpack.c.h.b16 %v2373
    %v3393 = vunpack.c.l.b16 %v2374
    %v3394 = vunpack.c.h.b16 %v2374
    %v3395 = vunpack.c.l.b16 %v2375
    %v3396 = vunpack.c.h.b16 %v2375
    %v3397 = vunpack.c.l.b16 %v2376
    %v3398 = vunpack.c.h.b16 %v2376
    %v3399 = vunpack.c.l.b16 %v2377
    %v3400 = vunpack.c.h.b16 %v2377
    %v3401 = vunpack.c.l.b16 %v2378
    %v3402 = vunpack.c.h.b16 %v2378
    %v3403 = vunpack.c.l.b16 %v2379
    %v3404 = vunpack.c.h.b16 %v2379
    %v3405 = vunpack.c.l.b16 %v2380
    %v3406 = vunpack.c.h.b16 %v2380
    %v3407 = vunpack.c.l.b16 %v2381
    %v3408 = vunpack.c.h.b16 %v2381
    %v3409 = vunpack.c.l.b16 %v2382
    %v3410 = vunpack.c.h.b16 %v2382
    %v3411 = vunpack.c.l.b16 %v2383
    %v3412 = vunpack.c.h.b16 %v2383
    %v3413 = vunpack.c.l.b16 %v2384
    %v3414 = vunpack.c.h.b16 %v2384
    %v3415 = vunpack.c.l.b16 %v2385
    %v3416 = vunpack.c.h.b16 %v2385
    %v3417 = vunpack.c.l.b16 %v2386
    %v3418 = vunpack.c.h.b16 %v2386
    %v3419 = vunpack.c.l.b16 %v2387
    %v3420 = vunpack.c.h.b16 %v2387
    %v3421 = vunpack.c.l.b16 %v2388
    %v3422 = vunpack.c.h.b16 %v2388
    %v3423 = vunpack.c.l.b16 %v2389
    %v3424 = vunpack.c.h.b16 %v2389
    %v3425 = vunpack.c.l.b16 %v2390
    %v3426 = vunpack.c.h.b16 %v2390
    %v3427 = vunpack.c.l.b16 %v2391
    %v3428 = vunpack.c.h.b16 %v2391
    %v3429 = vunpack.c.l.b16 %v2392
    %v3430 = vunpack.c.h.b16 %v2392
    %v3431 = vunpack.c.l.b16 %v2393
    %v3432 = vunpack.c.h.b16 %v2393
    %v3433 = vunpack.c.l.b16 %v2394
    %v3434 = vunpack.c.h.b16 %v2394
    %v3435 = vunpack.c.l.b16 %v2395
    %v3436 = vunpack.c.h.b16 %v2395
    %v3437 = vunpack.c.l.b16 %v2396
    %v3438 = vunpack.c.h.b16 %v2396
    %v3439 = vunpack.c.l.b16 %v2397
    %v3440 = vunpack.c.h.b16 %v2397
    %v3441 = vunpack.c.l.b16 %v2398
    %v3442 = vunpack.c.h.b16 %v2398
    %v3443 = vunpack.c.l.b16 %v2399
    %v3444 = vunpack.c.h.b16 %v2399
    %v3445 = vunpack.c.l.b16 %v2400
    %v3446 = vunpack.c.h.b16 %v2400
    %v3447 = vunpack.c.l.b16 %v2401
    %v3448 = vunpack.c.h.b16 %v2401
    %v3449 = vunpack.c.l.b16 %v2402
    %v3450 = vunpack.c.h.b16 %v2402
    %v3451 = vunpack.c.l.b16 %v2403
    %v3452 = vunpack.c.h.b16 %v2403
    %v3453 = vunpack.c.l.b16 %v2404
    %v3454 = vunpack.c.h.b16 %v2404
    %v3455 = vunpack.c.l.b16 %v2405
    %v3456 = vunpack.c.h.b16 %v2405
    %v3457 = vunpack.c.l.b16 %v2406
    %v3458 = vunpack.c.h.b16 %v2406
    %v3459 = vunpack.c.l.b16 %v2407
    %v3460 = vunpack.c.h.b16 %v2407
    %v3461 = vunpack.c.l.b16 %v2408
    %v3462 = vunpack.c.h.b16 %v2408
    %v3463 = vunpack.c.l.b16 %v2409
    %v3464 = vunpack.c.h.b16 %v2409
    %v3465 = vunpack.c.l.b16 %v2410
    %v3466 = vunpack.c.h.b16 %v2410
    %v3467 = vunpack.c.l.b16 %v2411
    %v3468 = vunpack.c.h.b16 %v2411
    %v3469 = vunpack.c.l.b16 %v2412
    %v3470 = vunpack.c.h.b16 %v2412
    %v3471 = vunpack.c.l.b16 %v2413
    %v3472 = vunpack.c.h.b16 %v2413
    %v3473 = vunpack.c.l.b16 %v2414
    %v3474 = vunpack.c.h.b16 %v2414
    %v3475 = vunpack.c.l.b16 %v2415
    %v3476 = vunpack.c.h.b16 %v2415
    %v3477 = vunpack.c.l.b16 %v2416
    %v3478 = vunpack.c.h.b16 %v2416
    %v3479 = vunpack.c.l.b16 %v2417
    %v3480 = vunpack.c.h.b16 %v2417
    %v3481 = vunpack.c.l.b16 %v2418
    %v3482 = vunpack.c.h.b16 %v2418
    %v3483 = vunpack.c.l.b16 %v2419
    %v3484 = vunpack.c.h.b16 %v2419
    %v3485 = vunpack.c.l.b16 %v2420
    %v3486 = vunpack.c.h.b16 %v2420
    %v3487 = vunpack.c.l.b16 %v2421
    %v3488 = vunpack.c.h.b16 %v2421
    %v3489 = vunpack.c.l.b16 %v2422
    %v3490 = vunpack.c.h.b16 %v2422
    %v3491 = vunpack.c.l.b16 %v2423
    %v3492 = vunpack.c.h.b16 %v2423
    %v3493 = vunpack.c.l.b16 %v2424
    %v3494 = vunpack.c.h.b16 %v2424
    %v3495 = vunpack.c.l.b16 %v2425
    %v3496 = vunpack.c.h.b16 %v2425
    %v3497 = vunpack.c.l.b16 %v2426
    %v3498 = vunpack.c.h.b16 %v2426
    %v3499 = vunpack.c.l.b16 %v2427
    %v3500 = vunpack.c.h.b16 %v2427
    %v3501 = vunpack.c.l.b16 %v2428
    %v3502 = vunpack.c.h.b16 %v2428
    %v3503 = vunpack.c.l.b16 %v2429
    %v3504 = vunpack.c.h.b16 %v2429
    %v3505 = vunpack.c.l.b16 %v2430
    %v3506 = vunpack.c.h.b16 %v2430
    %v3507 = vunpack.c.l.b16 %v2431
    %v3508 = vunpack.c.h.b16 %v2431
    %v3509 = vunpack.c.l.b16 %v2432
    %v3510 = vunpack.c.h.b16 %v2432
    %v3511 = vunpack.c.l.b16 %v2433
    %v3512 = vunpack.c.h.b16 %v2433
    %v3513 = vunpack.c.l.b16 %v2434
    %v3514 = vunpack.c.h.b16 %v2434
    %v3515 = vunpack.c.l.b16 %v2435
    %v3516 = vunpack.c.h.b16 %v2435
    %v3517 = vunpack.c.l.b16 %v2436
    %v3518 = vunpack.c.h.b16 %v2436
    %v3519 = vunpack.c.l.b16 %v2437
    %v3520 = vunpack.c.h.b16 %v2437
    %v3521 = vunpack.c.l.b16 %v2438
    %v3522 = vunpack.c.h.b16 %v2438
    %v3523 = vunpack.c.l.b16 %v2439
    %v3524 = vunpack.c.h.b16 %v2439
    %v3525 = vunpack.c.l.b16 %v2440
    %v3526 = vunpack.c.h.b16 %v2440
    %v3527 = vunpack.c.l.b16 %v2441
    %v3528 = vunpack.c.h.b16 %v2441
    %v3529 = vunpack.c.l.b16 %v2442
    %v3530 = vunpack.c.h.b16 %v2442
    %v3531 = vunpack.c.l.b16 %v2443
    %v3532 = vunpack.c.h.b16 %v2443
    %v3533 = vunpack.c.l.b16 %v2444
    %v3534 = vunpack.c.h.b16 %v2444
    %v3535 = vunpack.c.l.b16 %v2445
    %v3536 = vunpack.c.h.b16 %v2445
    %v3537 = vunpack.c.l.b16 %v2446
    %v3538 = vunpack.c.h.b16 %v2446
    %v3539 = vunpack.c.l.b16 %v2447
    %v3540 = vunpack.c.h.b16 %v2447
    %v3541 = vunpack.c.l.b16 %v2448
    %v3542 = vunpack.c.h.b16 %v2448
    %v3543 = vunpack.c.l.b16 %v2449
    %v3544 = vunpack.c.h.b16 %v2449
    %v3545 = vunpack.c.l.b16 %v2450
    %v3546 = vunpack.c.h.b16 %v2450
    %v3547 = vunpack.c.l.b16 %v2451
    %v3548 = vunpack.c.h.b16 %v2451
    %v3549 = vunpack.c.l.b16 %v2452
    %v3550 = vunpack.c.h.b16 %v2452
    %v3551 = vunpack.c.l.b16 %v2453
    %v3552 = vunpack.c.h.b16 %v2453
    %v3553 = vunpack.c.l.b16 %v2454
    %v3554 = vunpack.c.h.b16 %v2454
    %v3555 = vunpack.c.l.b16 %v2455
    %v3556 = vunpack.c.h.b16 %v2455
    %v3557 = vunpack.c.l.b16 %v2456
    %v3558 = vunpack.c.h.b16 %v2456
    %v3559 = vunpack.c.l.b16 %v2457
    %v3560 = vunpack.c.h.b16 %v2457
    %v3561 = vunpack.c.l.b16 %v2458
    %v3562 = vunpack.c.h.b16 %v2458
    %v3563 = vunpack.c.l.b16 %v2459
    %v3564 = vunpack.c.h.b16 %v2459
    %v3565 = vunpack.c.l.b16 %v2460
    %v3566 = vunpack.c.h.b16 %v2460
    %v3567 = vunpack.c.l.b16 %v2461
    %v3568 = vunpack.c.h.b16 %v2461
    %v3569 = vunpack.c.l.b16 %v2462
    %v3570 = vunpack.c.h.b16 %v2462
    %v3571 = vunpack.c.l.b16 %v2463
    %v3572 = vunpack.c.h.b16 %v2463
    %v3573 = vunpack.c.l.b16 %v2464
    %v3574 = vunpack.c.h.b16 %v2464
    %v3575 = vunpack.c.l.b16 %v2465
    %v3576 = vunpack.c.h.b16 %v2465
    %v3577 = vunpack.c.l.b16 %v2466
    %v3578 = vunpack.c.h.b16 %v2466
    %v3579 = vunpack.c.l.b16 %v2467
    %v3580 = vunpack.c.h.b16 %v2467
    %v3581 = vunpack.c.l.b16 %v2468
    %v3582 = vunpack.c.h.b16 %v2468
    %v3583 = vunpack.c.l.b16 %v2469
    %v3584 = vunpack.c.h.b16 %v2469
    %v3585 = vunpack.c.l.b16 %v2470
    %v3586 = vunpack.c.h.b16 %v2470
    %v3587 = vunpack.c.l.b16 %v2471
    %v3588 = vunpack.c.h.b16 %v2471
    %v3589 = vunpack.c.l.b16 %v2472
    %v3590 = vunpack.c.h.b16 %v2472
    %v3591 = vunpack.c.l.b16 %v2473
    %v3592 = vunpack.c.h.b16 %v2473
    %v3593 = vunpack.c.l.b16 %v2474
    %v3594 = vunpack.c.h.b16 %v2474
    %v3595 = vunpack.c.l.b16 %v2475
    %v3596 = vunpack.c.h.b16 %v2475
    %v3597 = vunpack.c.l.b16 %v2476
    %v3598 = vunpack.c.h.b16 %v2476
    %v3599 = vunpack.c.l.b16 %v2477
    %v3600 = vunpack.c.h.b16 %v2477
    %v3601 = vunpack.c.l.b16 %v2478
    %v3602 = vunpack.c.h.b16 %v2478
    %v3603 = vunpack.c.l.b16 %v2479
    %v3604 = vunpack.c.h.b16 %v2479
    %v3605 = vunpack.c.l.b16 %v2480
    %v3606 = vunpack.c.h.b16 %v2480
    %v3607 = vunpack.c.l.b16 %v2481
    %v3608 = vunpack.c.h.b16 %v2481
    %v3609 = vunpack.c.l.b16 %v2482
    %v3610 = vunpack.c.h.b16 %v2482
    %v3611 = vunpack.c.l.b16 %v2483
    %v3612 = vunpack.c.h.b16 %v2483
    %v3613 = vunpack.c.l.b16 %v2484
    %v3614 = vunpack.c.h.b16 %v2484
    %v3615 = vunpack.c.l.b16 %v2485
    %v3616 = vunpack.c.h.b16 %v2485
    %v3617 = vunpack.c.l.b16 %v2486
    %v3618 = vunpack.c.h.b16 %v2486
    %v3619 = vunpack.c.l.b16 %v2487
    %v3620 = vunpack.c.h.b16 %v2487
    %v3621 = vunpack.c.l.b16 %v2488
    %v3622 = vunpack.c.h.b16 %v2488
    %v3623 = vunpack.c.l.b16 %v2489
    %v3624 = vunpack.c.h.b16 %v2489
    %v3625 = vunpack.c.l.b16 %v2490
    %v3626 = vunpack.c.h.b16 %v2490
    %v3627 = vunpack.c.l.b16 %v2491
    %v3628 = vunpack.c.h.b16 %v2491
    %v3629 = vunpack.c.l.b16 %v2492
    %v3630 = vunpack.c.h.b16 %v2492
    %v3631 = vunpack.c.l.b16 %v2493
    %v3632 = vunpack.c.h.b16 %v2493
    %v3633 = vunpack.c.l.b16 %v2494
    %v3634 = vunpack.c.h.b16 %v2494
    %v3635 = vunpack.c.l.b16 %v2495
    %v3636 = vunpack.c.h.b16 %v2495
    %v3637 = vunpack.c.l.b16 %v2496
    %v3638 = vunpack.c.h.b16 %v2496
    %v3639 = vunpack.c.l.b16 %v2497
    %v3640 = vunpack.c.h.b16 %v2497
    %v3641 = vunpack.c.l.b16 %v2498
    %v3642 = vunpack.c.h.b16 %v2498
    %v3643 = vunpack.c.l.b16 %v2499
    %v3644 = vunpack.c.h.b16 %v2499
    %v3645 = vunpack.c.l.b16 %v2500
    %v3646 = vunpack.c.h.b16 %v2500
    %v3647 = vunpack.c.l.b16 %v2501
    %v3648 = vunpack.c.h.b16 %v2501
    %v3649 = vunpack.c.l.b16 %v2502
    %v3650 = vunpack.c.h.b16 %v2502
    %v3651 = vunpack.c.l.b16 %v2503
    %v3652 = vunpack.c.h.b16 %v2503
    %v3653 = vunpack.c.l.b16 %v2504
    %v3654 = vunpack.c.h.b16 %v2504
    %v3655 = vunpack.c.l.b16 %v2505
    %v3656 = vunpack.c.h.b16 %v2505
    %v3657 = vunpack.c.l.b16 %v2506
    %v3658 = vunpack.c.h.b16 %v2506
    %v3659 = vunpack.c.l.b16 %v2507
    %v3660 = vunpack.c.h.b16 %v2507
    %v3661 = vunpack.c.l.b16 %v2508
    %v3662 = vunpack.c.h.b16 %v2508
    %v3663 = vunpack.c.l.b16 %v2509
    %v3664 = vunpack.c.h.b16 %v2509
    %v3665 = vunpack.c.l.b16 %v2510
    %v3666 = vunpack.c.h.b16 %v2510
    %v3667 = vunpack.c.l.b16 %v2511
    %v3668 = vunpack.c.h.b16 %v2511
    %v3669 = vunpack.c.l.b16 %v2512
    %v3670 = vunpack.c.h.b16 %v2512
    %v3671 = vunpack.c.l.b16 %v2513
    %v3672 = vunpack.c.h.b16 %v2513
    %v3673 = vunpack.c.l.b16 %v2514
    %v3674 = vunpack.c.h.b16 %v2514
    %v3675 = vunpack.c.l.b16 %v2515
    %v3676 = vunpack.c.h.b16 %v2515
    %v3677 = vunpack.c.l.b16 %v2516
    %v3678 = vunpack.c.h.b16 %v2516
    %v3679 = vunpack.c.l.b16 %v2517
    %v3680 = vunpack.c.h.b16 %v2517
    %v3681 = vunpack.c.l.b16 %v2518
    %v3682 = vunpack.c.h.b16 %v2518
    %v3683 = vunpack.c.l.b16 %v2519
    %v3684 = vunpack.c.h.b16 %v2519
    %v3685 = vunpack.c.l.b16 %v2520
    %v3686 = vunpack.c.h.b16 %v2520
    %v3687 = vunpack.c.l.b16 %v2521
    %v3688 = vunpack.c.h.b16 %v2521
    %v3689 = vunpack.c.l.b16 %v2522
    %v3690 = vunpack.c.h.b16 %v2522
    %v3691 = vunpack.c.l.b16 %v2523
    %v3692 = vunpack.c.h.b16 %v2523
    %v3693 = vunpack.c.l.b16 %v2524
    %v3694 = vunpack.c.h.b16 %v2524
    %v3695 = vunpack.c.l.b16 %v2525
    %v3696 = vunpack.c.h.b16 %v2525
    %v3697 = vunpack.c.l.b16 %v2526
    %v3698 = vunpack.c.h.b16 %v2526
    %v3699 = vunpack.c.l.b16 %v2527
    %v3700 = vunpack.c.h.b16 %v2527
    %v3701 = vunpack.c.l.b16 %v2528
    %v3702 = vunpack.c.h.b16 %v2528
    %v3703 = vunpack.c.l.b16 %v2529
    %v3704 = vunpack.c.h.b16 %v2529
    %v3705 = vunpack.c.l.b16 %v2530
    %v3706 = vunpack.c.h.b16 %v2530
    %v3707 = vunpack.c.l.b16 %v2531
    %v3708 = vunpack.c.h.b16 %v2531
    %v3709 = vunpack.c.l.b16 %v2532
    %v3710 = vunpack.c.h.b16 %v2532
    %v3711 = vunpack.c.l.b16 %v2533
    %v3712 = vunpack.c.h.b16 %v2533
    %v3713 = vunpack.c.l.b16 %v2534
    %v3714 = vunpack.c.h.b16 %v2534
    %v3715 = vunpack.c.l.b16 %v2535
    %v3716 = vunpack.c.h.b16 %v2535
    %v3717 = vunpack.c.l.b16 %v2536
    %v3718 = vunpack.c.h.b16 %v2536
    %v3719 = vunpack.c.l.b16 %v2537
    %v3720 = vunpack.c.h.b16 %v2537
    %v3721 = vunpack.c.l.b16 %v2538
    %v3722 = vunpack.c.h.b16 %v2538
    %v3723 = vunpack.c.l.b16 %v2539
    %v3724 = vunpack.c.h.b16 %v2539
    %v3725 = vunpack.c.l.b16 %v2540
    %v3726 = vunpack.c.h.b16 %v2540
    %v3727 = vunpack.c.l.b16 %v2541
    %v3728 = vunpack.c.h.b16 %v2541
    %v3729 = vunpack.c.l.b16 %v2542
    %v3730 = vunpack.c.h.b16 %v2542
    %v3731 = vunpack.c.l.b16 %v2543
    %v3732 = vunpack.c.h.b16 %v2543
    %v3733 = vunpack.c.l.b16 %v2544
    %v3734 = vunpack.c.h.b16 %v2544
    %v3735 = vunpack.c.l.b16 %v2545
    %v3736 = vunpack.c.h.b16 %v2545
    %v3737 = vunpack.c.l.b16 %v2546
    %v3738 = vunpack.c.h.b16 %v2546
    %v3739 = vunpack.c.l.b16 %v2547
    %v3740 = vunpack.c.h.b16 %v2547
    %v3741 = vunpack.c.l.b16 %v2548
    %v3742 = vunpack.c.h.b16 %v2548
    %v3743 = vunpack.c.l.b16 %v2549
    %v3744 = vunpack.c.h.b16 %v2549
    %v3745 = vunpack.c.l.b16 %v2550
    %v3746 = vunpack.c.h.b16 %v2550
    %v3747 = vunpack.c.l.b16 %v2551
    %v3748 = vunpack.c.h.b16 %v2551
    %v3749 = vunpack.c.l.b16 %v2552
    %v3750 = vunpack.c.h.b16 %v2552
    %v3751 = vunpack.c.l.b16 %v2553
    %v3752 = vunpack.c.h.b16 %v2553
    %v3753 = vunpack.c.l.b16 %v2554
    %v3754 = vunpack.c.h.b16 %v2554
    %v3755 = vunpack.c.l.b16 %v2555
    %v3756 = vunpack.c.h.b16 %v2555
    %v3757 = vunpack.c.l.b16 %v2556
    %v3758 = vunpack.c.h.b16 %v2556
    %v3759 = vunpack.c.l.b16 %v2557
    %v3760 = vunpack.c.h.b16 %v2557
    %v3761 = vunpack.c.l.b16 %v2558
    %v3762 = vunpack.c.h.b16 %v2558
    %v3763 = vunpack.c.l.b16 %v2559
    %v3764 = vunpack.c.h.b16 %v2559
    %v3765 = vunpack.c.l.b16 %v2560
    %v3766 = vunpack.c.h.b16 %v2560
    %v3767 = vunpack.c.l.b16 %v2561
    %v3768 = vunpack.c.h.b16 %v2561
    %v3769 = vunpack.c.l.b16 %v2562
    %v3770 = vunpack.c.h.b16 %v2562
    %v3771 = vunpack.c.l.b16 %v2563
    %v3772 = vunpack.c.h.b16 %v2563
    %v3773 = vunpack.c.l.b16 %v2564
    %v3774 = vunpack.c.h.b16 %v2564
    %v3775 = vpack.c.b16 %v2979, %v2975
    %v3776 = vpack.c.b16 %v2980, %v2976
    %v3777 = vpack.c.b16 %v2981, %v2977
    %v3778 = vpack.c.b16 %v2982, %v2978
    %v3779 = vpack.c.b16 %v2987, %v2983
    %v3780 = vpack.c.b16 %v2988, %v2984
    %v3781 = vpack.c.b16 %v2989, %v2985
    %v3782 = vpack.c.b16 %v2990, %v2986
    %v3783 = vpack.c.b16 %v2995, %v2991
    %v3784 = vpack.c.b16 %v2996, %v2992
    %v3785 = vpack.c.b16 %v2997, %v2993
    %v3786 = vpack.c.b16 %v2998, %v2994
    %v3787 = vpack.c.b16 %v3003, %v2999
    %v3788 = vpack.c.b16 %v3004, %v3000
    %v3789 = vpack.c.b16 %v3005, %v3001
    %v3790 = vpack.c.b16 %v3006, %v3002
    %v3791 = vpack.c.b16 %v3011, %v3007
    %v3792 = vpack.c.b16 %v3012, %v3008
    %v3793 = vpack.c.b16 %v3013, %v3009
    %v3794 = vpack.c.b16 %v3014, %v3010
    %v3795 = vpack.c.b16 %v3019, %v3015
    %v3796 = vpack.c.b16 %v3020, %v3016
    %v3797 = vpack.c.b16 %v3021, %v3017
    %v3798 = vpack.c.b16 %v3022, %v3018
    %v3799 = vpack.c.b16 %v3027, %v3023
    %v3800 = vpack.c.b16 %v3028, %v3024
    %v3801 = vpack.c.b16 %v3029, %v3025
    %v3802 = vpack.c.b16 %v3030, %v3026
    %v3803 = vpack.c.b16 %v3035, %v3031
    %v3804 = vpack.c.b16 %v3036, %v3032
    %v3805 = vpack.c.b16 %v3037, %v3033
    %v3806 = vpack.c.b16 %v3038, %v3034
    %v3807 = vpack.c.b16 %v3043, %v3039
    %v3808 = vpack.c.b16 %v3044, %v3040
    %v3809 = vpack.c.b16 %v3045, %v3041
    %v3810 = vpack.c.b16 %v3046, %v3042
    %v3811 = vpack.c.b16 %v3051, %v3047
    %v3812 = vpack.c.b16 %v3052, %v3048
    %v3813 = vpack.c.b16 %v3053, %v3049
    %v3814 = vpack.c.b16 %v3054, %v3050
    %v3815 = vpack.c.b16 %v3059, %v3055
    %v3816 = vpack.c.b16 %v3060, %v3056
    %v3817 = vpack.c.b16 %v3061, %v3057
    %v3818 = vpack.c.b16 %v3062, %v3058
    %v3819 = vpack.c.b16 %v3067, %v3063
    %v3820 = vpack.c.b16 %v3068, %v3064
    %v3821 = vpack.c.b16 %v3069, %v3065
    %v3822 = vpack.c.b16 %v3070, %v3066
    %v3823 = vpack.c.b16 %v3075, %v3071
    %v3824 = vpack.c.b16 %v3076, %v3072
    %v3825 = vpack.c.b16 %v3077, %v3073
    %v3826 = vpack.c.b16 %v3078, %v3074
    %v3827 = vpack.c.b16 %v3083, %v3079
    %v3828 = vpack.c.b16 %v3084, %v3080
    %v3829 = vpack.c.b16 %v3085, %v3081
    %v3830 = vpack.c.b16 %v3086, %v3082
    %v3831 = vpack.c.b16 %v3091, %v3087
    %v3832 = vpack.c.b16 %v3092, %v3088
    %v3833 = vpack.c.b16 %v3093, %v3089
    %v3834 = vpack.c.b16 %v3094, %v3090
    %v3835 = vpack.c.b16 %v3099, %v3095
    %v3836 = vpack.c.b16 %v3100, %v3096
    %v3837 = vpack.c.b16 %v3101, %v3097
    %v3838 = vpack.c.b16 %v3102, %v3098
    %v3839 = vpack.c.b16 %v3107, %v3103
    %v3840 = vpack.c.b16 %v3108, %v3104
    %v3841 = vpack.c.b16 %v3109, %v3105
    %v3842 = vpack.c.b16 %v3110, %v3106
    %v3843 = vpack.c.b16 %v3115, %v3111
    %v3844 = vpack.c.b16 %v3116, %v3112
    %v3845 = vpack.c.b16 %v3117, %v3113
    %v3846 = vpack.c.b16 %v3118, %v3114
    %v3847 = vpack.c.b16 %v3123, %v3119
    %v3848 = vpack.c.b16 %v3124, %v3120
    %v3849 = vpack.c.b16 %v3125, %v3121
    %v3850 = vpack.c.b16 %v3126, %v3122
    %v3851 = vpack.c.b16 %v3131, %v3127
    %v3852 = vpack.c.b16 %v3132, %v3128
    %v3853 = vpack.c.b16 %v3133, %v3129
    %v3854 = vpack.c.b16 %v3134, %v3130
    %v3855 = vpack.c.b16 %v3139, %v3135
    %v3856 = vpack.c.b16 %v3140, %v3136
    %v3857 = vpack.c.b16 %v3141, %v3137
    %v3858 = vpack.c.b16 %v3142, %v3138
    %v3859 = vpack.c.b16 %v3147, %v3143
    %v3860 = vpack.c.b16 %v3148, %v3144
    %v3861 = vpack.c.b16 %v3149, %v3145
    %v3862 = vpack.c.b16 %v3150, %v3146
    %v3863 = vpack.c.b16 %v3155, %v3151
    %v3864 = vpack.c.b16 %v3156, %v3152
    %v3865 = vpack.c.b16 %v3157, %v3153
    %v3866 = vpack.c.b16 %v3158, %v3154
    %v3867 = vpack.c.b16 %v3163, %v3159
    %v3868 = vpack.c.b16 %v3164, %v3160
    %v3869 = vpack.c.b16 %v3165, %v3161
    %v3870 = vpack.c.b16 %v3166, %v3162
    %v3871 = vpack.c.b16 %v3171, %v3167
    %v3872 = vpack.c.b16 %v3172, %v3168
    %v3873 = vpack.c.b16 %v3173, %v3169
    %v3874 = vpack.c.b16 %v3174, %v3170
    %v3875 = vpack.c.b16 %v3179, %v3175
    %v3876 = vpack.c.b16 %v3180, %v3176
    %v3877 = vpack.c.b16 %v3181, %v3177
    %v3878 = vpack.c.b16 %v3182, %v3178
    %v3879 = vpack.c.b16 %v3187, %v3183
    %v3880 = vpack.c.b16 %v3188, %v3184
    %v3881 = vpack.c.b16 %v3189, %v3185
    %v3882 = vpack.c.b16 %v3190, %v3186
    %v3883 = vpack.c.b16 %v3195, %v3191
    %v3884 = vpack.c.b16 %v3196, %v3192
    %v3885 = vpack.c.b16 %v3197, %v3193
    %v3886 = vpack.c.b16 %v3198, %v3194
    %v3887 = vpack.c.b16 %v3203, %v3199
    %v3888 = vpack.c.b16 %v3204, %v3200
    %v3889 = vpack.c.b16 %v3205, %v3201
    %v3890 = vpack.c.b16 %v3206, %v3202
    %v3891 = vpack.c.b16 %v3211, %v3207
    %v3892 = vpack.c.b16 %v3212, %v3208
    %v3893 = vpack.c.b16 %v3213, %v3209
    %v3894 = vpack.c.b16 %v3214, %v3210
    %v3895 = vpack.c.b16 %v3219, %v3215
    %v3896 = vpack.c.b16 %v3220, %v3216
    %v3897 = vpack.c.b16 %v3221, %v3217
    %v3898 = vpack.c.b16 %v3222, %v3218
    %v3899 = vpack.c.b16 %v3227, %v3223
    %v3900 = vpack.c.b16 %v3228, %v3224
    %v3901 = vpack.c.b16 %v3229, %v3225
    %v3902 = vpack.c.b16 %v3230, %v3226
    %v3903 = vpack.c.b16 %v3235, %v3231
    %v3904 = vpack.c.b16 %v3236, %v3232
    %v3905 = vpack.c.b16 %v3237, %v3233
    %v3906 = vpack.c.b16 %v3238, %v3234
    %v3907 = vpack.c.b16 %v3243, %v3239
    %v3908 = vpack.c.b16 %v3244, %v3240
    %v3909 = vpack.c.b16 %v3245, %v3241
    %v3910 = vpack.c.b16 %v3246, %v3242
    %v3911 = vpack.c.b16 %v3251, %v3247
    %v3912 = vpack.c.b16 %v3252, %v3248
    %v3913 = vpack.c.b16 %v3253, %v3249
    %v3914 = vpack.c.b16 %v3254, %v3250
    %v3915 = vpack.c.b16 %v3259, %v3255
    %v3916 = vpack.c.b16 %v3260, %v3256
    %v3917 = vpack.c.b16 %v3261, %v3257
    %v3918 = vpack.c.b16 %v3262, %v3258
    %v3919 = vpack.c.b16 %v3267, %v3263
    %v3920 = vpack.c.b16 %v3268, %v3264
    %v3921 = vpack.c.b16 %v3269, %v3265
    %v3922 = vpack.c.b16 %v3270, %v3266
    %v3923 = vpack.c.b16 %v3275, %v3271
    %v3924 = vpack.c.b16 %v3276, %v3272
    %v3925 = vpack.c.b16 %v3277, %v3273
    %v3926 = vpack.c.b16 %v3278, %v3274
    %v3927 = vpack.c.b16 %v3283, %v3279
    %v3928 = vpack.c.b16 %v3284, %v3280
    %v3929 = vpack.c.b16 %v3285, %v3281
    %v3930 = vpack.c.b16 %v3286, %v3282
    %v3931 = vpack.c.b16 %v3291, %v3287
    %v3932 = vpack.c.b16 %v3292, %v3288
    %v3933 = vpack.c.b16 %v3293, %v3289
    %v3934 = vpack.c.b16 %v3294, %v3290
    %v3935 = vpack.c.b16 %v3299, %v3295
    %v3936 = vpack.c.b16 %v3300, %v3296
    %v3937 = vpack.c.b16 %v3301, %v3297
    %v3938 = vpack.c.b16 %v3302, %v3298
    %v3939 = vpack.c.b16 %v3307, %v3303
    %v3940 = vpack.c.b16 %v3308, %v3304
    %v3941 = vpack.c.b16 %v3309, %v3305
    %v3942 = vpack.c.b16 %v3310, %v3306
    %v3943 = vpack.c.b16 %v3315, %v3311
    %v3944 = vpack.c.b16 %v3316, %v3312
    %v3945 = vpack.c.b16 %v3317, %v3313
    %v3946 = vpack.c.b16 %v3318, %v3314
    %v3947 = vpack.c.b16 %v3323, %v3319
    %v3948 = vpack.c.b16 %v3324, %v3320
    %v3949 = vpack.c.b16 %v3325, %v3321
    %v3950 = vpack.c.b16 %v3326, %v3322
    %v3951 = vpack.c.b16 %v3331, %v3327
    %v3952 = vpack.c.b16 %v3332, %v3328
    %v3953 = vpack.c.b16 %v3333, %v3329
    %v3954 = vpack.c.b16 %v3334, %v3330
    %v3955 = vpack.c.b16 %v3339, %v3335
    %v3956 = vpack.c.b16 %v3340, %v3336
    %v3957 = vpack.c.b16 %v3341, %v3337
    %v3958 = vpack.c.b16 %v3342, %v3338
    %v3959 = vpack.c.b16 %v3347, %v3343
    %v3960 = vpack.c.b16 %v3348, %v3344
    %v3961 = vpack.c.b16 %v3349, %v3345
    %v3962 = vpack.c.b16 %v3350, %v3346
    %v3963 = vpack.c.b16 %v3355, %v3351
    %v3964 = vpack.c.b16 %v3356, %v3352
    %v3965 = vpack.c.b16 %v3357, %v3353
    %v3966 = vpack.c.b16 %v3358, %v3354
    %v3967 = vpack.c.b16 %v3363, %v3359
    %v3968 = vpack.c.b16 %v3364, %v3360
    %v3969 = vpack.c.b16 %v3365, %v3361
    %v3970 = vpack.c.b16 %v3366, %v3362
    %v3971 = vpack.c.b16 %v3371, %v3367
    %v3972 = vpack.c.b16 %v3372, %v3368
    %v3973 = vpack.c.b16 %v3373, %v3369
    %v3974 = vpack.c.b16 %v3374, %v3370
    %v3975 = vpack.c.b16 %v3379, %v3375
    %v3976 = vpack.c.b16 %v3380, %v3376
    %v3977 = vpack.c.b16 %v3381, %v3377
    %v3978 = vpack.c.b16 %v3382, %v3378
    %v3979 = vpack.c.b16 %v3387, %v3383
    %v3980 = vpack.c.b16 %v3388, %v3384
    %v3981 = vpack.c.b16 %v3389, %v3385
    %v3982 = vpack.c.b16 %v3390, %v3386
    %v3983 = vpack.c.b16 %v3395, %v3391
    %v3984 = vpack.c.b16 %v3396, %v3392
    %v3985 = vpack.c.b16 %v3397, %v3393
    %v3986 = vpack.c.b16 %v3398, %v3394
    %v3987 = vpack.c.b16 %v3403, %v3399
    %v3988 = vpack.c.b16 %v3404, %v3400
    %v3989 = vpack.c.b16 %v3405, %v3401
    %v3990 = vpack.c.b16 %v3406, %v3402
    %v3991 = vpack.c.b16 %v3411, %v3407
    %v3992 = vpack.c.b16 %v3412, %v3408
    %v3993 = vpack.c.b16 %v3413, %v3409
    %v3994 = vpack.c.b16 %v3414, %v3410
    %v3995 = vpack.c.b16 %v3419, %v3415
    %v3996 = vpack.c.b16 %v3420, %v3416
    %v3997 = vpack.c.b16 %v3421, %v3417
    %v3998 = vpack.c.b16 %v3422, %v3418
    %v3999 = vpack.c.b16 %v3427, %v3423
    %v4000 = vpack.c.b16 %v3428, %v3424
    %v4001 = vpack.c.b16 %v3429, %v3425
    %v4002 = vpack.c.b16 %v3430, %v3426
    %v4003 = vpack.c.b16 %v3435, %v3431
    %v4004 = vpack.c.b16 %v3436, %v3432
    %v4005 = vpack.c.b16 %v3437, %v3433
    %v4006 = vpack.c.b16 %v3438, %v3434
    %v4007 = vpack.c.b16 %v3443, %v3439
    %v4008 = vpack.c.b16 %v3444, %v3440
    %v4009 = vpack.c.b16 %v3445, %v3441
    %v4010 = vpack.c.b16 %v3446, %v3442
    %v4011 = vpack.c.b16 %v3451, %v3447
    %v4012 = vpack.c.b16 %v3452, %v3448
    %v4013 = vpack.c.b16 %v3453, %v3449
    %v4014 = vpack.c.b16 %v3454, %v3450
    %v4015 = vpack.c.b16 %v3459, %v3455
    %v4016 = vpack.c.b16 %v3460, %v3456
    %v4017 = vpack.c.b16 %v3461, %v3457
    %v4018 = vpack.c.b16 %v3462, %v3458
    %v4019 = vpack.c.b16 %v3467, %v3463
    %v4020 = vpack.c.b16 %v3468, %v3464
    %v4021 = vpack.c.b16 %v3469, %v3465
    %v4022 = vpack.c.b16 %v3470, %v3466
    %v4023 = vpack.c.b16 %v3475, %v3471
    %v4024 = vpack.c.b16 %v3476, %v3472
    %v4025 = vpack.c.b16 %v3477, %v3473
    %v4026 = vpack.c.b16 %v3478, %v3474
    %v4027 = vpack.c.b16 %v3483, %v3479
    %v4028 = vpack.c.b16 %v3484, %v3480
    %v4029 = vpack.c.b16 %v3485, %v3481
    %v4030 = vpack.c.b16 %v3486, %v3482
    %v4031 = vpack.c.b16 %v3491, %v3487
    %v4032 = vpack.c.b16 %v3492, %v3488
    %v4033 = vpack.c.b16 %v3493, %v3489
    %v4034 = vpack.c.b16 %v3494, %v3490
    %v4035 = vpack.c.b16 %v3499, %v3495
    %v4036 = vpack.c.b16 %v3500, %v3496
    %v4037 = vpack.c.b16 %v3501, %v3497
    %v4038 = vpack.c.b16 %v3502, %v3498
    %v4039 = vpack.c.b16 %v3507, %v3503
    %v4040 = vpack.c.b16 %v3508, %v3504
    %v4041 = vpack.c.b16 %v3509, %v3505
    %v4042 = vpack.c.b16 %v3510, %v3506
    %v4043 = vpack.c.b16 %v3515, %v3511
    %v4044 = vpack.c.b16 %v3516, %v3512
    %v4045 = vpack.c.b16 %v3517, %v3513
    %v4046 = vpack.c.b16 %v3518, %v3514
    %v4047 = vpack.c.b16 %v3523, %v3519
    %v4048 = vpack.c.b16 %v3524, %v3520
    %v4049 = vpack.c.b16 %v3525, %v3521
    %v4050 = vpack.c.b16 %v3526, %v3522
    %v4051 = vpack.c.b16 %v3531, %v3527
    %v4052 = vpack.c.b16 %v3532, %v3528
    %v4053 = vpack.c.b16 %v3533, %v3529
    %v4054 = vpack.c.b16 %v3534, %v3530
    %v4055 = vpack.c.b16 %v3539, %v3535
    %v4056 = vpack.c.b16 %v3540, %v3536
    %v4057 = vpack.c.b16 %v3541, %v3537
    %v4058 = vpack.c.b16 %v3542, %v3538
    %v4059 = vpack.c.b16 %v3547, %v3543
    %v4060 = vpack.c.b16 %v3548, %v3544
    %v4061 = vpack.c.b16 %v3549, %v3545
    %v4062 = vpack.c.b16 %v3550, %v3546
    %v4063 = vpack.c.b16 %v3555, %v3551
    %v4064 = vpack.c.b16 %v3556, %v3552
    %v4065 = vpack.c.b16 %v3557, %v3553
    %v4066 = vpack.c.b16 %v3558, %v3554
    %v4067 = vpack.c.b16 %v3563, %v3559
    %v4068 = vpack.c.b16 %v3564, %v3560
    %v4069 = vpack.c.b16 %v3565, %v3561
    %v4070 = vpack.c.b16 %v3566, %v3562
    %v4071 = vpack.c.b16 %v3571, %v3567
    %v4072 = vpack.c.b16 %v3572, %v3568
    %v4073 = vpack.c.b16 %v3573, %v3569
    %v4074 = vpack.c.b16 %v3574, %v3570
    %v4075 = vpack.c.b16 %v3579, %v3575
    %v4076 = vpack.c.b16 %v3580, %v3576
    %v4077 = vpack.c.b16 %v3581, %v3577
    %v4078 = vpack.c.b16 %v3582, %v3578
    %v4079 = vpack.c.b16 %v3587, %v3583
    %v4080 = vpack.c.b16 %v3588, %v3584
    %v4081 = vpack.c.b16 %v3589, %v3585
    %v4082 = vpack.c.b16 %v3590, %v3586
    %v4083 = vpack.c.b16 %v3595, %v3591
    %v4084 = vpack.c.b16 %v3596, %v3592
    %v4085 = vpack.c.b16 %v3597, %v3593
    %v4086 = vpack.c.b16 %v3598, %v3594
    %v4087 = vpack.c.b16 %v3603, %v3599
    %v4088 = vpack.c.b16 %v3604, %v3600
    %v4089 = vpack.c.b16 %v3605, %v3601
    %v4090 = vpack.c.b16 %v3606, %v3602
    %v4091 = vpack.c.b16 %v3611, %v3607
    %v4092 = vpack.c.b16 %v3612, %v3608
    %v4093 = vpack.c.b16 %v3613, %v3609
    %v4094 = vpack.c.b16 %v3614, %v3610
    %v4095 = vpack.c.b16 %v3619, %v3615
    %v4096 = vpack.c.b16 %v3620, %v3616
    %v4097 = vpack.c.b16 %v3621, %v3617
    %v4098 = vpack.c.b16 %v3622, %v3618
    %v4099 = vpack.c.b16 %v3627, %v3623
    %v4100 = vpack.c.b16 %v3628, %v3624
    %v4101 = vpack.c.b16 %v3629, %v3625
    %v4102 = vpack.c.b16 %v3630, %v3626
    %v4103 = vpack.c.b16 %v3635, %v3631
    %v4104 = vpack.c.b16 %v3636, %v3632
    %v4105 = vpack.c.b16 %v3637, %v3633
    %v4106 = vpack.c.b16 %v3638, %v3634
    %v4107 = vpack.c.b16 %v3643, %v3639
    %v4108 = vpack.c.b16 %v3644, %v3640
    %v4109 = vpack.c.b16 %v3645, %v3641
    %v4110 = vpack.c.b16 %v3646, %v3642
    %v4111 = vpack.c.b16 %v3651, %v3647
    %v4112 = vpack.c.b16 %v3652, %v3648
    %v4113 = vpack.c.b16 %v3653, %v3649
    %v4114 = vpack.c.b16 %v3654, %v3650
    %v4115 = vpack.c.b16 %v3659, %v3655
    %v4116 = vpack.c.b16 %v3660, %v3656
    %v4117 = vpack.c.b16 %v3661, %v3657
    %v4118 = vpack.c.b16 %v3662, %v3658
    %v4119 = vpack.c.b16 %v3667, %v3663
    %v4120 = vpack.c.b16 %v3668, %v3664
    %v4121 = vpack.c.b16 %v3669, %v3665
    %v4122 = vpack.c.b16 %v3670, %v3666
    %v4123 = vpack.c.b16 %v3675, %v3671
    %v4124 = vpack.c.b16 %v3676, %v3672
    %v4125 = vpack.c.b16 %v3677, %v3673
    %v4126 = vpack.c.b16 %v3678, %v3674
    %v4127 = vpack.c.b16 %v3683, %v3679
    %v4128 = vpack.c.b16 %v3684, %v3680
    %v4129 = vpack.c.b16 %v3685, %v3681
    %v4130 = vpack.c.b16 %v3686, %v3682
    %v4131 = vpack.c.b16 %v3691, %v3687
    %v4132 = vpack.c.b16 %v3692, %v3688
    %v4133 = vpack.c.b16 %v3693, %v3689
    %v4134 = vpack.c.b16 %v3694, %v3690
    %v4135 = vpack.c.b16 %v3699, %v3695
    %v4136 = vpack.c.b16 %v3700, %v3696
    %v4137 = vpack.c.b16 %v3701, %v3697
    %v4138 = vpack.c.b16 %v3702, %v3698
    %v4139 = vpack.c.b16 %v3707, %v3703
    %v4140 = vpack.c.b16 %v3708, %v3704
    %v4141 = vpack.c.b16 %v3709, %v3705
    %v4142 = vpack.c.b16 %v3710, %v3706
    %v4143 = vpack.c.b16 %v3715, %v3711
    %v4144 = vpack.c.b16 %v3716, %v3712
    %v4145 = vpack.c.b16 %v3717, %v3713
    %v4146 = vpack.c.b16 %v3718, %v3714
    %v4147 = vpack.c.b16 %v3723, %v3719
    %v4148 = vpack.c.b16 %v3724, %v3720
    %v4149 = vpack.c.b16 %v3725, %v3721
    %v4150 = vpack.c.b16 %v3726, %v3722
    %v4151 = vpack.c.b16 %v3731, %v3727
    %v4152 = vpack.c.b16 %v3732, %v3728
    %v4153 = vpack.c.b16 %v3733, %v3729
    %v4154 = vpack.c.b16 %v3734, %v3730
    %v4155 = vpack.c.b16 %v3739, %v3735
    %v4156 = vpack.c.b16 %v3740, %v3736
    %v4157 = vpack.c.b16 %v3741, %v3737
    %v4158 = vpack.c.b16 %v3742, %v3738
    %v4159 = vpack.c.b16 %v3747, %v3743
    %v4160 = vpack.c.b16 %v3748, %v3744
    %v4161 = vpack.c.b16 %v3749, %v3745
    %v4162 = vpack.c.b16 %v3750, %v3746
    %v4163 = vpack.c.b16 %v3755, %v3751
    %v4164 = vpack.c.b16 %v3756, %v3752
    %v4165 = vpack.c.b16 %v3757, %v3753
    %v4166 = vpack.c.b16 %v3758, %v3754
    %v4167 = vpack.c.b16 %v3763, %v3759
    %v4168 = vpack.c.b16 %v3764, %v3760
    %v4169 = vpack.c.b16 %v3765, %v3761
    %v4170 = vpack.c.b16 %v3766, %v3762
    %v4171 = vpack.c.b16 %v3771, %v3767
    %v4172 = vpack.c.b16 %v3772, %v3768
    %v4173 = vpack.c.b16 %v3773, %v3769
    %v4174 = vpack.c.b16 %v3774, %v3770
    %v4576 = vsel %vm2001, %v2164, 0
    %4578 = vmatpush.bf16.msra.mxu0 %v3803
    %4579 = vmatpush.bf16.msra.mxu0 %v3799
    %4580 = vmatpush.bf16.msra.mxu0 %v3795
    %4581 = vmatpush.bf16.msra.mxu0 %v3791
    %4582 = vmatpush.bf16.msra.mxu0 %v3787
    %4583 = vmatpush.bf16.msra.mxu0 %v3783
    %4584 = vmatpush.bf16.msra.mxu0 %v3779
    %4585 = vmatpush.bf16.msra.mxu0 %v3775
    %4586 = vmatmul.bf16.gmra.mxu0 %v2152
    %v4587 = vpop.f32.mrf.mxu0
    %v4588 = vadd.f32 %v2567, %v4587
    %v4589 = vpop.f32.mrf.mxu0
    %4590 = vdwg.mxu0
    %4591 = vmatpush.bf16.msra.mxu0 %v3835
    %4592 = vmatpush.bf16.msra.mxu0 %v3831
    %4593 = vmatpush.bf16.msra.mxu0 %v3827
    %4594 = vmatpush.bf16.msra.mxu0 %v3823
    %4595 = vmatpush.bf16.msra.mxu0 %v3819
    %4596 = vmatpush.bf16.msra.mxu0 %v3815
    %4597 = vmatpush.bf16.msra.mxu0 %v3811
    %4598 = vmatpush.bf16.msra.mxu0 %v3807
    %4599 = vmatmul.bf16.gmra.mxu0 %v2153
    %v4600 = vpop.f32.mrf.mxu0
    %v4601 = vadd.f32 %v4588, %v4600
    %v4602 = vpop.f32.mrf.mxu0
    %4603 = vdwg.mxu0
    %4604 = vmatpush.bf16.msra.mxu0 %v3867
    %4605 = vmatpush.bf16.msra.mxu0 %v3863
    %4606 = vmatpush.bf16.msra.mxu0 %v3859
    %4607 = vmatpush.bf16.msra.mxu0 %v3855
    %4608 = vmatpush.bf16.msra.mxu0 %v3851
    %4609 = vmatpush.bf16.msra.mxu0 %v3847
    %4610 = vmatpush.bf16.msra.mxu0 %v3843
    %4611 = vmatpush.bf16.msra.mxu0 %v3839
    %4612 = vmatmul.bf16.gmra.mxu0 %v2154
    %v4613 = vpop.f32.mrf.mxu0
    %v4614 = vadd.f32 %v4601, %v4613
    %v4615 = vpop.f32.mrf.mxu0
    %4616 = vdwg.mxu0
    %4617 = vmatpush.bf16.msra.mxu0 %v3899
    %4618 = vmatpush.bf16.msra.mxu0 %v3895
    %4619 = vmatpush.bf16.msra.mxu0 %v3891
    %4620 = vmatpush.bf16.msra.mxu0 %v3887
    %4621 = vmatpush.bf16.msra.mxu0 %v3883
    %4622 = vmatpush.bf16.msra.mxu0 %v3879
    %4623 = vmatpush.bf16.msra.mxu0 %v3875
    %4624 = vmatpush.bf16.msra.mxu0 %v3871
    %4625 = vmatmul.bf16.gmra.mxu0 %v2155
    %v4626 = vpop.f32.mrf.mxu0
    %v4627 = vadd.f32 %v4614, %v4626
    %v4628 = vpop.f32.mrf.mxu0
    %4629 = vdwg.mxu0
    %4630 = vmatpush.bf16.msra.mxu0 %v3931
    %4631 = vmatpush.bf16.msra.mxu0 %v3927
    %4632 = vmatpush.bf16.msra.mxu0 %v3923
    %4633 = vmatpush.bf16.msra.mxu0 %v3919
    %4634 = vmatpush.bf16.msra.mxu0 %v3915
    %4635 = vmatpush.bf16.msra.mxu0 %v3911
    %4636 = vmatpush.bf16.msra.mxu0 %v3907
    %4637 = vmatpush.bf16.msra.mxu0 %v3903
    %4638 = vmatmul.bf16.gmra.mxu0 %v2156
    %v4639 = vpop.f32.mrf.mxu0
    %v4640 = vadd.f32 %v4627, %v4639
    %v4641 = vpop.f32.mrf.mxu0
    %4642 = vdwg.mxu0
    %4643 = vmatpush.bf16.msra.mxu0 %v3963
    %4644 = vmatpush.bf16.msra.mxu0 %v3959
    %4645 = vmatpush.bf16.msra.mxu0 %v3955
    %4646 = vmatpush.bf16.msra.mxu0 %v3951
    %4647 = vmatpush.bf16.msra.mxu0 %v3947
    %4648 = vmatpush.bf16.msra.mxu0 %v3943
    %4649 = vmatpush.bf16.msra.mxu0 %v3939
    %4650 = vmatpush.bf16.msra.mxu0 %v3935
    %4651 = vmatmul.bf16.gmra.mxu0 %v2157
    %v4652 = vpop.f32.mrf.mxu0
    %v4653 = vadd.f32 %v4640, %v4652
    %v4654 = vpop.f32.mrf.mxu0
    %4655 = vdwg.mxu0
    %4656 = vmatpush.bf16.msra.mxu0 %v3995
    %4657 = vmatpush.bf16.msra.mxu0 %v3991
    %4658 = vmatpush.bf16.msra.mxu0 %v3987
    %4659 = vmatpush.bf16.msra.mxu0 %v3983
    %4660 = vmatpush.bf16.msra.mxu0 %v3979
    %4661 = vmatpush.bf16.msra.mxu0 %v3975
    %4662 = vmatpush.bf16.msra.mxu0 %v3971
    %4663 = vmatpush.bf16.msra.mxu0 %v3967
    %4664 = vmatmul.bf16.gmra.mxu0 %v2158
    %v4665 = vpop.f32.mrf.mxu0
    %v4666 = vadd.f32 %v4653, %v4665
    %v4667 = vpop.f32.mrf.mxu0
    %4668 = vdwg.mxu0
    %4669 = vmatpush.bf16.msra.mxu0 %v4027
    %4670 = vmatpush.bf16.msra.mxu0 %v4023
    %4671 = vmatpush.bf16.msra.mxu0 %v4019
    %4672 = vmatpush.bf16.msra.mxu0 %v4015
    %4673 = vmatpush.bf16.msra.mxu0 %v4011
    %4674 = vmatpush.bf16.msra.mxu0 %v4007
    %4675 = vmatpush.bf16.msra.mxu0 %v4003
    %4676 = vmatpush.bf16.msra.mxu0 %v3999
    %4677 = vmatmul.bf16.gmra.mxu0 %v2159
    %v4678 = vpop.f32.mrf.mxu0
    %v4679 = vadd.f32 %v4666, %v4678
    %v4680 = vpop.f32.mrf.mxu0
    %4681 = vdwg.mxu0
    %4682 = vmatpush.bf16.msra.mxu0 %v4059
    %4683 = vmatpush.bf16.msra.mxu0 %v4055
    %4684 = vmatpush.bf16.msra.mxu0 %v4051
    %4685 = vmatpush.bf16.msra.mxu0 %v4047
    %4686 = vmatpush.bf16.msra.mxu0 %v4043
    %4687 = vmatpush.bf16.msra.mxu0 %v4039
    %4688 = vmatpush.bf16.msra.mxu0 %v4035
    %4689 = vmatpush.bf16.msra.mxu0 %v4031
    %4690 = vmatmul.bf16.gmra.mxu0 %v2160
    %v4691 = vpop.f32.mrf.mxu0
    %v4692 = vadd.f32 %v4679, %v4691
    %v4693 = vpop.f32.mrf.mxu0
    %4694 = vdwg.mxu0
    %4695 = vmatpush.bf16.msra.mxu0 %v4091
    %4696 = vmatpush.bf16.msra.mxu0 %v4087
    %4697 = vmatpush.bf16.msra.mxu0 %v4083
    %4698 = vmatpush.bf16.msra.mxu0 %v4079
    %4699 = vmatpush.bf16.msra.mxu0 %v4075
    %4700 = vmatpush.bf16.msra.mxu0 %v4071
    %4701 = vmatpush.bf16.msra.mxu0 %v4067
    %4702 = vmatpush.bf16.msra.mxu0 %v4063
    %4703 = vmatmul.bf16.gmra.mxu0 %v2161
    %v4704 = vpop.f32.mrf.mxu0
    %v4705 = vadd.f32 %v4692, %v4704
    %v4706 = vpop.f32.mrf.mxu0
    %4707 = vdwg.mxu0
    %4708 = vmatpush.bf16.msra.mxu0 %v4123
    %4709 = vmatpush.bf16.msra.mxu0 %v4119
    %4710 = vmatpush.bf16.msra.mxu0 %v4115
    %4711 = vmatpush.bf16.msra.mxu0 %v4111
    %4712 = vmatpush.bf16.msra.mxu0 %v4107
    %4713 = vmatpush.bf16.msra.mxu0 %v4103
    %4714 = vmatpush.bf16.msra.mxu0 %v4099
    %4715 = vmatpush.bf16.msra.mxu0 %v4095
    %4716 = vmatmul.bf16.gmra.mxu0 %v2162
    %v4717 = vpop.f32.mrf.mxu0
    %v4718 = vadd.f32 %v4705, %v4717
    %v4719 = vpop.f32.mrf.mxu0
    %4720 = vdwg.mxu0
    %4721 = vmatpush.bf16.msra.mxu0 %v4155
    %4722 = vmatpush.bf16.msra.mxu0 %v4151
    %4723 = vmatpush.bf16.msra.mxu0 %v4147
    %4724 = vmatpush.bf16.msra.mxu0 %v4143
    %4725 = vmatpush.bf16.msra.mxu0 %v4139
    %4726 = vmatpush.bf16.msra.mxu0 %v4135
    %4727 = vmatpush.bf16.msra.mxu0 %v4131
    %4728 = vmatpush.bf16.msra.mxu0 %v4127
    %4729 = vmatmul.bf16.gmra.mxu0 %v2163
    %v4730 = vpop.f32.mrf.mxu0
    %v4731 = vadd.f32 %v4718, %v4730
    %v4732 = vpop.f32.mrf.mxu0
    %4733 = vdwg.mxu0
    %4734 = vmatpush.bf16.msra.mxu0 0
    %4735 = vmatpush.bf16.msra.mxu0 0
    %4736 = vmatpush.bf16.msra.mxu0 0
    %4737 = vmatpush.bf16.msra.mxu0 0
    %4738 = vmatpush.bf16.msra.mxu0 %v4171
    %4739 = vmatpush.bf16.msra.mxu0 %v4167
    %4740 = vmatpush.bf16.msra.mxu0 %v4163
    %4741 = vmatpush.bf16.msra.mxu0 %v4159
    %4742 = vmatmul.bf16.gmra.mxu0 %v4576
    %v4743 = vpop.f32.mrf.mxu0
    %v4744 = vadd.f32 %v4731, %v4743
    %v4745 = vpop.f32.mrf.mxu0
    %4746 = vdwg.mxu0
    %4747 = vmatpush.bf16.msra.mxu0 %v3804
    %4748 = vmatpush.bf16.msra.mxu0 %v3800
    %4749 = vmatpush.bf16.msra.mxu0 %v3796
    %4750 = vmatpush.bf16.msra.mxu0 %v3792
    %4751 = vmatpush.bf16.msra.mxu0 %v3788
    %4752 = vmatpush.bf16.msra.mxu0 %v3784
    %4753 = vmatpush.bf16.msra.mxu0 %v3780
    %4754 = vmatpush.bf16.msra.mxu0 %v3776
    %4755 = vmatmul.bf16.gmra.mxu0 %v2152
    %v4756 = vpop.f32.mrf.mxu0
    %v4757 = vadd.f32 %v2568, %v4756
    %v4758 = vpop.f32.mrf.mxu0
    %4759 = vdwg.mxu0
    %4760 = vmatpush.bf16.msra.mxu0 %v3836
    %4761 = vmatpush.bf16.msra.mxu0 %v3832
    %4762 = vmatpush.bf16.msra.mxu0 %v3828
    %4763 = vmatpush.bf16.msra.mxu0 %v3824
    %4764 = vmatpush.bf16.msra.mxu0 %v3820
    %4765 = vmatpush.bf16.msra.mxu0 %v3816
    %4766 = vmatpush.bf16.msra.mxu0 %v3812
    %4767 = vmatpush.bf16.msra.mxu0 %v3808
    %4768 = vmatmul.bf16.gmra.mxu0 %v2153
    %v4769 = vpop.f32.mrf.mxu0
    %v4770 = vadd.f32 %v4757, %v4769
    %v4771 = vpop.f32.mrf.mxu0
    %4772 = vdwg.mxu0
    %4773 = vmatpush.bf16.msra.mxu0 %v3868
    %4774 = vmatpush.bf16.msra.mxu0 %v3864
    %4775 = vmatpush.bf16.msra.mxu0 %v3860
    %4776 = vmatpush.bf16.msra.mxu0 %v3856
    %4777 = vmatpush.bf16.msra.mxu0 %v3852
    %4778 = vmatpush.bf16.msra.mxu0 %v3848
    %4779 = vmatpush.bf16.msra.mxu0 %v3844
    %4780 = vmatpush.bf16.msra.mxu0 %v3840
    %4781 = vmatmul.bf16.gmra.mxu0 %v2154
    %v4782 = vpop.f32.mrf.mxu0
    %v4783 = vadd.f32 %v4770, %v4782
    %v4784 = vpop.f32.mrf.mxu0
    %4785 = vdwg.mxu0
    %4786 = vmatpush.bf16.msra.mxu0 %v3900
    %4787 = vmatpush.bf16.msra.mxu0 %v3896
    %4788 = vmatpush.bf16.msra.mxu0 %v3892
    %4789 = vmatpush.bf16.msra.mxu0 %v3888
    %4790 = vmatpush.bf16.msra.mxu0 %v3884
    %4791 = vmatpush.bf16.msra.mxu0 %v3880
    %4792 = vmatpush.bf16.msra.mxu0 %v3876
    %4793 = vmatpush.bf16.msra.mxu0 %v3872
    %4794 = vmatmul.bf16.gmra.mxu0 %v2155
    %v4795 = vpop.f32.mrf.mxu0
    %v4796 = vadd.f32 %v4783, %v4795
    %v4797 = vpop.f32.mrf.mxu0
    %4798 = vdwg.mxu0
    %4799 = vmatpush.bf16.msra.mxu0 %v3932
    %4800 = vmatpush.bf16.msra.mxu0 %v3928
    %4801 = vmatpush.bf16.msra.mxu0 %v3924
    %4802 = vmatpush.bf16.msra.mxu0 %v3920
    %4803 = vmatpush.bf16.msra.mxu0 %v3916
    %4804 = vmatpush.bf16.msra.mxu0 %v3912
    %4805 = vmatpush.bf16.msra.mxu0 %v3908
    %4806 = vmatpush.bf16.msra.mxu0 %v3904
    %4807 = vmatmul.bf16.gmra.mxu0 %v2156
    %v4808 = vpop.f32.mrf.mxu0
    %v4809 = vadd.f32 %v4796, %v4808
    %v4810 = vpop.f32.mrf.mxu0
    %4811 = vdwg.mxu0
    %4812 = vmatpush.bf16.msra.mxu0 %v3964
    %4813 = vmatpush.bf16.msra.mxu0 %v3960
    %4814 = vmatpush.bf16.msra.mxu0 %v3956
    %4815 = vmatpush.bf16.msra.mxu0 %v3952
    %4816 = vmatpush.bf16.msra.mxu0 %v3948
    %4817 = vmatpush.bf16.msra.mxu0 %v3944
    %4818 = vmatpush.bf16.msra.mxu0 %v3940
    %4819 = vmatpush.bf16.msra.mxu0 %v3936
    %4820 = vmatmul.bf16.gmra.mxu0 %v2157
    %v4821 = vpop.f32.mrf.mxu0
    %v4822 = vadd.f32 %v4809, %v4821
    %v4823 = vpop.f32.mrf.mxu0
    %4824 = vdwg.mxu0
    %4825 = vmatpush.bf16.msra.mxu0 %v3996
    %4826 = vmatpush.bf16.msra.mxu0 %v3992
    %4827 = vmatpush.bf16.msra.mxu0 %v3988
    %4828 = vmatpush.bf16.msra.mxu0 %v3984
    %4829 = vmatpush.bf16.msra.mxu0 %v3980
    %4830 = vmatpush.bf16.msra.mxu0 %v3976
    %4831 = vmatpush.bf16.msra.mxu0 %v3972
    %4832 = vmatpush.bf16.msra.mxu0 %v3968
    %4833 = vmatmul.bf16.gmra.mxu0 %v2158
    %v4834 = vpop.f32.mrf.mxu0
    %v4835 = vadd.f32 %v4822, %v4834
    %v4836 = vpop.f32.mrf.mxu0
    %4837 = vdwg.mxu0
    %4838 = vmatpush.bf16.msra.mxu0 %v4028
    %4839 = vmatpush.bf16.msra.mxu0 %v4024
    %4840 = vmatpush.bf16.msra.mxu0 %v4020
    %4841 = vmatpush.bf16.msra.mxu0 %v4016
    %4842 = vmatpush.bf16.msra.mxu0 %v4012
    %4843 = vmatpush.bf16.msra.mxu0 %v4008
    %4844 = vmatpush.bf16.msra.mxu0 %v4004
    %4845 = vmatpush.bf16.msra.mxu0 %v4000
    %4846 = vmatmul.bf16.gmra.mxu0 %v2159
    %v4847 = vpop.f32.mrf.mxu0
    %v4848 = vadd.f32 %v4835, %v4847
    %v4849 = vpop.f32.mrf.mxu0
    %4850 = vdwg.mxu0
    %4851 = vmatpush.bf16.msra.mxu0 %v4060
    %4852 = vmatpush.bf16.msra.mxu0 %v4056
    %4853 = vmatpush.bf16.msra.mxu0 %v4052
    %4854 = vmatpush.bf16.msra.mxu0 %v4048
    %4855 = vmatpush.bf16.msra.mxu0 %v4044
    %4856 = vmatpush.bf16.msra.mxu0 %v4040
    %4857 = vmatpush.bf16.msra.mxu0 %v4036
    %4858 = vmatpush.bf16.msra.mxu0 %v4032
    %4859 = vmatmul.bf16.gmra.mxu0 %v2160
    %v4860 = vpop.f32.mrf.mxu0
    %v4861 = vadd.f32 %v4848, %v4860
    %v4862 = vpop.f32.mrf.mxu0
    %4863 = vdwg.mxu0
    %4864 = vmatpush.bf16.msra.mxu0 %v4092
    %4865 = vmatpush.bf16.msra.mxu0 %v4088
    %4866 = vmatpush.bf16.msra.mxu0 %v4084
    %4867 = vmatpush.bf16.msra.mxu0 %v4080
    %4868 = vmatpush.bf16.msra.mxu0 %v4076
    %4869 = vmatpush.bf16.msra.mxu0 %v4072
    %4870 = vmatpush.bf16.msra.mxu0 %v4068
    %4871 = vmatpush.bf16.msra.mxu0 %v4064
    %4872 = vmatmul.bf16.gmra.mxu0 %v2161
    %v4873 = vpop.f32.mrf.mxu0
    %v4874 = vadd.f32 %v4861, %v4873
    %v4875 = vpop.f32.mrf.mxu0
    %4876 = vdwg.mxu0
    %4877 = vmatpush.bf16.msra.mxu0 %v4124
    %4878 = vmatpush.bf16.msra.mxu0 %v4120
    %4879 = vmatpush.bf16.msra.mxu0 %v4116
    %4880 = vmatpush.bf16.msra.mxu0 %v4112
    %4881 = vmatpush.bf16.msra.mxu0 %v4108
    %4882 = vmatpush.bf16.msra.mxu0 %v4104
    %4883 = vmatpush.bf16.msra.mxu0 %v4100
    %4884 = vmatpush.bf16.msra.mxu0 %v4096
    %4885 = vmatmul.bf16.gmra.mxu0 %v2162
    %v4886 = vpop.f32.mrf.mxu0
    %v4887 = vadd.f32 %v4874, %v4886
    %v4888 = vpop.f32.mrf.mxu0
    %4889 = vdwg.mxu0
    %4890 = vmatpush.bf16.msra.mxu0 %v4156
    %4891 = vmatpush.bf16.msra.mxu0 %v4152
    %4892 = vmatpush.bf16.msra.mxu0 %v4148
    %4893 = vmatpush.bf16.msra.mxu0 %v4144
    %4894 = vmatpush.bf16.msra.mxu0 %v4140
    %4895 = vmatpush.bf16.msra.mxu0 %v4136
    %4896 = vmatpush.bf16.msra.mxu0 %v4132
    %4897 = vmatpush.bf16.msra.mxu0 %v4128
    %4898 = vmatmul.bf16.gmra.mxu0 %v2163
    %v4899 = vpop.f32.mrf.mxu0
    %v4900 = vadd.f32 %v4887, %v4899
    %v4901 = vpop.f32.mrf.mxu0
    %4902 = vdwg.mxu0
    %4903 = vmatpush.bf16.msra.mxu0 0
    %4904 = vmatpush.bf16.msra.mxu0 0
    %4905 = vmatpush.bf16.msra.mxu0 0
    %4906 = vmatpush.bf16.msra.mxu0 0
    %4907 = vmatpush.bf16.msra.mxu0 %v4172
    %4908 = vmatpush.bf16.msra.mxu0 %v4168
    %4909 = vmatpush.bf16.msra.mxu0 %v4164
    %4910 = vmatpush.bf16.msra.mxu0 %v4160
    %4911 = vmatmul.bf16.gmra.mxu0 %v4576
    %v4912 = vpop.f32.mrf.mxu0
    %v4913 = vadd.f32 %v4900, %v4912
    %v4914 = vpop.f32.mrf.mxu0
    %4915 = vdwg.mxu0
    %4916 = vmatpush.bf16.msra.mxu0 %v3805
    %4917 = vmatpush.bf16.msra.mxu0 %v3801
    %4918 = vmatpush.bf16.msra.mxu0 %v3797
    %4919 = vmatpush.bf16.msra.mxu0 %v3793
    %4920 = vmatpush.bf16.msra.mxu0 %v3789
    %4921 = vmatpush.bf16.msra.mxu0 %v3785
    %4922 = vmatpush.bf16.msra.mxu0 %v3781
    %4923 = vmatpush.bf16.msra.mxu0 %v3777
    %4924 = vmatmul.bf16.gmra.mxu0 %v2152
    %v4925 = vpop.f32.mrf.mxu0
    %v4926 = vadd.f32 %v2569, %v4925
    %v4927 = vpop.f32.mrf.mxu0
    %4928 = vdwg.mxu0
    %4929 = vmatpush.bf16.msra.mxu0 %v3837
    %4930 = vmatpush.bf16.msra.mxu0 %v3833
    %4931 = vmatpush.bf16.msra.mxu0 %v3829
    %4932 = vmatpush.bf16.msra.mxu0 %v3825
    %4933 = vmatpush.bf16.msra.mxu0 %v3821
    %4934 = vmatpush.bf16.msra.mxu0 %v3817
    %4935 = vmatpush.bf16.msra.mxu0 %v3813
    %4936 = vmatpush.bf16.msra.mxu0 %v3809
    %4937 = vmatmul.bf16.gmra.mxu0 %v2153
    %v4938 = vpop.f32.mrf.mxu0
    %v4939 = vadd.f32 %v4926, %v4938
    %v4940 = vpop.f32.mrf.mxu0
    %4941 = vdwg.mxu0
    %4942 = vmatpush.bf16.msra.mxu0 %v3869
    %4943 = vmatpush.bf16.msra.mxu0 %v3865
    %4944 = vmatpush.bf16.msra.mxu0 %v3861
    %4945 = vmatpush.bf16.msra.mxu0 %v3857
    %4946 = vmatpush.bf16.msra.mxu0 %v3853
    %4947 = vmatpush.bf16.msra.mxu0 %v3849
    %4948 = vmatpush.bf16.msra.mxu0 %v3845
    %4949 = vmatpush.bf16.msra.mxu0 %v3841
    %4950 = vmatmul.bf16.gmra.mxu0 %v2154
    %v4951 = vpop.f32.mrf.mxu0
    %v4952 = vadd.f32 %v4939, %v4951
    %v4953 = vpop.f32.mrf.mxu0
    %4954 = vdwg.mxu0
    %4955 = vmatpush.bf16.msra.mxu0 %v3901
    %4956 = vmatpush.bf16.msra.mxu0 %v3897
    %4957 = vmatpush.bf16.msra.mxu0 %v3893
    %4958 = vmatpush.bf16.msra.mxu0 %v3889
    %4959 = vmatpush.bf16.msra.mxu0 %v3885
    %4960 = vmatpush.bf16.msra.mxu0 %v3881
    %4961 = vmatpush.bf16.msra.mxu0 %v3877
    %4962 = vmatpush.bf16.msra.mxu0 %v3873
    %4963 = vmatmul.bf16.gmra.mxu0 %v2155
    %v4964 = vpop.f32.mrf.mxu0
    %v4965 = vadd.f32 %v4952, %v4964
    %v4966 = vpop.f32.mrf.mxu0
    %4967 = vdwg.mxu0
    %4968 = vmatpush.bf16.msra.mxu0 %v3933
    %4969 = vmatpush.bf16.msra.mxu0 %v3929
    %4970 = vmatpush.bf16.msra.mxu0 %v3925
    %4971 = vmatpush.bf16.msra.mxu0 %v3921
    %4972 = vmatpush.bf16.msra.mxu0 %v3917
    %4973 = vmatpush.bf16.msra.mxu0 %v3913
    %4974 = vmatpush.bf16.msra.mxu0 %v3909
    %4975 = vmatpush.bf16.msra.mxu0 %v3905
    %4976 = vmatmul.bf16.gmra.mxu0 %v2156
    %v4977 = vpop.f32.mrf.mxu0
    %v4978 = vadd.f32 %v4965, %v4977
    %v4979 = vpop.f32.mrf.mxu0
    %4980 = vdwg.mxu0
    %4981 = vmatpush.bf16.msra.mxu0 %v3965
    %4982 = vmatpush.bf16.msra.mxu0 %v3961
    %4983 = vmatpush.bf16.msra.mxu0 %v3957
    %4984 = vmatpush.bf16.msra.mxu0 %v3953
    %4985 = vmatpush.bf16.msra.mxu0 %v3949
    %4986 = vmatpush.bf16.msra.mxu0 %v3945
    %4987 = vmatpush.bf16.msra.mxu0 %v3941
    %4988 = vmatpush.bf16.msra.mxu0 %v3937
    %4989 = vmatmul.bf16.gmra.mxu0 %v2157
    %v4990 = vpop.f32.mrf.mxu0
    %v4991 = vadd.f32 %v4978, %v4990
    %v4992 = vpop.f32.mrf.mxu0
    %4993 = vdwg.mxu0
    %4994 = vmatpush.bf16.msra.mxu0 %v3997
    %4995 = vmatpush.bf16.msra.mxu0 %v3993
    %4996 = vmatpush.bf16.msra.mxu0 %v3989
    %4997 = vmatpush.bf16.msra.mxu0 %v3985
    %4998 = vmatpush.bf16.msra.mxu0 %v3981
    %4999 = vmatpush.bf16.msra.mxu0 %v3977
    %5000 = vmatpush.bf16.msra.mxu0 %v3973
    %5001 = vmatpush.bf16.msra.mxu0 %v3969
    %5002 = vmatmul.bf16.gmra.mxu0 %v2158
    %v5003 = vpop.f32.mrf.mxu0
    %v5004 = vadd.f32 %v4991, %v5003
    %v5005 = vpop.f32.mrf.mxu0
    %5006 = vdwg.mxu0
    %5007 = vmatpush.bf16.msra.mxu0 %v4029
    %5008 = vmatpush.bf16.msra.mxu0 %v4025
    %5009 = vmatpush.bf16.msra.mxu0 %v4021
    %5010 = vmatpush.bf16.msra.mxu0 %v4017
    %5011 = vmatpush.bf16.msra.mxu0 %v4013
    %5012 = vmatpush.bf16.msra.mxu0 %v4009
    %5013 = vmatpush.bf16.msra.mxu0 %v4005
    %5014 = vmatpush.bf16.msra.mxu0 %v4001
    %5015 = vmatmul.bf16.gmra.mxu0 %v2159
    %v5016 = vpop.f32.mrf.mxu0
    %v5017 = vadd.f32 %v5004, %v5016
    %v5018 = vpop.f32.mrf.mxu0
    %5019 = vdwg.mxu0
    %5020 = vmatpush.bf16.msra.mxu0 %v4061
    %5021 = vmatpush.bf16.msra.mxu0 %v4057
    %5022 = vmatpush.bf16.msra.mxu0 %v4053
    %5023 = vmatpush.bf16.msra.mxu0 %v4049
    %5024 = vmatpush.bf16.msra.mxu0 %v4045
    %5025 = vmatpush.bf16.msra.mxu0 %v4041
    %5026 = vmatpush.bf16.msra.mxu0 %v4037
    %5027 = vmatpush.bf16.msra.mxu0 %v4033
    %5028 = vmatmul.bf16.gmra.mxu0 %v2160
    %v5029 = vpop.f32.mrf.mxu0
    %v5030 = vadd.f32 %v5017, %v5029
    %v5031 = vpop.f32.mrf.mxu0
    %5032 = vdwg.mxu0
    %5033 = vmatpush.bf16.msra.mxu0 %v4093
    %5034 = vmatpush.bf16.msra.mxu0 %v4089
    %5035 = vmatpush.bf16.msra.mxu0 %v4085
    %5036 = vmatpush.bf16.msra.mxu0 %v4081
    %5037 = vmatpush.bf16.msra.mxu0 %v4077
    %5038 = vmatpush.bf16.msra.mxu0 %v4073
    %5039 = vmatpush.bf16.msra.mxu0 %v4069
    %5040 = vmatpush.bf16.msra.mxu0 %v4065
    %5041 = vmatmul.bf16.gmra.mxu0 %v2161
    %v5042 = vpop.f32.mrf.mxu0
    %v5043 = vadd.f32 %v5030, %v5042
    %v5044 = vpop.f32.mrf.mxu0
    %5045 = vdwg.mxu0
    %5046 = vmatpush.bf16.msra.mxu0 %v4125
    %5047 = vmatpush.bf16.msra.mxu0 %v4121
    %5048 = vmatpush.bf16.msra.mxu0 %v4117
    %5049 = vmatpush.bf16.msra.mxu0 %v4113
    %5050 = vmatpush.bf16.msra.mxu0 %v4109
    %5051 = vmatpush.bf16.msra.mxu0 %v4105
    %5052 = vmatpush.bf16.msra.mxu0 %v4101
    %5053 = vmatpush.bf16.msra.mxu0 %v4097
    %5054 = vmatmul.bf16.gmra.mxu0 %v2162
    %v5055 = vpop.f32.mrf.mxu0
    %v5056 = vadd.f32 %v5043, %v5055
    %v5057 = vpop.f32.mrf.mxu0
    %5058 = vdwg.mxu0
    %5059 = vmatpush.bf16.msra.mxu0 %v4157
    %5060 = vmatpush.bf16.msra.mxu0 %v4153
    %5061 = vmatpush.bf16.msra.mxu0 %v4149
    %5062 = vmatpush.bf16.msra.mxu0 %v4145
    %5063 = vmatpush.bf16.msra.mxu0 %v4141
    %5064 = vmatpush.bf16.msra.mxu0 %v4137
    %5065 = vmatpush.bf16.msra.mxu0 %v4133
    %5066 = vmatpush.bf16.msra.mxu0 %v4129
    %5067 = vmatmul.bf16.gmra.mxu0 %v2163
    %v5068 = vpop.f32.mrf.mxu0
    %v5069 = vadd.f32 %v5056, %v5068
    %v5070 = vpop.f32.mrf.mxu0
    %5071 = vdwg.mxu0
    %5072 = vmatpush.bf16.msra.mxu0 0
    %5073 = vmatpush.bf16.msra.mxu0 0
    %5074 = vmatpush.bf16.msra.mxu0 0
    %5075 = vmatpush.bf16.msra.mxu0 0
    %5076 = vmatpush.bf16.msra.mxu0 %v4173
    %5077 = vmatpush.bf16.msra.mxu0 %v4169
    %5078 = vmatpush.bf16.msra.mxu0 %v4165
    %5079 = vmatpush.bf16.msra.mxu0 %v4161
    %5080 = vmatmul.bf16.gmra.mxu0 %v4576
    %v5081 = vpop.f32.mrf.mxu0
    %v5082 = vadd.f32 %v5069, %v5081
    %v5083 = vpop.f32.mrf.mxu0
    %5084 = vdwg.mxu0
    %5085 = vmatpush.bf16.msra.mxu0 %v3806
    %5086 = vmatpush.bf16.msra.mxu0 %v3802
    %5087 = vmatpush.bf16.msra.mxu0 %v3798
    %5088 = vmatpush.bf16.msra.mxu0 %v3794
    %5089 = vmatpush.bf16.msra.mxu0 %v3790
    %5090 = vmatpush.bf16.msra.mxu0 %v3786
    %5091 = vmatpush.bf16.msra.mxu0 %v3782
    %5092 = vmatpush.bf16.msra.mxu0 %v3778
    %5093 = vmatmul.bf16.gmra.mxu0 %v2152
    %v5094 = vpop.f32.mrf.mxu0
    %v5095 = vadd.f32 %v2570, %v5094
    %v5096 = vpop.f32.mrf.mxu0
    %5097 = vdwg.mxu0
    %5098 = vmatpush.bf16.msra.mxu0 %v3838
    %5099 = vmatpush.bf16.msra.mxu0 %v3834
    %5100 = vmatpush.bf16.msra.mxu0 %v3830
    %5101 = vmatpush.bf16.msra.mxu0 %v3826
    %5102 = vmatpush.bf16.msra.mxu0 %v3822
    %5103 = vmatpush.bf16.msra.mxu0 %v3818
    %5104 = vmatpush.bf16.msra.mxu0 %v3814
    %5105 = vmatpush.bf16.msra.mxu0 %v3810
    %5106 = vmatmul.bf16.gmra.mxu0 %v2153
    %v5107 = vpop.f32.mrf.mxu0
    %v5108 = vadd.f32 %v5095, %v5107
    %v5109 = vpop.f32.mrf.mxu0
    %5110 = vdwg.mxu0
    %5111 = vmatpush.bf16.msra.mxu0 %v3870
    %5112 = vmatpush.bf16.msra.mxu0 %v3866
    %5113 = vmatpush.bf16.msra.mxu0 %v3862
    %5114 = vmatpush.bf16.msra.mxu0 %v3858
    %5115 = vmatpush.bf16.msra.mxu0 %v3854
    %5116 = vmatpush.bf16.msra.mxu0 %v3850
    %5117 = vmatpush.bf16.msra.mxu0 %v3846
    %5118 = vmatpush.bf16.msra.mxu0 %v3842
    %5119 = vmatmul.bf16.gmra.mxu0 %v2154
    %v5120 = vpop.f32.mrf.mxu0
    %v5121 = vadd.f32 %v5108, %v5120
    %v5122 = vpop.f32.mrf.mxu0
    %5123 = vdwg.mxu0
    %5124 = vmatpush.bf16.msra.mxu0 %v3902
    %5125 = vmatpush.bf16.msra.mxu0 %v3898
    %5126 = vmatpush.bf16.msra.mxu0 %v3894
    %5127 = vmatpush.bf16.msra.mxu0 %v3890
    %5128 = vmatpush.bf16.msra.mxu0 %v3886
    %5129 = vmatpush.bf16.msra.mxu0 %v3882
    %5130 = vmatpush.bf16.msra.mxu0 %v3878
    %5131 = vmatpush.bf16.msra.mxu0 %v3874
    %5132 = vmatmul.bf16.gmra.mxu0 %v2155
    %v5133 = vpop.f32.mrf.mxu0
    %v5134 = vadd.f32 %v5121, %v5133
    %v5135 = vpop.f32.mrf.mxu0
    %5136 = vdwg.mxu0
    %5137 = vmatpush.bf16.msra.mxu0 %v3934
    %5138 = vmatpush.bf16.msra.mxu0 %v3930
    %5139 = vmatpush.bf16.msra.mxu0 %v3926
    %5140 = vmatpush.bf16.msra.mxu0 %v3922
    %5141 = vmatpush.bf16.msra.mxu0 %v3918
    %5142 = vmatpush.bf16.msra.mxu0 %v3914
    %5143 = vmatpush.bf16.msra.mxu0 %v3910
    %5144 = vmatpush.bf16.msra.mxu0 %v3906
    %5145 = vmatmul.bf16.gmra.mxu0 %v2156
    %v5146 = vpop.f32.mrf.mxu0
    %v5147 = vadd.f32 %v5134, %v5146
    %v5148 = vpop.f32.mrf.mxu0
    %5149 = vdwg.mxu0
    %5150 = vmatpush.bf16.msra.mxu0 %v3966
    %5151 = vmatpush.bf16.msra.mxu0 %v3962
    %5152 = vmatpush.bf16.msra.mxu0 %v3958
    %5153 = vmatpush.bf16.msra.mxu0 %v3954
    %5154 = vmatpush.bf16.msra.mxu0 %v3950
    %5155 = vmatpush.bf16.msra.mxu0 %v3946
    %5156 = vmatpush.bf16.msra.mxu0 %v3942
    %5157 = vmatpush.bf16.msra.mxu0 %v3938
    %5158 = vmatmul.bf16.gmra.mxu0 %v2157
    %v5159 = vpop.f32.mrf.mxu0
    %v5160 = vadd.f32 %v5147, %v5159
    %v5161 = vpop.f32.mrf.mxu0
    %5162 = vdwg.mxu0
    %5163 = vmatpush.bf16.msra.mxu0 %v3998
    %5164 = vmatpush.bf16.msra.mxu0 %v3994
    %5165 = vmatpush.bf16.msra.mxu0 %v3990
    %5166 = vmatpush.bf16.msra.mxu0 %v3986
    %5167 = vmatpush.bf16.msra.mxu0 %v3982
    %5168 = vmatpush.bf16.msra.mxu0 %v3978
    %5169 = vmatpush.bf16.msra.mxu0 %v3974
    %5170 = vmatpush.bf16.msra.mxu0 %v3970
    %5171 = vmatmul.bf16.gmra.mxu0 %v2158
    %v5172 = vpop.f32.mrf.mxu0
    %v5173 = vadd.f32 %v5160, %v5172
    %v5174 = vpop.f32.mrf.mxu0
    %5175 = vdwg.mxu0
    %5176 = vmatpush.bf16.msra.mxu0 %v4030
    %5177 = vmatpush.bf16.msra.mxu0 %v4026
    %5178 = vmatpush.bf16.msra.mxu0 %v4022
    %5179 = vmatpush.bf16.msra.mxu0 %v4018
    %5180 = vmatpush.bf16.msra.mxu0 %v4014
    %5181 = vmatpush.bf16.msra.mxu0 %v4010
    %5182 = vmatpush.bf16.msra.mxu0 %v4006
    %5183 = vmatpush.bf16.msra.mxu0 %v4002
    %5184 = vmatmul.bf16.gmra.mxu0 %v2159
    %v5185 = vpop.f32.mrf.mxu0
    %v5186 = vadd.f32 %v5173, %v5185
    %v5187 = vpop.f32.mrf.mxu0
    %5188 = vdwg.mxu0
    %5189 = vmatpush.bf16.msra.mxu0 %v4062
    %5190 = vmatpush.bf16.msra.mxu0 %v4058
    %5191 = vmatpush.bf16.msra.mxu0 %v4054
    %5192 = vmatpush.bf16.msra.mxu0 %v4050
    %5193 = vmatpush.bf16.msra.mxu0 %v4046
    %5194 = vmatpush.bf16.msra.mxu0 %v4042
    %5195 = vmatpush.bf16.msra.mxu0 %v4038
    %5196 = vmatpush.bf16.msra.mxu0 %v4034
    %5197 = vmatmul.bf16.gmra.mxu0 %v2160
    %v5198 = vpop.f32.mrf.mxu0
    %v5199 = vadd.f32 %v5186, %v5198
    %v5200 = vpop.f32.mrf.mxu0
    %5201 = vdwg.mxu0
    %5202 = vmatpush.bf16.msra.mxu0 %v4094
    %5203 = vmatpush.bf16.msra.mxu0 %v4090
    %5204 = vmatpush.bf16.msra.mxu0 %v4086
    %5205 = vmatpush.bf16.msra.mxu0 %v4082
    %5206 = vmatpush.bf16.msra.mxu0 %v4078
    %5207 = vmatpush.bf16.msra.mxu0 %v4074
    %5208 = vmatpush.bf16.msra.mxu0 %v4070
    %5209 = vmatpush.bf16.msra.mxu0 %v4066
    %5210 = vmatmul.bf16.gmra.mxu0 %v2161
    %v5211 = vpop.f32.mrf.mxu0
    %v5212 = vadd.f32 %v5199, %v5211
    %v5213 = vpop.f32.mrf.mxu0
    %5214 = vdwg.mxu0
    %5215 = vmatpush.bf16.msra.mxu0 %v4126
    %5216 = vmatpush.bf16.msra.mxu0 %v4122
    %5217 = vmatpush.bf16.msra.mxu0 %v4118
    %5218 = vmatpush.bf16.msra.mxu0 %v4114
    %5219 = vmatpush.bf16.msra.mxu0 %v4110
    %5220 = vmatpush.bf16.msra.mxu0 %v4106
    %5221 = vmatpush.bf16.msra.mxu0 %v4102
    %5222 = vmatpush.bf16.msra.mxu0 %v4098
    %5223 = vmatmul.bf16.gmra.mxu0 %v2162
    %v5224 = vpop.f32.mrf.mxu0
    %v5225 = vadd.f32 %v5212, %v5224
    %v5226 = vpop.f32.mrf.mxu0
    %5227 = vdwg.mxu0
    %5228 = vmatpush.bf16.msra.mxu0 %v4158
    %5229 = vmatpush.bf16.msra.mxu0 %v4154
    %5230 = vmatpush.bf16.msra.mxu0 %v4150
    %5231 = vmatpush.bf16.msra.mxu0 %v4146
    %5232 = vmatpush.bf16.msra.mxu0 %v4142
    %5233 = vmatpush.bf16.msra.mxu0 %v4138
    %5234 = vmatpush.bf16.msra.mxu0 %v4134
    %5235 = vmatpush.bf16.msra.mxu0 %v4130
    %5236 = vmatmul.bf16.gmra.mxu0 %v2163
    %v5237 = vpop.f32.mrf.mxu0
    %v5238 = vadd.f32 %v5225, %v5237
    %v5239 = vpop.f32.mrf.mxu0
    %5240 = vdwg.mxu0
    %5241 = vmatpush.bf16.msra.mxu0 0
    %5242 = vmatpush.bf16.msra.mxu0 0
    %5243 = vmatpush.bf16.msra.mxu0 0
    %5244 = vmatpush.bf16.msra.mxu0 0
    %5245 = vmatpush.bf16.msra.mxu0 %v4174
    %5246 = vmatpush.bf16.msra.mxu0 %v4170
    %5247 = vmatpush.bf16.msra.mxu0 %v4166
    %5248 = vmatpush.bf16.msra.mxu0 %v4162
    %5249 = vmatmul.bf16.gmra.mxu0 %v4576
    %v5250 = vpop.f32.mrf.mxu0
    %v5251 = vadd.f32 %v5238, %v5250
    %v5252 = vpop.f32.mrf.mxu0
    %5253 = vdwg.mxu0
    %v5254 = vmax.f32 %v4744, 0.0
    %v5255 = vmax.f32 %v4913, 0.0
    %v5256 = vmax.f32 %v5082, 0.0
    %v5257 = vmax.f32 %v5251, 0.0
    %v5258 = vpack.c.bf16 %v5254, %v5254
    %v5259 = vpack.c.bf16 %v5255, %v5255
    %v5260 = vpack.c.bf16 %v5256, %v5256
    %v5261 = vpack.c.bf16 %v5257, %v5257
    %v5262 = vld [vmem:[%s5] sm:$0xff]
    %v5263 = vld [vmem:[%s5 + $0x8] sm:$0xff]
    %v5264 = vld [vmem:[%s5 + $0x10] sm:$0xff]
    %v5265 = vld [vmem:[%s5 + $0x18] sm:$0xff]
    %v5266 = vld [vmem:[%s5 + $0x20] sm:$0xff]
    %v5267 = vld [vmem:[%s5 + $0x28] sm:$0xff]
    %v5268 = vld [vmem:[%s5 + $0x30] sm:$0xff]
    %v5269 = vld [vmem:[%s5 + $0x38] sm:$0xff]
    %v5270 = vld [vmem:[%s5 + $0x40] sm:$0xff]
    %v5271 = vld [vmem:[%s5 + $0x48] sm:$0xff]
    %v5272 = vld [vmem:[%s5 + $0x50] sm:$0xff]
    %v5273 = vld [vmem:[%s5 + $0x58] sm:$0xff]
    %v5274 = vld [vmem:[%s5 + $0x60] sm:$0xff]
    %v5275 = vld [vmem:[%s5 + $0x68] sm:$0xff]
    %v5276 = vld [vmem:[%s5 + $0x70] sm:$0xff]
    %v5277 = vld [vmem:[%s5 + $0x78] sm:$0xff]
    %v5278 = vld [vmem:[%s5 + $0x80] sm:$0xff]
    %v5279 = vld [vmem:[%s5 + $0x88] sm:$0xff]
    %v5280 = vld [vmem:[%s5 + $0x90] sm:$0xff]
    %v5281 = vld [vmem:[%s5 + $0x98] sm:$0xff]
    %v5282 = vld [vmem:[%s5 + $0xa0] sm:$0xff]
    %v5283 = vld [vmem:[%s5 + $0xa8] sm:$0xff]
    %v5284 = vld [vmem:[%s5 + $0xb0] sm:$0xff]
    %v5285 = vld [vmem:[%s5 + $0xb8] sm:$0xff]
    %v5286 = vld [vmem:[%s5 + $0xc0] sm:$0xff]
    %v5287 = vld [vmem:[%s5 + $0xc8] sm:$0xff]
    %v5288 = vld [vmem:[%s5 + $0xd0] sm:$0xff]
    %v5289 = vld [vmem:[%s5 + $0xd8] sm:$0xff]
    %v5290 = vld [vmem:[%s5 + $0xe0] sm:$0xff]
    %v5291 = vld [vmem:[%s5 + $0xe8] sm:$0xff]
    %v5292 = vld [vmem:[%s5 + $0xf0] sm:$0xff]
    %v5293 = vld [vmem:[%s5 + $0xf8] sm:$0xff]
    %v5294 = vld [vmem:[%s5 + $0x100] sm:$0xff]
    %v5295 = vld [vmem:[%s5 + $0x108] sm:$0xff]
    %v5296 = vld [vmem:[%s5 + $0x110] sm:$0xff]
    %v5297 = vld [vmem:[%s5 + $0x118] sm:$0xff]
    %v5298 = vld [vmem:[%s5 + $0x120] sm:$0xff]
    %v5299 = vld [vmem:[%s5 + $0x128] sm:$0xff]
    %v5300 = vld [vmem:[%s5 + $0x130] sm:$0xff]
    %v5301 = vld [vmem:[%s5 + $0x138] sm:$0xff]
    %v5302 = vld [vmem:[%s5 + $0x140] sm:$0xff]
    %v5303 = vld [vmem:[%s5 + $0x148] sm:$0xff]
    %v5304 = vld [vmem:[%s5 + $0x150] sm:$0xff]
    %v5305 = vld [vmem:[%s5 + $0x158] sm:$0xff]
    %v5306 = vld [vmem:[%s5 + $0x160] sm:$0xff]
    %v5307 = vld [vmem:[%s5 + $0x168] sm:$0xff]
    %v5308 = vld [vmem:[%s5 + $0x170] sm:$0xff]
    %v5309 = vld [vmem:[%s5 + $0x178] sm:$0xff]
    %v5310 = vld [vmem:[%s5 + $0x180] sm:$0xff]
    %v5311 = vld [vmem:[%s5 + $0x188] sm:$0xff]
    %v5312 = vld [vmem:[%s5 + $0x190] sm:$0xff]
    %v5313 = vld [vmem:[%s5 + $0x198] sm:$0xff]
    %v5314 = vld [vmem:[%s5 + $0x1a0] sm:$0xff]
    %v5315 = vld [vmem:[%s5 + $0x1a8] sm:$0xff]
    %v5316 = vld [vmem:[%s5 + $0x1b0] sm:$0xff]
    %v5317 = vld [vmem:[%s5 + $0x1b8] sm:$0xff]
    %v5318 = vld [vmem:[%s5 + $0x1c0] sm:$0xff]
    %v5319 = vld [vmem:[%s5 + $0x1c8] sm:$0xff]
    %v5320 = vld [vmem:[%s5 + $0x1d0] sm:$0xff]
    %v5321 = vld [vmem:[%s5 + $0x1d8] sm:$0xff]
    %v5322 = vld [vmem:[%s5 + $0x1e0] sm:$0xff]
    %v5323 = vld [vmem:[%s5 + $0x1e8] sm:$0xff]
    %v5324 = vld [vmem:[%s5 + $0x1f0] sm:$0xff]
    %v5325 = vld [vmem:[%s5 + $0x1f8] sm:$0xff]
    %v5326 = vld [vmem:[%s6] sm:$0x3]
    %v5328 = vperm.slane %v5326, 0
    %v5329 = vperm.slane %v5326, 1
    %v5396 = vunpack.c.l.b16 %v5262
    %v5397 = vunpack.c.h.b16 %v5262
    %v5398 = vunpack.c.l.b16 %v5263
    %v5399 = vunpack.c.h.b16 %v5263
    %v5400 = vunpack.c.l.b16 %v5264
    %v5401 = vunpack.c.h.b16 %v5264
    %v5402 = vunpack.c.l.b16 %v5265
    %v5403 = vunpack.c.h.b16 %v5265
    %v5404 = vunpack.c.l.b16 %v5266
    %v5405 = vunpack.c.h.b16 %v5266
    %v5406 = vunpack.c.l.b16 %v5267
    %v5407 = vunpack.c.h.b16 %v5267
    %v5408 = vunpack.c.l.b16 %v5268
    %v5409 = vunpack.c.h.b16 %v5268
    %v5410 = vunpack.c.l.b16 %v5269
    %v5411 = vunpack.c.h.b16 %v5269
    %v5412 = vunpack.c.l.b16 %v5270
    %v5413 = vunpack.c.h.b16 %v5270
    %v5414 = vunpack.c.l.b16 %v5271
    %v5415 = vunpack.c.h.b16 %v5271
    %v5416 = vunpack.c.l.b16 %v5272
    %v5417 = vunpack.c.h.b16 %v5272
    %v5418 = vunpack.c.l.b16 %v5273
    %v5419 = vunpack.c.h.b16 %v5273
    %v5420 = vunpack.c.l.b16 %v5274
    %v5421 = vunpack.c.h.b16 %v5274
    %v5422 = vunpack.c.l.b16 %v5275
    %v5423 = vunpack.c.h.b16 %v5275
    %v5424 = vunpack.c.l.b16 %v5276
    %v5425 = vunpack.c.h.b16 %v5276
    %v5426 = vunpack.c.l.b16 %v5277
    %v5427 = vunpack.c.h.b16 %v5277
    %v5428 = vunpack.c.l.b16 %v5278
    %v5429 = vunpack.c.h.b16 %v5278
    %v5430 = vunpack.c.l.b16 %v5279
    %v5431 = vunpack.c.h.b16 %v5279
    %v5432 = vunpack.c.l.b16 %v5280
    %v5433 = vunpack.c.h.b16 %v5280
    %v5434 = vunpack.c.l.b16 %v5281
    %v5435 = vunpack.c.h.b16 %v5281
    %v5436 = vunpack.c.l.b16 %v5282
    %v5437 = vunpack.c.h.b16 %v5282
    %v5438 = vunpack.c.l.b16 %v5283
    %v5439 = vunpack.c.h.b16 %v5283
    %v5440 = vunpack.c.l.b16 %v5284
    %v5441 = vunpack.c.h.b16 %v5284
    %v5442 = vunpack.c.l.b16 %v5285
    %v5443 = vunpack.c.h.b16 %v5285
    %v5444 = vunpack.c.l.b16 %v5286
    %v5445 = vunpack.c.h.b16 %v5286
    %v5446 = vunpack.c.l.b16 %v5287
    %v5447 = vunpack.c.h.b16 %v5287
    %v5448 = vunpack.c.l.b16 %v5288
    %v5449 = vunpack.c.h.b16 %v5288
    %v5450 = vunpack.c.l.b16 %v5289
    %v5451 = vunpack.c.h.b16 %v5289
    %v5452 = vunpack.c.l.b16 %v5290
    %v5453 = vunpack.c.h.b16 %v5290
    %v5454 = vunpack.c.l.b16 %v5291
    %v5455 = vunpack.c.h.b16 %v5291
    %v5456 = vunpack.c.l.b16 %v5292
    %v5457 = vunpack.c.h.b16 %v5292
    %v5458 = vunpack.c.l.b16 %v5293
    %v5459 = vunpack.c.h.b16 %v5293
    %v5460 = vunpack.c.l.b16 %v5294
    %v5461 = vunpack.c.h.b16 %v5294
    %v5462 = vunpack.c.l.b16 %v5295
    %v5463 = vunpack.c.h.b16 %v5295
    %v5464 = vunpack.c.l.b16 %v5296
    %v5465 = vunpack.c.h.b16 %v5296
    %v5466 = vunpack.c.l.b16 %v5297
    %v5467 = vunpack.c.h.b16 %v5297
    %v5468 = vunpack.c.l.b16 %v5298
    %v5469 = vunpack.c.h.b16 %v5298
    %v5470 = vunpack.c.l.b16 %v5299
    %v5471 = vunpack.c.h.b16 %v5299
    %v5472 = vunpack.c.l.b16 %v5300
    %v5473 = vunpack.c.h.b16 %v5300
    %v5474 = vunpack.c.l.b16 %v5301
    %v5475 = vunpack.c.h.b16 %v5301
    %v5476 = vunpack.c.l.b16 %v5302
    %v5477 = vunpack.c.h.b16 %v5302
    %v5478 = vunpack.c.l.b16 %v5303
    %v5479 = vunpack.c.h.b16 %v5303
    %v5480 = vunpack.c.l.b16 %v5304
    %v5481 = vunpack.c.h.b16 %v5304
    %v5482 = vunpack.c.l.b16 %v5305
    %v5483 = vunpack.c.h.b16 %v5305
    %v5484 = vunpack.c.l.b16 %v5306
    %v5485 = vunpack.c.h.b16 %v5306
    %v5486 = vunpack.c.l.b16 %v5307
    %v5487 = vunpack.c.h.b16 %v5307
    %v5488 = vunpack.c.l.b16 %v5308
    %v5489 = vunpack.c.h.b16 %v5308
    %v5490 = vunpack.c.l.b16 %v5309
    %v5491 = vunpack.c.h.b16 %v5309
    %v5492 = vunpack.c.l.b16 %v5310
    %v5493 = vunpack.c.h.b16 %v5310
    %v5494 = vunpack.c.l.b16 %v5311
    %v5495 = vunpack.c.h.b16 %v5311
    %v5496 = vunpack.c.l.b16 %v5312
    %v5497 = vunpack.c.h.b16 %v5312
    %v5498 = vunpack.c.l.b16 %v5313
    %v5499 = vunpack.c.h.b16 %v5313
    %v5500 = vunpack.c.l.b16 %v5314
    %v5501 = vunpack.c.h.b16 %v5314
    %v5502 = vunpack.c.l.b16 %v5315
    %v5503 = vunpack.c.h.b16 %v5315
    %v5504 = vunpack.c.l.b16 %v5316
    %v5505 = vunpack.c.h.b16 %v5316
    %v5506 = vunpack.c.l.b16 %v5317
    %v5507 = vunpack.c.h.b16 %v5317
    %v5508 = vunpack.c.l.b16 %v5318
    %v5509 = vunpack.c.h.b16 %v5318
    %v5510 = vunpack.c.l.b16 %v5319
    %v5511 = vunpack.c.h.b16 %v5319
    %v5512 = vunpack.c.l.b16 %v5320
    %v5513 = vunpack.c.h.b16 %v5320
    %v5514 = vunpack.c.l.b16 %v5321
    %v5515 = vunpack.c.h.b16 %v5321
    %v5516 = vunpack.c.l.b16 %v5322
    %v5517 = vunpack.c.h.b16 %v5322
    %v5518 = vunpack.c.l.b16 %v5323
    %v5519 = vunpack.c.h.b16 %v5323
    %v5520 = vunpack.c.l.b16 %v5324
    %v5521 = vunpack.c.h.b16 %v5324
    %v5522 = vunpack.c.l.b16 %v5325
    %v5523 = vunpack.c.h.b16 %v5325
    %v5524 = vpack.c.b16 %v5398, %v5396
    %v5525 = vpack.c.b16 %v5399, %v5397
    %v5526 = vpack.c.b16 %v5402, %v5400
    %v5527 = vpack.c.b16 %v5403, %v5401
    %v5528 = vpack.c.b16 %v5406, %v5404
    %v5529 = vpack.c.b16 %v5407, %v5405
    %v5530 = vpack.c.b16 %v5410, %v5408
    %v5531 = vpack.c.b16 %v5411, %v5409
    %v5532 = vpack.c.b16 %v5414, %v5412
    %v5533 = vpack.c.b16 %v5415, %v5413
    %v5534 = vpack.c.b16 %v5418, %v5416
    %v5535 = vpack.c.b16 %v5419, %v5417
    %v5536 = vpack.c.b16 %v5422, %v5420
    %v5537 = vpack.c.b16 %v5423, %v5421
    %v5538 = vpack.c.b16 %v5426, %v5424
    %v5539 = vpack.c.b16 %v5427, %v5425
    %v5540 = vpack.c.b16 %v5430, %v5428
    %v5541 = vpack.c.b16 %v5431, %v5429
    %v5542 = vpack.c.b16 %v5434, %v5432
    %v5543 = vpack.c.b16 %v5435, %v5433
    %v5544 = vpack.c.b16 %v5438, %v5436
    %v5545 = vpack.c.b16 %v5439, %v5437
    %v5546 = vpack.c.b16 %v5442, %v5440
    %v5547 = vpack.c.b16 %v5443, %v5441
    %v5548 = vpack.c.b16 %v5446, %v5444
    %v5549 = vpack.c.b16 %v5447, %v5445
    %v5550 = vpack.c.b16 %v5450, %v5448
    %v5551 = vpack.c.b16 %v5451, %v5449
    %v5552 = vpack.c.b16 %v5454, %v5452
    %v5553 = vpack.c.b16 %v5455, %v5453
    %v5554 = vpack.c.b16 %v5458, %v5456
    %v5555 = vpack.c.b16 %v5459, %v5457
    %v5556 = vpack.c.b16 %v5462, %v5460
    %v5557 = vpack.c.b16 %v5463, %v5461
    %v5558 = vpack.c.b16 %v5466, %v5464
    %v5559 = vpack.c.b16 %v5467, %v5465
    %v5560 = vpack.c.b16 %v5470, %v5468
    %v5561 = vpack.c.b16 %v5471, %v5469
    %v5562 = vpack.c.b16 %v5474, %v5472
    %v5563 = vpack.c.b16 %v5475, %v5473
    %v5564 = vpack.c.b16 %v5478, %v5476
    %v5565 = vpack.c.b16 %v5479, %v5477
    %v5566 = vpack.c.b16 %v5482, %v5480
    %v5567 = vpack.c.b16 %v5483, %v5481
    %v5568 = vpack.c.b16 %v5486, %v5484
    %v5569 = vpack.c.b16 %v5487, %v5485
    %v5570 = vpack.c.b16 %v5490, %v5488
    %v5571 = vpack.c.b16 %v5491, %v5489
    %v5572 = vpack.c.b16 %v5494, %v5492
    %v5573 = vpack.c.b16 %v5495, %v5493
    %v5574 = vpack.c.b16 %v5498, %v5496
    %v5575 = vpack.c.b16 %v5499, %v5497
    %v5576 = vpack.c.b16 %v5502, %v5500
    %v5577 = vpack.c.b16 %v5503, %v5501
    %v5578 = vpack.c.b16 %v5506, %v5504
    %v5579 = vpack.c.b16 %v5507, %v5505
    %v5580 = vpack.c.b16 %v5510, %v5508
    %v5581 = vpack.c.b16 %v5511, %v5509
    %v5582 = vpack.c.b16 %v5514, %v5512
    %v5583 = vpack.c.b16 %v5515, %v5513
    %v5584 = vpack.c.b16 %v5518, %v5516
    %v5585 = vpack.c.b16 %v5519, %v5517
    %v5586 = vpack.c.b16 %v5522, %v5520
    %v5587 = vpack.c.b16 %v5523, %v5521
    %5652 = vmatpush.bf16.msra.mxu0 %v5538
    %5653 = vmatpush.bf16.msra.mxu0 %v5536
    %5654 = vmatpush.bf16.msra.mxu0 %v5534
    %5655 = vmatpush.bf16.msra.mxu0 %v5532
    %5656 = vmatpush.bf16.msra.mxu0 %v5530
    %5657 = vmatpush.bf16.msra.mxu0 %v5528
    %5658 = vmatpush.bf16.msra.mxu0 %v5526
    %5659 = vmatpush.bf16.msra.mxu0 %v5524
    %5660 = vmatmul.bf16.gmra.mxu0 %v5258
    %v5661 = vpop.f32.mrf.mxu0
    %v5662 = vadd.f32 %v5328, %v5661
    %v5663 = vpop.f32.mrf.mxu0
    %5664 = vdwg.mxu0
    %5665 = vmatpush.bf16.msra.mxu0 %v5554
    %5666 = vmatpush.bf16.msra.mxu0 %v5552
    %5667 = vmatpush.bf16.msra.mxu0 %v5550
    %5668 = vmatpush.bf16.msra.mxu0 %v5548
    %5669 = vmatpush.bf16.msra.mxu0 %v5546
    %5670 = vmatpush.bf16.msra.mxu0 %v5544
    %5671 = vmatpush.bf16.msra.mxu0 %v5542
    %5672 = vmatpush.bf16.msra.mxu0 %v5540
    %5673 = vmatmul.bf16.gmra.mxu0 %v5259
    %v5674 = vpop.f32.mrf.mxu0
    %v5675 = vadd.f32 %v5662, %v5674
    %v5676 = vpop.f32.mrf.mxu0
    %5677 = vdwg.mxu0
    %5678 = vmatpush.bf16.msra.mxu0 %v5570
    %5679 = vmatpush.bf16.msra.mxu0 %v5568
    %5680 = vmatpush.bf16.msra.mxu0 %v5566
    %5681 = vmatpush.bf16.msra.mxu0 %v5564
    %5682 = vmatpush.bf16.msra.mxu0 %v5562
    %5683 = vmatpush.bf16.msra.mxu0 %v5560
    %5684 = vmatpush.bf16.msra.mxu0 %v5558
    %5685 = vmatpush.bf16.msra.mxu0 %v5556
    %5686 = vmatmul.bf16.gmra.mxu0 %v5260
    %v5687 = vpop.f32.mrf.mxu0
    %v5688 = vadd.f32 %v5675, %v5687
    %v5689 = vpop.f32.mrf.mxu0
    %5690 = vdwg.mxu0
    %5691 = vmatpush.bf16.msra.mxu0 %v5586
    %5692 = vmatpush.bf16.msra.mxu0 %v5584
    %5693 = vmatpush.bf16.msra.mxu0 %v5582
    %5694 = vmatpush.bf16.msra.mxu0 %v5580
    %5695 = vmatpush.bf16.msra.mxu0 %v5578
    %5696 = vmatpush.bf16.msra.mxu0 %v5576
    %5697 = vmatpush.bf16.msra.mxu0 %v5574
    %5698 = vmatpush.bf16.msra.mxu0 %v5572
    %5699 = vmatmul.bf16.gmra.mxu0 %v5261
    %v5700 = vpop.f32.mrf.mxu0
    %v5701 = vadd.f32 %v5688, %v5700
    %v5702 = vpop.f32.mrf.mxu0
    %5703 = vdwg.mxu0
    %5704 = vmatpush.bf16.msra.mxu0 %v5539
    %5705 = vmatpush.bf16.msra.mxu0 %v5537
    %5706 = vmatpush.bf16.msra.mxu0 %v5535
    %5707 = vmatpush.bf16.msra.mxu0 %v5533
    %5708 = vmatpush.bf16.msra.mxu0 %v5531
    %5709 = vmatpush.bf16.msra.mxu0 %v5529
    %5710 = vmatpush.bf16.msra.mxu0 %v5527
    %5711 = vmatpush.bf16.msra.mxu0 %v5525
    %5712 = vmatmul.bf16.gmra.mxu0 %v5258
    %v5713 = vpop.f32.mrf.mxu0
    %v5714 = vadd.f32 %v5329, %v5713
    %v5715 = vpop.f32.mrf.mxu0
    %5716 = vdwg.mxu0
    %5717 = vmatpush.bf16.msra.mxu0 %v5555
    %5718 = vmatpush.bf16.msra.mxu0 %v5553
    %5719 = vmatpush.bf16.msra.mxu0 %v5551
    %5720 = vmatpush.bf16.msra.mxu0 %v5549
    %5721 = vmatpush.bf16.msra.mxu0 %v5547
    %5722 = vmatpush.bf16.msra.mxu0 %v5545
    %5723 = vmatpush.bf16.msra.mxu0 %v5543
    %5724 = vmatpush.bf16.msra.mxu0 %v5541
    %5725 = vmatmul.bf16.gmra.mxu0 %v5259
    %v5726 = vpop.f32.mrf.mxu0
    %v5727 = vadd.f32 %v5714, %v5726
    %v5728 = vpop.f32.mrf.mxu0
    %5729 = vdwg.mxu0
    %5730 = vmatpush.bf16.msra.mxu0 %v5571
    %5731 = vmatpush.bf16.msra.mxu0 %v5569
    %5732 = vmatpush.bf16.msra.mxu0 %v5567
    %5733 = vmatpush.bf16.msra.mxu0 %v5565
    %5734 = vmatpush.bf16.msra.mxu0 %v5563
    %5735 = vmatpush.bf16.msra.mxu0 %v5561
    %5736 = vmatpush.bf16.msra.mxu0 %v5559
    %5737 = vmatpush.bf16.msra.mxu0 %v5557
    %5738 = vmatmul.bf16.gmra.mxu0 %v5260
    %v5739 = vpop.f32.mrf.mxu0
    %v5740 = vadd.f32 %v5727, %v5739
    %v5741 = vpop.f32.mrf.mxu0
    %5742 = vdwg.mxu0
    %5743 = vmatpush.bf16.msra.mxu0 %v5587
    %5744 = vmatpush.bf16.msra.mxu0 %v5585
    %5745 = vmatpush.bf16.msra.mxu0 %v5583
    %5746 = vmatpush.bf16.msra.mxu0 %v5581
    %5747 = vmatpush.bf16.msra.mxu0 %v5579
    %5748 = vmatpush.bf16.msra.mxu0 %v5577
    %5749 = vmatpush.bf16.msra.mxu0 %v5575
    %5750 = vmatpush.bf16.msra.mxu0 %v5573
    %5751 = vmatmul.bf16.gmra.mxu0 %v5261
    %v5752 = vpop.f32.mrf.mxu0
    %v5753 = vadd.f32 %v5740, %v5752
    %v5754 = vpop.f32.mrf.mxu0
    %5755 = vdwg.mxu0
    %v5756 = vmax.f32 %v5701, 0.0
    %v5757 = vmax.f32 %v5753, 0.0
    %v5758 = vpack.c.bf16 %v5756, %v5756
    %v5759 = vpack.c.bf16 %v5757, %v5757
    %v5760 = vld [vmem:[%s7] sm:$0xf]
    %v5761 = vld [vmem:[%s7 + $0x4] sm:$0xf]
    %v5762 = vld [vmem:[%s7 + $0x8] sm:$0xf]
    %v5763 = vld [vmem:[%s7 + $0xc] sm:$0xf]
    %v5764 = vld [vmem:[%s7 + $0x10] sm:$0xf]
    %v5765 = vld [vmem:[%s7 + $0x14] sm:$0xf]
    %v5766 = vld [vmem:[%s7 + $0x18] sm:$0xf]
    %v5767 = vld [vmem:[%s7 + $0x1c] sm:$0xf]
    %v5768 = vld [vmem:[%s7 + $0x20] sm:$0xf]
    %v5769 = vld [vmem:[%s7 + $0x24] sm:$0xf]
    %v5770 = vld [vmem:[%s7 + $0x28] sm:$0xf]
    %v5771 = vld [vmem:[%s7 + $0x2c] sm:$0xf]
    %v5772 = vld [vmem:[%s7 + $0x30] sm:$0xf]
    %v5773 = vld [vmem:[%s7 + $0x34] sm:$0xf]
    %v5774 = vld [vmem:[%s7 + $0x38] sm:$0xf]
    %v5775 = vld [vmem:[%s7 + $0x3c] sm:$0xf]
    %v5776 = vld [vmem:[%s7 + $0x40] sm:$0xf]
    %v5777 = vld [vmem:[%s7 + $0x44] sm:$0xf]
    %v5778 = vld [vmem:[%s7 + $0x48] sm:$0xf]
    %v5779 = vld [vmem:[%s7 + $0x4c] sm:$0xf]
    %v5780 = vld [vmem:[%s7 + $0x50] sm:$0xf]
    %v5781 = vld [vmem:[%s7 + $0x54] sm:$0xf]
    %v5782 = vld [vmem:[%s7 + $0x58] sm:$0xf]
    %v5783 = vld [vmem:[%s7 + $0x5c] sm:$0xf]
    %v5784 = vld [vmem:[%s7 + $0x60] sm:$0xf]
    %v5785 = vld [vmem:[%s7 + $0x64] sm:$0xf]
    %v5786 = vld [vmem:[%s7 + $0x68] sm:$0xf]
    %v5787 = vld [vmem:[%s7 + $0x6c] sm:$0xf]
    %v5788 = vld [vmem:[%s7 + $0x70] sm:$0xf]
    %v5789 = vld [vmem:[%s7 + $0x74] sm:$0xf]
    %v5790 = vld [vmem:[%s7 + $0x78] sm:$0xf]
    %v5791 = vld [vmem:[%s7 + $0x7c] sm:$0xf]
    %v5792 = vld [vmem:[%s8] sm:$0x1]
    %v5794 = vperm.slane %v5792, 0
    %v5828 = vunpack.c.l.b16 %v5760
    %v5829 = vunpack.c.l.b16 %v5761
    %v5830 = vunpack.c.l.b16 %v5762
    %v5831 = vunpack.c.l.b16 %v5763
    %v5832 = vunpack.c.l.b16 %v5764
    %v5833 = vunpack.c.l.b16 %v5765
    %v5834 = vunpack.c.l.b16 %v5766
    %v5835 = vunpack.c.l.b16 %v5767
    %v5836 = vunpack.c.l.b16 %v5768
    %v5837 = vunpack.c.l.b16 %v5769
    %v5838 = vunpack.c.l.b16 %v5770
    %v5839 = vunpack.c.l.b16 %v5771
    %v5840 = vunpack.c.l.b16 %v5772
    %v5841 = vunpack.c.l.b16 %v5773
    %v5842 = vunpack.c.l.b16 %v5774
    %v5843 = vunpack.c.l.b16 %v5775
    %v5844 = vunpack.c.l.b16 %v5776
    %v5845 = vunpack.c.l.b16 %v5777
    %v5846 = vunpack.c.l.b16 %v5778
    %v5847 = vunpack.c.l.b16 %v5779
    %v5848 = vunpack.c.l.b16 %v5780
    %v5849 = vunpack.c.l.b16 %v5781
    %v5850 = vunpack.c.l.b16 %v5782
    %v5851 = vunpack.c.l.b16 %v5783
    %v5852 = vunpack.c.l.b16 %v5784
    %v5853 = vunpack.c.l.b16 %v5785
    %v5854 = vunpack.c.l.b16 %v5786
    %v5855 = vunpack.c.l.b16 %v5787
    %v5856 = vunpack.c.l.b16 %v5788
    %v5857 = vunpack.c.l.b16 %v5789
    %v5858 = vunpack.c.l.b16 %v5790
    %v5859 = vunpack.c.l.b16 %v5791
    %v5860 = vpack.c.b16 %v5829, %v5828
    %v5861 = vpack.c.b16 %v5831, %v5830
    %v5862 = vpack.c.b16 %v5833, %v5832
    %v5863 = vpack.c.b16 %v5835, %v5834
    %v5864 = vpack.c.b16 %v5837, %v5836
    %v5865 = vpack.c.b16 %v5839, %v5838
    %v5866 = vpack.c.b16 %v5841, %v5840
    %v5867 = vpack.c.b16 %v5843, %v5842
    %v5868 = vpack.c.b16 %v5845, %v5844
    %v5869 = vpack.c.b16 %v5847, %v5846
    %v5870 = vpack.c.b16 %v5849, %v5848
    %v5871 = vpack.c.b16 %v5851, %v5850
    %v5872 = vpack.c.b16 %v5853, %v5852
    %v5873 = vpack.c.b16 %v5855, %v5854
    %v5874 = vpack.c.b16 %v5857, %v5856
    %v5875 = vpack.c.b16 %v5859, %v5858
    %5892 = vmatpush.bf16.msra.mxu0 %v5867
    %5893 = vmatpush.bf16.msra.mxu0 %v5866
    %5894 = vmatpush.bf16.msra.mxu0 %v5865
    %5895 = vmatpush.bf16.msra.mxu0 %v5864
    %5896 = vmatpush.bf16.msra.mxu0 %v5863
    %5897 = vmatpush.bf16.msra.mxu0 %v5862
    %5898 = vmatpush.bf16.msra.mxu0 %v5861
    %5899 = vmatpush.bf16.msra.mxu0 %v5860
    %5900 = vmatmul.bf16.gmra.mxu0 %v5758
    %v5901 = vpop.f32.mrf.mxu0
    %v5902 = vadd.f32 %v5794, %v5901
    %v5903 = vpop.f32.mrf.mxu0
    %5904 = vdwg.mxu0
    %5905 = vmatpush.bf16.msra.mxu0 %v5875
    %5906 = vmatpush.bf16.msra.mxu0 %v5874
    %5907 = vmatpush.bf16.msra.mxu0 %v5873
    %5908 = vmatpush.bf16.msra.mxu0 %v5872
    %5909 = vmatpush.bf16.msra.mxu0 %v5871
    %5910 = vmatpush.bf16.msra.mxu0 %v5870
    %5911 = vmatpush.bf16.msra.mxu0 %v5869
    %5912 = vmatpush.bf16.msra.mxu0 %v5868
    %5913 = vmatmul.bf16.gmra.mxu0 %v5759
    %v5914 = vpop.f32.mrf.mxu0
    %v5915 = vadd.f32 %v5902, %v5914
    %v5916 = vpop.f32.mrf.mxu0
    %5917 = vdwg.mxu0
    %vm5918 = vcmask 9216
    %5919 = vst.msk [vmem:[#allocation6] sm:$0x3] %vm5918, %v5915
    // Predicated region
    $region53: #{cnn_forward.1} parent=1 // pred_check
      _
    $region54: #{cnn_forward.1} parent=1 // pred_check_branch
      %5921 = sbr.rel (0) target = $region56
    $region55: #{cnn_forward.1} parent=1 // pred_region
      %5923 = vsyncadd [#allocation7], 0
      %s5925 = sshll.u32 [#allocation6], 4
      %s5926 = int_to_ptr.vmem [resolvable:$true] %s5925
      %s5927 = sshll.u32 %s9, 4
      %s5928 = int_to_ptr.hbm [resolvable:$true] %s5927
      %5930 = dma.vmem_to_hbm [thread:$0]  %s5926, 32, %s5928, [#allocation7]
    $region56: #{cnn_forward.1} parent=1 // pred_fallthru
      _
    // Predicated region
    $region57: #{cnn_forward.1} parent=1 // pred_check
      _
    $region58: #{cnn_forward.1} parent=1 // pred_check_branch
      %5932 = sbr.rel (0) target = $region60
    $region59: #{cnn_forward.1} parent=1 // pred_region
      %5934 = dma.done [#allocation7], 32
    $region60: #{cnn_forward.1} parent=1 // pred_fallthru
      _
    %5935 = vsyncpa [#allocation7], 1
  %5936 = vsyncmov [#allocation5]
  %s5937 = vpop.sfrf %5936
  %p5938 = scmp.eq.s32.totalorder %s5937, 0
  %p5939 = pneg %p5938
  %5941 = shalt.err (%p5939)

</llo_original>
